<compile_context>
chip_gen: v7x
topology: tpu7x:2x2x1
jax: 0.10.0
libtpu: 0.0.40
codegen_flags: <defaults>
</compile_context>

<pallas_src>
import math

import jax
import jax.numpy as jnp
from jax.experimental import pallas as pl
from jax.experimental.pallas import tpu as pltpu

_LANES = 128
_NEG_BIG = -1e30  # finite "minus infinity" sentinel (no inf-inf NaN paths)


def _kde_kernel(coeff_ref, q_ref, rhs_ref, out_ref, m_sc, s_sc):
    j = pl.program_id(1)

    @pl.when(j == 0)
    def _():
        m_sc[...] = jnp.full_like(m_sc, _NEG_BIG)
        s_sc[...] = jnp.zeros_like(s_sc)

    # Augmented contraction: z_ij = -||q_i - X_j||^2 / (2 bw^2), straight off the MXU.
    z = jnp.dot(q_ref[...], rhs_ref[...],
                preferred_element_type=jnp.float32)          # (tm, tn) f32

    tn = z.shape[-1]
    n_groups = tn // _LANES                                   # static

    # Fold the tile to 128 lanes with elementwise (VPU) max over aligned
    # 128-lane groups — no per-step cross-lane XLU reduction.
    m_tile = z[:, 0:_LANES]
    for g in range(1, n_groups):
        m_tile = jnp.maximum(m_tile, z[:, g * _LANES:(g + 1) * _LANES])
    m_new = jnp.maximum(m_sc[...], m_tile)                    # (tm, 128)

    # Per-lane online sum of exp.
    s_new = s_sc[...] * jnp.exp(m_sc[...] - m_new)
    for g in range(n_groups):
        s_new = s_new + jnp.exp(z[:, g * _LANES:(g + 1) * _LANES] - m_new)

    s_sc[...] = s_new
    m_sc[...] = m_new

    @pl.when(j == pl.num_programs(1) - 1)
    def _():
        # Single cross-lane combine per query tile.
        m = m_sc[...]                                         # (tm, 128)
        row_max = jnp.max(m, axis=-1, keepdims=True)          # (tm, 1)
        total = jnp.sum(s_sc[...] * jnp.exp(m - row_max),
                        axis=-1, keepdims=True)               # (tm, 1), >= 1
        out_ref[...] = row_max + jnp.log(total) + coeff_ref[0]


def _round_up(a, b):
    return ((a + b - 1) // b) * b


def gaussian_kde_logprob(x, X, bandwidth, *, tm=256, tn=2048):
    """Pallas TPU implementation of GaussianKernelDensity.forward.

    x: (M, d) query points, X: (N, d) kernel centers, bandwidth: scalar.
    Returns (M,) float32 log-densities.
    """
    assert tm % 8 == 0 and tn % _LANES == 0
    M, d = x.shape
    N, d2 = X.shape
    assert d == d2

    x32 = jnp.asarray(x, jnp.float32)
    X32 = jnp.asarray(X, jnp.float32)
    bw = jnp.asarray(bandwidth, jnp.float32)
    inv_bw2 = 1.0 / (bw * bw)

    # ---- tile selection ---------------------------------------------------
    M8 = _round_up(M, 8)
    tm_eff = min(tm, M8)
    if tm_eff >= M8 > 8:
        # Would be a single M tile: split in two so v7x's two TensorCores both
        # get work ("parallel" M axis is what shards the grid across cores).
        tm_eff = _round_up((M8 + 1) // 2, 8)
    M_pad = _round_up(M, tm_eff)

    N128 = _round_up(N, _LANES)
    tn_eff = min(tn, N128)
    N_pad = _round_up(N, tn_eff)

    # ---- host-side precompute (hoisted out of the streaming loop) ----------
    d_aug = d + 2
    pad_m = M_pad - M
    pad_n = N_pad - N

    # LHS: [x, 1, 0.5*||x||^2]  -> (M_pad, d+2); padded rows are all-zero.
    q_aug = jnp.concatenate(
        [x32,
         jnp.ones((M, 1), jnp.float32),
         0.5 * jnp.sum(x32 * x32, axis=1, keepdims=True)], axis=1)
    if pad_m:
        q_aug = jnp.pad(q_aug, ((0, pad_m), (0, 0)))

    # RHS: [X^T/bw^2 ; -0.5*||X||^2/bw^2 ; -1/bw^2] -> (d+2, N_pad).
    # Padded columns: features 0, bias -1e30 (raw, unscaled), last row 0.
    xt_scaled = jnp.pad(X32.T * inv_bw2, ((0, 0), (0, pad_n)))
    bias_row = jnp.pad((-0.5 * inv_bw2) * jnp.sum(X32 * X32, axis=1)[None, :],
                       ((0, 0), (0, pad_n)), constant_values=_NEG_BIG)
    last_row = jnp.pad(jnp.full((1, N), -inv_bw2, jnp.float32),
                       ((0, 0), (0, pad_n)))
    rhs = jnp.concatenate([xt_scaled, bias_row, last_row], axis=0)

    coeff = (jnp.float32(-math.log(N) - 0.5 * d * math.log(2.0 * math.pi))
             - jnp.float32(d) * jnp.log(bw))
    coeff = jnp.reshape(coeff, (1,)).astype(jnp.float32)       # (1,) in SMEM

    grid = (M_pad // tm_eff, N_pad // tn_eff)

    out = pl.pallas_call(
        _kde_kernel,
        out_shape=jax.ShapeDtypeStruct((M_pad, 1), jnp.float32),
        grid_spec=pltpu.PrefetchScalarGridSpec(
            num_scalar_prefetch=0,
            grid=grid,
            in_specs=[
                pl.BlockSpec(memory_space=pltpu.MemorySpace.SMEM),     # coeff
                pl.BlockSpec((tm_eff, d_aug), lambda i, j: (i, 0)),    # augmented queries (resident over j)
                pl.BlockSpec((d_aug, tn_eff), lambda i, j: (0, j)),    # augmented centers (streamed)
            ],
            out_specs=pl.BlockSpec((tm_eff, 1), lambda i, j: (i, 0)),
            scratch_shapes=[
                pltpu.VMEM((tm_eff, _LANES), jnp.float32),   # per-lane running max
                pltpu.VMEM((tm_eff, _LANES), jnp.float32),   # per-lane running sum
            ],
        ),
        compiler_params=pltpu.CompilerParams(
            dimension_semantics=("parallel", "arbitrary")),
    )(coeff, q_aug, rhs)

    return out[:M, 0]


def _reference(x, X, bandwidth):
    """Pure-JAX reference matching the PyTorch forward (direct differences)."""
    n, d = X.shape
    d2 = jnp.sum((x[:, None, :] - X[None, :, :]) ** 2, axis=-1)
    logits = d2 / (-2.0 * bandwidth ** 2)
    coeff = (-math.log(n) - math.log(2.0 * math.pi) * d / 2.0
             - d * math.log(bandwidth))
    return jax.scipy.special.logsumexp(logits, axis=1) + coeff


if __name__ == "__main__":
    key = jax.random.PRNGKey(0)
    k1, k2 = jax.random.split(key)

    # Small but non-trivial shapes: exercises padding on both axes, a 2-tile
    # "parallel" M grid (megacore split) and a 2-step streamed N reduction.
    M, N, D = 200, 3000, 40
    bandwidth = 0.8                 # nn.Parameter(torch.tensor(bandwidth))

    X = jax.random.normal(k1, (N, D), dtype=jnp.float32)   # self.X parameter
    x = jax.random.normal(k2, (M, D), dtype=jnp.float32)   # forward input

    out = gaussian_kde_logprob(x, X, bandwidth)
    out = jax.block_until_ready(out)

    ref = _reference(x, X, bandwidth)
    assert out.shape == (M,)
    assert jnp.allclose(out, ref, atol=2e-3, rtol=2e-3), (out[:5], ref[:5])

    print("KERNEL_OK")
</pallas_src>

<mosaic_0001>
module attributes {stable_mosaic.version = 11 : i64} {
  func.func @_kde_kernel(%arg0: i32, %arg1: i32, %arg2: memref<1xf32, #tpu.memory_space<smem>>, %arg3: memref<104x42xf32, #tpu.memory_space<vmem>>, %arg4: memref<42x2048xf32, #tpu.memory_space<vmem>>, %arg5: memref<104x1xf32, #tpu.memory_space<vmem>>, %arg6: memref<104x128xf32, #tpu.memory_space<vmem>>, %arg7: memref<104x128xf32, #tpu.memory_space<vmem>>) attributes {dimension_semantics = [#tpu.dimension_semantics<parallel>, #tpu.dimension_semantics<arbitrary>], iteration_bounds = array<i64: 2, 2>, scalar_prefetch = 0 : i64, scratch_operands = 2 : i64, tpu.core_type = #tpu.core_type<tc>, window_params = [{transform_indices = @transform_0, window_bounds = array<i64: 1>}, {transform_indices = @transform_1, window_bounds = array<i64: 104, 42>}, {transform_indices = @transform_2, window_bounds = array<i64: 42, 2048>}, {transform_indices = @transform_3, window_bounds = array<i64: 104, 1>}]} {
    %c0_i32 = arith.constant 0 : i32
    %0 = arith.cmpi eq, %arg1, %c0_i32 : i32
    %1 = arith.extui %0 : i1 to i32
    %c0_i32_0 = arith.constant 0 : i32
    %2 = arith.cmpi ne, %1, %c0_i32_0 : i32
    scf.if %2 {
      %cst_15 = arith.constant -1.000000e+30 : f32
      %113 = vector.broadcast %cst_15 : f32 to vector<104x128xf32>
      %c0_16 = arith.constant 0 : index
      %c0_17 = arith.constant 0 : index
      %114 = vector.load %arg6[%c0_16, %c0_17] : memref<104x128xf32, #tpu.memory_space<vmem>>, vector<104x128xf32>
      tpu.vector_store %arg6[%c0_16, %c0_17], %113 {strides = array<i32>} : memref<104x128xf32, #tpu.memory_space<vmem>>, vector<104x128xf32>,
      %cst_18 = arith.constant 0.000000e+00 : f32
      %115 = vector.broadcast %cst_18 : f32 to vector<104x128xf32>
      %c0_19 = arith.constant 0 : index
      %c0_20 = arith.constant 0 : index
      %116 = vector.load %arg7[%c0_19, %c0_20] : memref<104x128xf32, #tpu.memory_space<vmem>>, vector<104x128xf32>
      tpu.vector_store %arg7[%c0_19, %c0_20], %115 {strides = array<i32>} : memref<104x128xf32, #tpu.memory_space<vmem>>, vector<104x128xf32>,
    } else {
    }
    %c0 = arith.constant 0 : index
    %c0_1 = arith.constant 0 : index
    %3 = vector.load %arg3[%c0, %c0_1] : memref<104x42xf32, #tpu.memory_space<vmem>>, vector<104x42xf32>
    %c0_2 = arith.constant 0 : index
    %c0_3 = arith.constant 0 : index
    %4 = vector.load %arg4[%c0_2, %c0_3] : memref<42x2048xf32, #tpu.memory_space<vmem>>, vector<42x2048xf32>
    %cst = arith.constant dense<0.000000e+00> : vector<104x2048xf32>
    %5 = tpu.matmul %3, %4, %cst {dimension_numbers = #tpu.dot_dimension_numbers<[1], [0], [0], [1], [0, 0, 1, 1], [], []>} : vector<104x42xf32>, vector<42x2048xf32>, vector<104x2048xf32> -> vector<104x2048xf32>
    %6 = vector.extract_strided_slice %5 {offsets = [0, 0], sizes = [104, 128], strides = [1, 1]} : vector<104x2048xf32> to vector<104x128xf32>
    %7 = vector.extract_strided_slice %5 {offsets = [0, 128], sizes = [104, 128], strides = [1, 1]} : vector<104x2048xf32> to vector<104x128xf32>
    %8 = arith.maximumf %6, %7 : vector<104x128xf32>
    %9 = vector.extract_strided_slice %5 {offsets = [0, 256], sizes = [104, 128], strides = [1, 1]} : vector<104x2048xf32> to vector<104x128xf32>
    %10 = arith.maximumf %8, %9 : vector<104x128xf32>
    %11 = vector.extract_strided_slice %5 {offsets = [0, 384], sizes = [104, 128], strides = [1, 1]} : vector<104x2048xf32> to vector<104x128xf32>
    %12 = arith.maximumf %10, %11 : vector<104x128xf32>
    %13 = vector.extract_strided_slice %5 {offsets = [0, 512], sizes = [104, 128], strides = [1, 1]} : vector<104x2048xf32> to vector<104x128xf32>
    %14 = arith.maximumf %12, %13 : vector<104x128xf32>
    %15 = vector.extract_strided_slice %5 {offsets = [0, 640], sizes = [104, 128], strides = [1, 1]} : vector<104x2048xf32> to vector<104x128xf32>
    %16 = arith.maximumf %14, %15 : vector<104x128xf32>
    %17 = vector.extract_strided_slice %5 {offsets = [0, 768], sizes = [104, 128], strides = [1, 1]} : vector<104x2048xf32> to vector<104x128xf32>
    %18 = arith.maximumf %16, %17 : vector<104x128xf32>
    %19 = vector.extract_strided_slice %5 {offsets = [0, 896], sizes = [104, 128], strides = [1, 1]} : vector<104x2048xf32> to vector<104x128xf32>
    %20 = arith.maximumf %18, %19 : vector<104x128xf32>
    %21 = vector.extract_strided_slice %5 {offsets = [0, 1024], sizes = [104, 128], strides = [1, 1]} : vector<104x2048xf32> to vector<104x128xf32>
    %22 = arith.maximumf %20, %21 : vector<104x128xf32>
    %23 = vector.extract_strided_slice %5 {offsets = [0, 1152], sizes = [104, 128], strides = [1, 1]} : vector<104x2048xf32> to vector<104x128xf32>
    %24 = arith.maximumf %22, %23 : vector<104x128xf32>
    %25 = vector.extract_strided_slice %5 {offsets = [0, 1280], sizes = [104, 128], strides = [1, 1]} : vector<104x2048xf32> to vector<104x128xf32>
    %26 = arith.maximumf %24, %25 : vector<104x128xf32>
    %27 = vector.extract_strided_slice %5 {offsets = [0, 1408], sizes = [104, 128], strides = [1, 1]} : vector<104x2048xf32> to vector<104x128xf32>
    %28 = arith.maximumf %26, %27 : vector<104x128xf32>
    %29 = vector.extract_strided_slice %5 {offsets = [0, 1536], sizes = [104, 128], strides = [1, 1]} : vector<104x2048xf32> to vector<104x128xf32>
    %30 = arith.maximumf %28, %29 : vector<104x128xf32>
    %31 = vector.extract_strided_slice %5 {offsets = [0, 1664], sizes = [104, 128], strides = [1, 1]} : vector<104x2048xf32> to vector<104x128xf32>
    %32 = arith.maximumf %30, %31 : vector<104x128xf32>
    %33 = vector.extract_strided_slice %5 {offsets = [0, 1792], sizes = [104, 128], strides = [1, 1]} : vector<104x2048xf32> to vector<104x128xf32>
    %34 = arith.maximumf %32, %33 : vector<104x128xf32>
    %35 = vector.extract_strided_slice %5 {offsets = [0, 1920], sizes = [104, 128], strides = [1, 1]} : vector<104x2048xf32> to vector<104x128xf32>
    %36 = arith.maximumf %34, %35 : vector<104x128xf32>
    %c0_4 = arith.constant 0 : index
    %c0_5 = arith.constant 0 : index
    %37 = vector.load %arg6[%c0_4, %c0_5] : memref<104x128xf32, #tpu.memory_space<vmem>>, vector<104x128xf32>
    %38 = arith.maximumf %37, %36 : vector<104x128xf32>
    %c0_6 = arith.constant 0 : index
    %c0_7 = arith.constant 0 : index
    %39 = vector.load %arg7[%c0_6, %c0_7] : memref<104x128xf32, #tpu.memory_space<vmem>>, vector<104x128xf32>
    %c0_8 = arith.constant 0 : index
    %c0_9 = arith.constant 0 : index
    %40 = vector.load %arg6[%c0_8, %c0_9] : memref<104x128xf32, #tpu.memory_space<vmem>>, vector<104x128xf32>
    %41 = arith.subf %40, %38 : vector<104x128xf32>
    %42 = math.exp %41 : vector<104x128xf32>
    %43 = arith.mulf %39, %42 : vector<104x128xf32>
    %44 = vector.extract_strided_slice %5 {offsets = [0, 0], sizes = [104, 128], strides = [1, 1]} : vector<104x2048xf32> to vector<104x128xf32>
    %45 = arith.subf %44, %38 : vector<104x128xf32>
    %46 = math.exp %45 : vector<104x128xf32>
    %47 = arith.addf %43, %46 : vector<104x128xf32>
    %48 = vector.extract_strided_slice %5 {offsets = [0, 128], sizes = [104, 128], strides = [1, 1]} : vector<104x2048xf32> to vector<104x128xf32>
    %49 = arith.subf %48, %38 : vector<104x128xf32>
    %50 = math.exp %49 : vector<104x128xf32>
    %51 = arith.addf %47, %50 : vector<104x128xf32>
    %52 = vector.extract_strided_slice %5 {offsets = [0, 256], sizes = [104, 128], strides = [1, 1]} : vector<104x2048xf32> to vector<104x128xf32>
    %53 = arith.subf %52, %38 : vector<104x128xf32>
    %54 = math.exp %53 : vector<104x128xf32>
    %55 = arith.addf %51, %54 : vector<104x128xf32>
    %56 = vector.extract_strided_slice %5 {offsets = [0, 384], sizes = [104, 128], strides = [1, 1]} : vector<104x2048xf32> to vector<104x128xf32>
    %57 = arith.subf %56, %38 : vector<104x128xf32>
    %58 = math.exp %57 : vector<104x128xf32>
    %59 = arith.addf %55, %58 : vector<104x128xf32>
    %60 = vector.extract_strided_slice %5 {offsets = [0, 512], sizes = [104, 128], strides = [1, 1]} : vector<104x2048xf32> to vector<104x128xf32>
    %61 = arith.subf %60, %38 : vector<104x128xf32>
    %62 = math.exp %61 : vector<104x128xf32>
    %63 = arith.addf %59, %62 : vector<104x128xf32>
    %64 = vector.extract_strided_slice %5 {offsets = [0, 640], sizes = [104, 128], strides = [1, 1]} : vector<104x2048xf32> to vector<104x128xf32>
    %65 = arith.subf %64, %38 : vector<104x128xf32>
    %66 = math.exp %65 : vector<104x128xf32>
    %67 = arith.addf %63, %66 : vector<104x128xf32>
    %68 = vector.extract_strided_slice %5 {offsets = [0, 768], sizes = [104, 128], strides = [1, 1]} : vector<104x2048xf32> to vector<104x128xf32>
    %69 = arith.subf %68, %38 : vector<104x128xf32>
    %70 = math.exp %69 : vector<104x128xf32>
    %71 = arith.addf %67, %70 : vector<104x128xf32>
    %72 = vector.extract_strided_slice %5 {offsets = [0, 896], sizes = [104, 128], strides = [1, 1]} : vector<104x2048xf32> to vector<104x128xf32>
    %73 = arith.subf %72, %38 : vector<104x128xf32>
    %74 = math.exp %73 : vector<104x128xf32>
    %75 = arith.addf %71, %74 : vector<104x128xf32>
    %76 = vector.extract_strided_slice %5 {offsets = [0, 1024], sizes = [104, 128], strides = [1, 1]} : vector<104x2048xf32> to vector<104x128xf32>
    %77 = arith.subf %76, %38 : vector<104x128xf32>
    %78 = math.exp %77 : vector<104x128xf32>
    %79 = arith.addf %75, %78 : vector<104x128xf32>
    %80 = vector.extract_strided_slice %5 {offsets = [0, 1152], sizes = [104, 128], strides = [1, 1]} : vector<104x2048xf32> to vector<104x128xf32>
    %81 = arith.subf %80, %38 : vector<104x128xf32>
    %82 = math.exp %81 : vector<104x128xf32>
    %83 = arith.addf %79, %82 : vector<104x128xf32>
    %84 = vector.extract_strided_slice %5 {offsets = [0, 1280], sizes = [104, 128], strides = [1, 1]} : vector<104x2048xf32> to vector<104x128xf32>
    %85 = arith.subf %84, %38 : vector<104x128xf32>
    %86 = math.exp %85 : vector<104x128xf32>
    %87 = arith.addf %83, %86 : vector<104x128xf32>
    %88 = vector.extract_strided_slice %5 {offsets = [0, 1408], sizes = [104, 128], strides = [1, 1]} : vector<104x2048xf32> to vector<104x128xf32>
    %89 = arith.subf %88, %38 : vector<104x128xf32>
    %90 = math.exp %89 : vector<104x128xf32>
    %91 = arith.addf %87, %90 : vector<104x128xf32>
    %92 = vector.extract_strided_slice %5 {offsets = [0, 1536], sizes = [104, 128], strides = [1, 1]} : vector<104x2048xf32> to vector<104x128xf32>
    %93 = arith.subf %92, %38 : vector<104x128xf32>
    %94 = math.exp %93 : vector<104x128xf32>
    %95 = arith.addf %91, %94 : vector<104x128xf32>
    %96 = vector.extract_strided_slice %5 {offsets = [0, 1664], sizes = [104, 128], strides = [1, 1]} : vector<104x2048xf32> to vector<104x128xf32>
    %97 = arith.subf %96, %38 : vector<104x128xf32>
    %98 = math.exp %97 : vector<104x128xf32>
    %99 = arith.addf %95, %98 : vector<104x128xf32>
    %100 = vector.extract_strided_slice %5 {offsets = [0, 1792], sizes = [104, 128], strides = [1, 1]} : vector<104x2048xf32> to vector<104x128xf32>
    %101 = arith.subf %100, %38 : vector<104x128xf32>
    %102 = math.exp %101 : vector<104x128xf32>
    %103 = arith.addf %99, %102 : vector<104x128xf32>
    %104 = vector.extract_strided_slice %5 {offsets = [0, 1920], sizes = [104, 128], strides = [1, 1]} : vector<104x2048xf32> to vector<104x128xf32>
    %105 = arith.subf %104, %38 : vector<104x128xf32>
    %106 = math.exp %105 : vector<104x128xf32>
    %107 = arith.addf %103, %106 : vector<104x128xf32>
    %c0_10 = arith.constant 0 : index
    %c0_11 = arith.constant 0 : index
    %108 = vector.load %arg7[%c0_10, %c0_11] : memref<104x128xf32, #tpu.memory_space<vmem>>, vector<104x128xf32>
    tpu.vector_store %arg7[%c0_10, %c0_11], %107 {strides = array<i32>} : memref<104x128xf32, #tpu.memory_space<vmem>>, vector<104x128xf32>,
    %c0_12 = arith.constant 0 : index
    %c0_13 = arith.constant 0 : index
    %109 = vector.load %arg6[%c0_12, %c0_13] : memref<104x128xf32, #tpu.memory_space<vmem>>, vector<104x128xf32>
    tpu.vector_store %arg6[%c0_12, %c0_13], %38 {strides = array<i32>} : memref<104x128xf32, #tpu.memory_space<vmem>>, vector<104x128xf32>,
    %c1_i32 = arith.constant 1 : i32
    %110 = arith.cmpi eq, %arg1, %c1_i32 : i32
    %111 = arith.extui %110 : i1 to i32
    %c0_i32_14 = arith.constant 0 : i32
    %112 = arith.cmpi ne, %111, %c0_i32_14 : i32
    scf.if %112 {
      %c0_15 = arith.constant 0 : index
      %c0_16 = arith.constant 0 : index
      %113 = vector.load %arg6[%c0_15, %c0_16] : memref<104x128xf32, #tpu.memory_space<vmem>>, vector<104x128xf32>
      %cst_17 = arith.constant dense<0xFF800000> : vector<104xf32>
      %114 = vector.multi_reduction <maximumf>, %113, %cst_17 [1] : vector<104x128xf32> to vector<104xf32>
      %115 = vector.shape_cast %114 : vector<104xf32> to vector<104x1xf32>
      %c0_18 = arith.constant 0 : index
      %c0_19 = arith.constant 0 : index
      %116 = vector.load %arg7[%c0_18, %c0_19] : memref<104x128xf32, #tpu.memory_space<vmem>>, vector<104x128xf32>
      %117 = vector.broadcast %115 : vector<104x1xf32> to vector<104x128xf32>
      %118 = arith.subf %113, %117 : vector<104x128xf32>
      %119 = math.exp %118 : vector<104x128xf32>
      %120 = arith.mulf %116, %119 : vector<104x128xf32>
      %cst_20 = arith.constant dense<0.000000e+00> : vector<104xf32>
      %121 = vector.multi_reduction <add>, %120, %cst_20 [1] : vector<104x128xf32> to vector<104xf32>
      %122 = vector.shape_cast %121 : vector<104xf32> to vector<104x1xf32>
      %123 = math.log %122 : vector<104x1xf32>
      %124 = arith.addf %115, %123 : vector<104x1xf32>
      %c0_21 = arith.constant 0 : index
      %125 = memref.load %arg2[%c0_21] : memref<1xf32, #tpu.memory_space<smem>>
      %126 = vector.broadcast %125 : f32 to vector<104x1xf32>
      %127 = arith.addf %124, %126 : vector<104x1xf32>
      %c0_22 = arith.constant 0 : index
      %c0_23 = arith.constant 0 : index
      %128 = vector.load %arg5[%c0_22, %c0_23] : memref<104x1xf32, #tpu.memory_space<vmem>>, vector<104x1xf32>
      tpu.vector_store %arg5[%c0_22, %c0_23], %127 {strides = array<i32>} : memref<104x1xf32, #tpu.memory_space<vmem>>, vector<104x1xf32>,
    } else {
    }
    return
  }
  func.func @transform_0(%arg0: i32, %arg1: i32) -> i32 {
    %c0_i32 = arith.constant 0 : i32
    %c0_i32_0 = arith.constant 0 : i32
    return %c0_i32 : i32
  }
  func.func @transform_1(%arg0: i32, %arg1: i32) -> (i32, i32) {
    %c0_i32 = arith.constant 0 : i32
    %c0_i32_0 = arith.constant 0 : i32
    return %arg0, %c0_i32 : i32, i32
  }
  func.func @transform_2(%arg0: i32, %arg1: i32) -> (i32, i32) {
    %c0_i32 = arith.constant 0 : i32
    %c0_i32_0 = arith.constant 0 : i32
    return %c0_i32, %arg1 : i32, i32
  }
  func.func @transform_3(%arg0: i32, %arg1: i32) -> (i32, i32) {
    %c0_i32 = arith.constant 0 : i32
    %c0_i32_0 = arith.constant 0 : i32
    return %arg0, %c0_i32 : i32, i32
  }
}

</mosaic_0001>

<llo_original>
// kernel: tpu_custom_call.1
$region0: #{tpu_custom_call.1}
  #allocation0 [shape = 'u32[]', space=smem, size = 0x4, offset = 0x4, fixed_abs, tag = 'smem constant byte address 0x4 - core index']
  #allocation1 [shape = 'u32[144,128]{1,0:T(1,128)}', space=vmem, size = 0x12000, scoped, tag = 'internal scratch']
  #allocation2 [shape = 'f32[104,128]{1,0:T(8,128)}', space=vmem, size = 0xd000, scoped, tag = 'scratch operand']
  #allocation3 [shape = 'f32[104,128]{1,0:T(8,128)}', space=vmem, size = 0xd000, scoped, tag = 'scratch operand']
  #allocation4 [shape = 'f32[1]{0:T(128)S(6)}', space=smem, size = 0x200, scoped, tag = 'scoped memory for tpu_custom_call.1']
  %s0 = inlined_call_operand.<no memory space> [shape: f32[1], index: 0, kind: input, shape index: {}]
  %s1 = inlined_call_operand.vmem [shape: f32[208,42], index: 1, kind: input, shape index: {}]
  %s2 = inlined_call_operand.hbm [shape: f32[42,4096], index: 2, kind: input, shape index: {}]
  %s3 = inlined_call_operand.vmem [shape: f32[208,1], index: 3, kind: output, shape index: {}]
  %s4 = sld [smem:[#allocation0]]
  $region57: #{tpu_custom_call.1} parent=0
    _
  %s6 = ssub.s32 1, %s4
  %s7 = scalar_select 0, %s6, %s4
  %8 = sst [smem:[#allocation4]] %s0
  $region1: #{tpu_custom_call.1} parent=0
    #allocation5 [shape = 'u8[786432]{0}', space=vmem, size = 0xc0000, scoped, tag = 'input window, operand 2']
    #allocation6 [shape = 's32[2]{0}', space=sflag, size = 0x8, scoped, tag = 'scoped memory for tpu_custom_call.1']
    %9 = vsyncpa [#allocation6], 0
    %s10 = scalar_lea.sflag [#allocation6], 1
    %11 = vsyncpa %s10, 0
    loop: start=0, step=1, limit=6
    $region2: #{tpu_custom_call.1} parent=1 // loop_pre_header
      _
    $region3: #{tpu_custom_call.1} parent=1 // loop_header
      %s13 = sphi 0, %s17
      %p14 = scmp.ge.s32.totalorder %s13, 6
      %s20 = sphi 0, %s32
      %s21 = sphi 0, %s28
      %s22 = sphi 0, %s20
      %s23 = sphi 0, %s21
      %s24 = sphi 0, %s22
      %s25 = sphi 0, %s23
      %s33 = sphi 0, %s33
      %s35 = sphi 0, %s33
      %s36 = sphi 0, %s35
      %s50 = sphi 0, %s36
      %s56 = sphi 0, %s58
      %s59 = sphi 0, %s56
      %s60 = sphi 0, %s59
      %s76 = sphi 0, %s60
      %s82 = sphi 0, %s84
      %s85 = sphi 0, %s82
      %s86 = sphi 0, %s85
      %s102 = sphi 0, %s86
      %s108 = sphi 0, %s110
      %s111 = sphi 0, %s108
      %s112 = sphi 0, %s111
      %s128 = sphi 0, %s112
    $region4: #{tpu_custom_call.1} parent=1 // loop_header_branch
      %16 = sbr.rel (%p14) target = $region8
    $region5: #{tpu_custom_call.1} parent=1 // loop_body
      %s18 = ssub.s32 %s13, 1
      %s19 = ssub.s32 %s13, 2
      %s26 = sadd.s32 1, %s21
      %p27 = scmp.ge.s32.totalorder %s26, 2
      %s28 = scalar_select %p27, 0, %s26
      %s29 = sadd.s32 1, %s20
      %s30 = scalar_select %p27, %s29, %s20
      %p31 = scmp.ge.s32.totalorder %s30, 2
      %s32 = scalar_select %p31, 0, %s30
      %s34 = sadd.s32 %s33, 1
      %p37 = scmp.eq.s32.totalorder %s13, 3
      %p38 = scmp.ne.s32.totalorder %s33, %s35
      %p39 = scmp.eq.s32.totalorder %s13, 0
      %p40 = por %p38, %p39
      %p41 = scmp.ne.s32.totalorder %s33, %s35
      %p42 = scmp.eq.s32.totalorder %s18, 3
      %p43 = por %p41, %p42
      %p44 = scmp.ne.s32.totalorder %s35, %s36
      %p45 = scmp.eq.s32.totalorder %s18, 0
      %p46 = por %p44, %p45
      %p47 = scmp.ne.s32.totalorder %s35, %s36
      %p48 = scmp.eq.s32.totalorder %s19, 3
      %p49 = por %p47, %p48
      %p51 = scmp.ne.s32.totalorder %s36, %s50
      %p52 = scmp.eq.s32.totalorder %s19, 0
      %p53 = por %p51, %p52
      %s54 = ssub.s32 %s20, %s32
      %p55 = scmp.eq.s32.totalorder %s54, 0
      %s57 = sadd.s32 %s56, 1
      %s58 = scalar_select %p55, %s56, %s57
      %p61 = pneg %p55
      %p62 = scmp.eq.s32.totalorder %s13, 3
      %p63 = por %p61, %p62
      %p64 = scmp.ne.s32.totalorder %s56, %s59
      %p65 = scmp.eq.s32.totalorder %s13, 0
      %p66 = por %p64, %p65
      %p67 = scmp.ne.s32.totalorder %s56, %s59
      %p68 = scmp.eq.s32.totalorder %s18, 3
      %p69 = por %p67, %p68
      %p70 = scmp.ne.s32.totalorder %s59, %s60
      %p71 = scmp.eq.s32.totalorder %s18, 0
      %p72 = por %p70, %p71
      %p73 = scmp.ne.s32.totalorder %s59, %s60
      %p74 = scmp.eq.s32.totalorder %s19, 3
      %p75 = por %p73, %p74
      %p77 = scmp.ne.s32.totalorder %s60, %s76
      %p78 = scmp.eq.s32.totalorder %s19, 0
      %p79 = por %p77, %p78
      %s80 = ssub.s32 %s21, %s28
      %p81 = scmp.eq.s32.totalorder %s80, 0
      %s83 = sadd.s32 %s82, 1
      %s84 = scalar_select %p81, %s82, %s83
      %p87 = pneg %p81
      %p88 = scmp.eq.s32.totalorder %s13, 3
      %p89 = por %p87, %p88
      %p90 = scmp.ne.s32.totalorder %s82, %s85
      %p91 = scmp.eq.s32.totalorder %s13, 0
      %p92 = por %p90, %p91
      %p93 = scmp.ne.s32.totalorder %s82, %s85
      %p94 = scmp.eq.s32.totalorder %s18, 3
      %p95 = por %p93, %p94
      %p96 = scmp.ne.s32.totalorder %s85, %s86
      %p97 = scmp.eq.s32.totalorder %s18, 0
      %p98 = por %p96, %p97
      %p99 = scmp.ne.s32.totalorder %s85, %s86
      %p100 = scmp.eq.s32.totalorder %s19, 3
      %p101 = por %p99, %p100
      %p103 = scmp.ne.s32.totalorder %s86, %s102
      %p104 = scmp.eq.s32.totalorder %s19, 0
      %p105 = por %p103, %p104
      %s106 = ssub.s32 %s20, %s32
      %p107 = scmp.eq.s32.totalorder %s106, 0
      %s109 = sadd.s32 %s108, 1
      %s110 = scalar_select %p107, %s108, %s109
      %p113 = pneg %p107
      %p114 = scmp.eq.s32.totalorder %s13, 3
      %p115 = por %p113, %p114
      %p116 = scmp.ne.s32.totalorder %s108, %s111
      %p117 = scmp.eq.s32.totalorder %s13, 0
      %p118 = por %p116, %p117
      %p119 = scmp.ne.s32.totalorder %s108, %s111
      %p120 = scmp.eq.s32.totalorder %s18, 3
      %p121 = por %p119, %p120
      %p122 = scmp.ne.s32.totalorder %s111, %s112
      %p123 = scmp.eq.s32.totalorder %s18, 0
      %p124 = por %p122, %p123
      %p125 = scmp.ne.s32.totalorder %s111, %s112
      %p126 = scmp.eq.s32.totalorder %s19, 3
      %p127 = por %p125, %p126
      %p129 = scmp.ne.s32.totalorder %s112, %s128
      %p130 = scmp.eq.s32.totalorder %s19, 0
      %p131 = por %p129, %p130
      %p132 = scmp.le.s32.totalorder 1, %s13
      %p133 = scmp.lt.s32.totalorder %s13, 5
      %p134 = pnand %p132, %p133
      %p135 = pneg %p134
      // Predicated region
      $region9: #{tpu_custom_call.1} parent=5 // pred_check
        _
      $region10: #{tpu_custom_call.1} parent=5 // pred_check_branch
        %137 = sbr.rel (%p134) target = $region12
      $region11: #{tpu_custom_call.1} parent=5 // pred_region
        %s138 = ssub.s32 %s13, 1
        // Predicated region
        $region13: #{tpu_custom_call.1} parent=11 // pred_check
          %p139 = pneg %p46
        $region14: #{tpu_custom_call.1} parent=11 // pred_check_branch
          %141 = sbr.rel (%p139) target = $region16
        $region15: #{tpu_custom_call.1} parent=11 // pred_region
          _
        $region16: #{tpu_custom_call.1} parent=11 // pred_fallthru
          _
      $region12: #{tpu_custom_call.1} parent=5 // pred_fallthru
        _
      %p142 = scmp.lt.s32.totalorder %s13, 4
      // Predicated region
      $region17: #{tpu_custom_call.1} parent=5 // pred_check
        %p143 = pneg %p142
      $region18: #{tpu_custom_call.1} parent=5 // pred_check_branch
        %145 = sbr.rel (%p143) target = $region20
      $region19: #{tpu_custom_call.1} parent=5 // pred_region
        // Predicated region
        $region21: #{tpu_custom_call.1} parent=19 // pred_check
          %p146 = pneg %p66
        $region22: #{tpu_custom_call.1} parent=19 // pred_check_branch
          %148 = sbr.rel (%p146) target = $region24
        $region23: #{tpu_custom_call.1} parent=19 // pred_region
          %s149 = smul.u32 13, %s20
          %p150 = scmp.lt.s32.totalorder %s149, 25
          %s151 = scalar_select %p150, %s149, 25
          %s152 = smul.addr %s151, 8
          %s153 = scalar_lea.vmem %s1, %s152
          %s154 = smul.u32 13, %s20
        $region24: #{tpu_custom_call.1} parent=19 // pred_fallthru
          _
        // Predicated region
        $region25: #{tpu_custom_call.1} parent=19 // pred_check
          %p155 = pneg %p92
        $region26: #{tpu_custom_call.1} parent=19 // pred_check_branch
          %157 = sbr.rel (%p155) target = $region28
        $region27: #{tpu_custom_call.1} parent=19 // pred_region
          %s158 = sand.u32 %s82, 1
          %s159 = scalar_lea.sflag [#allocation6], %s158
          %s160 = sand.u32 %s82, 1
          %s161 = smul.addr %s160, 768
          %s162 = scalar_lea.vmem [#allocation5], %s161
          %s163 = smul.u32 16, %s21
          %s165 = ssub.s32 12288, 12288
          %166 = vsyncadd %s159, %s165
          %s167 = smul.addr %s163, 128
          %s168 = scalar_lea.hbm %s2, %s167
          %s169 = sshll.u32 %s162, 4
          %s170 = int_to_ptr.vmem [resolvable:$true] %s169
          %175 = dma.hbm_to_vmem [thread:$0]  %s168, 12288, %s170, %s159, 4096, 2048, 128
        $region28: #{tpu_custom_call.1} parent=19 // pred_fallthru
          _
      $region20: #{tpu_custom_call.1} parent=5 // pred_fallthru
        _
      %p176 = scmp.le.s32.totalorder 1, %s13
      %p177 = scmp.lt.s32.totalorder %s13, 5
      %p178 = pnand %p176, %p177
      %p179 = pneg %p178
      // Predicated region
      $region29: #{tpu_custom_call.1} parent=5 // pred_check
        _
      $region30: #{tpu_custom_call.1} parent=5 // pred_check_branch
        %181 = sbr.rel (%p178) target = $region32
      $region31: #{tpu_custom_call.1} parent=5 // pred_region
        %s182 = ssub.s32 %s13, 1
        %s183 = sand.u32 %s85, 1
        %s184 = scalar_lea.sflag [#allocation6], %s183
        %s185 = sand.u32 %s85, 1
        %s186 = smul.addr %s185, 768
        %s187 = scalar_lea.vmem [#allocation5], %s186
        // Predicated region
        $region33: #{tpu_custom_call.1} parent=31 // pred_check
          %p188 = pneg %p98
        $region34: #{tpu_custom_call.1} parent=31 // pred_check_branch
          %190 = sbr.rel (%p188) target = $region36
        $region35: #{tpu_custom_call.1} parent=31 // pred_region
          %191 = dma.done %s184, 12288
        $region36: #{tpu_custom_call.1} parent=31 // pred_fallthru
          _
        %p192 = pneg %p46
        %p193 = pneg %p43
        %s194 = smul.u32 13, %s22
        %p195 = scmp.lt.s32.totalorder %s194, 25
        %s196 = scalar_select %p195, %s194, 25
        %s197 = smul.addr %s196, 8
        %s198 = scalar_lea.vmem %s1, %s197
        %p199 = pneg %p72
        %p200 = pneg %p69
        %s201 = sand.u32 %s85, 1
        %s202 = scalar_lea.sflag [#allocation6], %s201
        %s203 = sand.u32 %s85, 1
        %s204 = smul.addr %s203, 768
        %s205 = scalar_lea.vmem [#allocation5], %s204
        %p206 = pneg %p98
        %p207 = pneg %p95
        %p208 = pneg %p124
        %p209 = pneg %p121
        %s210 = smul.u32 13, %s22
        %p211 = scmp.lt.s32.totalorder %s210, 25
        %s212 = scalar_select %p211, %s210, 25
        %s213 = smul.addr %s212, 8
        %s214 = scalar_lea.vmem %s3, %s213
        %s215 = smul.u32 13, %s22
        %p216 = scmp.lt.s32.totalorder %s215, 25
        %s217 = scalar_select %p216, %s215, 25
        %s218 = smul.addr %s217, 8
        %s219 = scalar_lea.vmem %s1, %s218
        %s220 = smul.u32 13, %s22
        %s221 = smul.u32 16, %s23
        %s222 = smul.u32 13, %s22
        %p223 = scmp.lt.s32.totalorder %s222, 25
        %s224 = scalar_select %p223, %s222, 25
        %s225 = smul.addr %s224, 8
        %s226 = scalar_lea.vmem %s3, %s225
        %s227 = smul.u32 13, %s22
        %p228 = scmp.eq.s32.totalorder %s23, 0
        // Predicated region
        $region37: #{tpu_custom_call.1} parent=31 // pred_check
          %p229 = pneg %p228
        $region38: #{tpu_custom_call.1} parent=31 // pred_check_branch
          %231 = sbr.rel (%p229) target = $region40
        $region39: #{tpu_custom_call.1} parent=31 // pred_region
          %232 = vst [vmem:[#allocation2] sm:$0xff] -1e+30
          %233 = vst [vmem:[#allocation2 + $0x8] sm:$0xff] -1e+30
          %234 = vst [vmem:[#allocation2 + $0x10] sm:$0xff] -1e+30
          %235 = vst [vmem:[#allocation2 + $0x18] sm:$0xff] -1e+30
          %236 = vst [vmem:[#allocation2 + $0x20] sm:$0xff] -1e+30
          %237 = vst [vmem:[#allocation2 + $0x28] sm:$0xff] -1e+30
          %238 = vst [vmem:[#allocation2 + $0x30] sm:$0xff] -1e+30
          %239 = vst [vmem:[#allocation2 + $0x38] sm:$0xff] -1e+30
          %240 = vst [vmem:[#allocation2 + $0x40] sm:$0xff] -1e+30
          %241 = vst [vmem:[#allocation2 + $0x48] sm:$0xff] -1e+30
          %242 = vst [vmem:[#allocation2 + $0x50] sm:$0xff] -1e+30
          %243 = vst [vmem:[#allocation2 + $0x58] sm:$0xff] -1e+30
          %244 = vst [vmem:[#allocation2 + $0x60] sm:$0xff] -1e+30
          %245 = vst [vmem:[#allocation3] sm:$0xff] 0.0
          %246 = vst [vmem:[#allocation3 + $0x8] sm:$0xff] 0.0
          %247 = vst [vmem:[#allocation3 + $0x10] sm:$0xff] 0.0
          %248 = vst [vmem:[#allocation3 + $0x18] sm:$0xff] 0.0
          %249 = vst [vmem:[#allocation3 + $0x20] sm:$0xff] 0.0
          %250 = vst [vmem:[#allocation3 + $0x28] sm:$0xff] 0.0
          %251 = vst [vmem:[#allocation3 + $0x30] sm:$0xff] 0.0
          %252 = vst [vmem:[#allocation3 + $0x38] sm:$0xff] 0.0
          %253 = vst [vmem:[#allocation3 + $0x40] sm:$0xff] 0.0
          %254 = vst [vmem:[#allocation3 + $0x48] sm:$0xff] 0.0
          %255 = vst [vmem:[#allocation3 + $0x50] sm:$0xff] 0.0
          %256 = vst [vmem:[#allocation3 + $0x58] sm:$0xff] 0.0
          %257 = vst [vmem:[#allocation3 + $0x60] sm:$0xff] 0.0
        $region40: #{tpu_custom_call.1} parent=31 // pred_fallthru
          _
        %v258 = vld [vmem:[%s219] sm:$0xff]
        %v259 = vld [vmem:[%s219 + $0x8] sm:$0xff]
        %v260 = vld [vmem:[%s219 + $0x10] sm:$0xff]
        %v261 = vld [vmem:[%s219 + $0x18] sm:$0xff]
        %v262 = vld [vmem:[%s219 + $0x20] sm:$0xff]
        %v263 = vld [vmem:[%s219 + $0x28] sm:$0xff]
        %v264 = vld [vmem:[%s219 + $0x30] sm:$0xff]
        %v265 = vld [vmem:[%s219 + $0x38] sm:$0xff]
        %v266 = vld [vmem:[%s219 + $0x40] sm:$0xff]
        %v267 = vld [vmem:[%s219 + $0x48] sm:$0xff]
        %v268 = vld [vmem:[%s219 + $0x50] sm:$0xff]
        %v269 = vld [vmem:[%s219 + $0x58] sm:$0xff]
        %v270 = vld [vmem:[%s219 + $0x60] sm:$0xff]
        %v271 = vld [vmem:[%s187] sm:$0xff]
        %v272 = vld [vmem:[%s187 + $0x8] sm:$0xff]
        %v273 = vld [vmem:[%s187 + $0x10] sm:$0xff]
        %v274 = vld [vmem:[%s187 + $0x18] sm:$0xff]
        %v275 = vld [vmem:[%s187 + $0x20] sm:$0xff]
        %v276 = vld [vmem:[%s187 + $0x28] sm:$0xff]
        %v277 = vld [vmem:[%s187 + $0x30] sm:$0xff]
        %v278 = vld [vmem:[%s187 + $0x38] sm:$0xff]
        %v279 = vld [vmem:[%s187 + $0x40] sm:$0xff]
        %v280 = vld [vmem:[%s187 + $0x48] sm:$0xff]
        %v281 = vld [vmem:[%s187 + $0x50] sm:$0xff]
        %v282 = vld [vmem:[%s187 + $0x58] sm:$0xff]
        %v283 = vld [vmem:[%s187 + $0x60] sm:$0xff]
        %v284 = vld [vmem:[%s187 + $0x68] sm:$0xff]
        %v285 = vld [vmem:[%s187 + $0x70] sm:$0xff]
        %v286 = vld [vmem:[%s187 + $0x78] sm:$0xff]
        %v287 = vld [vmem:[%s187 + $0x80] sm:$0xff]
        %v288 = vld [vmem:[%s187 + $0x88] sm:$0xff]
        %v289 = vld [vmem:[%s187 + $0x90] sm:$0xff]
        %v290 = vld [vmem:[%s187 + $0x98] sm:$0xff]
        %v291 = vld [vmem:[%s187 + $0xa0] sm:$0xff]
        %v292 = vld [vmem:[%s187 + $0xa8] sm:$0xff]
        %v293 = vld [vmem:[%s187 + $0xb0] sm:$0xff]
        %v294 = vld [vmem:[%s187 + $0xb8] sm:$0xff]
        %v295 = vld [vmem:[%s187 + $0xc0] sm:$0xff]
        %v296 = vld [vmem:[%s187 + $0xc8] sm:$0xff]
        %v297 = vld [vmem:[%s187 + $0xd0] sm:$0xff]
        %v298 = vld [vmem:[%s187 + $0xd8] sm:$0xff]
        %v299 = vld [vmem:[%s187 + $0xe0] sm:$0xff]
        %v300 = vld [vmem:[%s187 + $0xe8] sm:$0xff]
        %v301 = vld [vmem:[%s187 + $0xf0] sm:$0xff]
        %v302 = vld [vmem:[%s187 + $0xf8] sm:$0xff]
        %v303 = vld [vmem:[%s187 + $0x100] sm:$0xff]
        %v304 = vld [vmem:[%s187 + $0x108] sm:$0xff]
        %v305 = vld [vmem:[%s187 + $0x110] sm:$0xff]
        %v306 = vld [vmem:[%s187 + $0x118] sm:$0xff]
        %v307 = vld [vmem:[%s187 + $0x120] sm:$0xff]
        %v308 = vld [vmem:[%s187 + $0x128] sm:$0xff]
        %v309 = vld [vmem:[%s187 + $0x130] sm:$0xff]
        %v310 = vld [vmem:[%s187 + $0x138] sm:$0xff]
        %v311 = vld [vmem:[%s187 + $0x140] sm:$0xff]
        %v312 = vld [vmem:[%s187 + $0x148] sm:$0xff]
        %v313 = vld [vmem:[%s187 + $0x150] sm:$0xff]
        %v314 = vld [vmem:[%s187 + $0x158] sm:$0xff]
        %v315 = vld [vmem:[%s187 + $0x160] sm:$0xff]
        %v316 = vld [vmem:[%s187 + $0x168] sm:$0xff]
        %v317 = vld [vmem:[%s187 + $0x170] sm:$0xff]
        %v318 = vld [vmem:[%s187 + $0x178] sm:$0xff]
        %v319 = vld [vmem:[%s187 + $0x180] sm:$0xff]
        %v320 = vld [vmem:[%s187 + $0x188] sm:$0xff]
        %v321 = vld [vmem:[%s187 + $0x190] sm:$0xff]
        %v322 = vld [vmem:[%s187 + $0x198] sm:$0xff]
        %v323 = vld [vmem:[%s187 + $0x1a0] sm:$0xff]
        %v324 = vld [vmem:[%s187 + $0x1a8] sm:$0xff]
        %v325 = vld [vmem:[%s187 + $0x1b0] sm:$0xff]
        %v326 = vld [vmem:[%s187 + $0x1b8] sm:$0xff]
        %v327 = vld [vmem:[%s187 + $0x1c0] sm:$0xff]
        %v328 = vld [vmem:[%s187 + $0x1c8] sm:$0xff]
        %v329 = vld [vmem:[%s187 + $0x1d0] sm:$0xff]
        %v330 = vld [vmem:[%s187 + $0x1d8] sm:$0xff]
        %v331 = vld [vmem:[%s187 + $0x1e0] sm:$0xff]
        %v332 = vld [vmem:[%s187 + $0x1e8] sm:$0xff]
        %v333 = vld [vmem:[%s187 + $0x1f0] sm:$0xff]
        %v334 = vld [vmem:[%s187 + $0x1f8] sm:$0xff]
        %v335 = vld [vmem:[%s187 + $0x200] sm:$0xff]
        %v336 = vld [vmem:[%s187 + $0x208] sm:$0xff]
        %v337 = vld [vmem:[%s187 + $0x210] sm:$0xff]
        %v338 = vld [vmem:[%s187 + $0x218] sm:$0xff]
        %v339 = vld [vmem:[%s187 + $0x220] sm:$0xff]
        %v340 = vld [vmem:[%s187 + $0x228] sm:$0xff]
        %v341 = vld [vmem:[%s187 + $0x230] sm:$0xff]
        %v342 = vld [vmem:[%s187 + $0x238] sm:$0xff]
        %v343 = vld [vmem:[%s187 + $0x240] sm:$0xff]
        %v344 = vld [vmem:[%s187 + $0x248] sm:$0xff]
        %v345 = vld [vmem:[%s187 + $0x250] sm:$0xff]
        %v346 = vld [vmem:[%s187 + $0x258] sm:$0xff]
        %v347 = vld [vmem:[%s187 + $0x260] sm:$0xff]
        %v348 = vld [vmem:[%s187 + $0x268] sm:$0xff]
        %v349 = vld [vmem:[%s187 + $0x270] sm:$0xff]
        %v350 = vld [vmem:[%s187 + $0x278] sm:$0xff]
        %v351 = vld [vmem:[%s187 + $0x280] sm:$0x3]
        %v352 = vld [vmem:[%s187 + $0x288] sm:$0x3]
        %v353 = vld [vmem:[%s187 + $0x290] sm:$0x3]
        %v354 = vld [vmem:[%s187 + $0x298] sm:$0x3]
        %v355 = vld [vmem:[%s187 + $0x2a0] sm:$0x3]
        %v356 = vld [vmem:[%s187 + $0x2a8] sm:$0x3]
        %v357 = vld [vmem:[%s187 + $0x2b0] sm:$0x3]
        %v358 = vld [vmem:[%s187 + $0x2b8] sm:$0x3]
        %v359 = vld [vmem:[%s187 + $0x2c0] sm:$0x3]
        %v360 = vld [vmem:[%s187 + $0x2c8] sm:$0x3]
        %v361 = vld [vmem:[%s187 + $0x2d0] sm:$0x3]
        %v362 = vld [vmem:[%s187 + $0x2d8] sm:$0x3]
        %v363 = vld [vmem:[%s187 + $0x2e0] sm:$0x3]
        %v364 = vld [vmem:[%s187 + $0x2e8] sm:$0x3]
        %v365 = vld [vmem:[%s187 + $0x2f0] sm:$0x3]
        %v366 = vld [vmem:[%s187 + $0x2f8] sm:$0x3]
        %vm367 = vcmask 343040
        %v369 = vsel %vm367, %v258, 0
        %v372 = vsel %vm367, %v259, 0
        %v375 = vsel %vm367, %v260, 0
        %v378 = vsel %vm367, %v261, 0
        %v381 = vsel %vm367, %v262, 0
        %v384 = vsel %vm367, %v263, 0
        %v387 = vsel %vm367, %v264, 0
        %v390 = vsel %vm367, %v265, 0
        %v393 = vsel %vm367, %v266, 0
        %v396 = vsel %vm367, %v267, 0
        %v399 = vsel %vm367, %v268, 0
        %v402 = vsel %vm367, %v269, 0
        %v405 = vsel %vm367, %v270, 0
        %vm407 = vcmask 1041408
        %v409 = vsel %vm407, %v351, 0
        %v412 = vsel %vm407, %v352, 0
        %v415 = vsel %vm407, %v353, 0
        %v418 = vsel %vm407, %v354, 0
        %v421 = vsel %vm407, %v355, 0
        %v424 = vsel %vm407, %v356, 0
        %v427 = vsel %vm407, %v357, 0
        %v430 = vsel %vm407, %v358, 0
        %v433 = vsel %vm407, %v359, 0
        %v436 = vsel %vm407, %v360, 0
        %v439 = vsel %vm407, %v361, 0
        %v442 = vsel %vm407, %v362, 0
        %v445 = vsel %vm407, %v363, 0
        %v448 = vsel %vm407, %v364, 0
        %v451 = vsel %vm407, %v365, 0
        %v454 = vsel %vm407, %v366, 0
        %456 = vmatprep.subr.mxu0 %v272
        %457 = vmatpush1.msra.mxu0 %v271
        %458 = vmatprep.subr.mxu0 %v288
        %459 = vmatpush1.msra.mxu0 %v287
        %460 = vmatprep.subr.mxu0 %v304
        %461 = vmatpush1.msra.mxu0 %v303
        %462 = vmatprep.subr.mxu0 %v320
        %463 = vmatpush1.msra.mxu0 %v319
        %464 = vmatprep.subr.mxu0 %v336
        %465 = vmatpush1.msra.mxu0 %v335
        %466 = vmatprep.subr.mxu0 %v412
        %467 = vmatpush1.msra.mxu0 %v409
        %468 = vmatprep.subr.mxu0 0.0
        %469 = vmatpush1.msra.mxu0 0.0
        %470 = vmatprep.subr.mxu0 0.0
        %471 = vmatpush1.msra.mxu0 0.0
        %472 = vmatprep.subr.mxu0 0.0
        %473 = vmatpush1.msra.mxu0 0.0
        %474 = vmatprep.subr.mxu0 0.0
        %475 = vmatpush1.msra.mxu0 0.0
        %476 = vmatprep.subr.mxu0 0.0
        %477 = vmatpush1.msra.mxu0 0.0
        %478 = vmatprep.subr.mxu0 0.0
        %479 = vmatpush1.msra.mxu0 0.0
        %480 = vmatprep.subr.mxu0 0.0
        %481 = vmatpush1.msra.mxu0 0.0
        %482 = vmatprep.subr.mxu0 0.0
        %483 = vmatpush1.msra.mxu0 0.0
        %484 = vmatprep.subr.mxu0 0.0
        %485 = vmatpush1.msra.mxu0 0.0
        %486 = vmatprep.subr.mxu0 0.0
        %487 = vmatpush1.msra.mxu0 0.0
        %488 = vmatprep.subr.mxu0 0.0
        %489 = vmatpush1.msra.mxu0 0.0
        %490 = vmatprep.subr.mxu0 0.0
        %491 = vmatpush1.msra.mxu0 0.0
        %492 = vmatprep.subr.mxu0 0.0
        %493 = vmatpush1.msra.mxu0 0.0
        %494 = vmatprep.subr.mxu0 0.0
        %495 = vmatpush1.msra.mxu0 0.0
        %496 = vmatprep.subr.mxu0 0.0
        %497 = vmatpush1.msra.mxu0 0.0
        %498 = vmatprep.subr.mxu0 0.0
        %499 = vmatpush1.msra.mxu0 0.0
        %500 = vmatprep.subr.mxu0 0.0
        %501 = vmatpush1.msra.mxu0 0.0
        %502 = vmatprep.subr.mxu0 0.0
        %503 = vmatpush1.msra.mxu0 0.0
        %504 = vmatprep.subr.mxu0 0.0
        %505 = vmatpush1.msra.mxu0 0.0
        %506 = vmatprep.subr.mxu0 0.0
        %507 = vmatpush1.msra.mxu0 0.0
        %508 = vmatprep.subr.mxu0 0.0
        %509 = vmatpush1.msra.mxu0 0.0
        %510 = vmatprep.subr.mxu0 0.0
        %511 = vmatpush1.msra.mxu0 0.0
        %512 = vmatprep.subr.mxu0 0.0
        %513 = vmatpush1.msra.mxu0 0.0
        %514 = vmatprep.subr.mxu0 0.0
        %515 = vmatpush1.msra.mxu0 0.0
        %516 = vmatprep.subr.mxu0 0.0
        %517 = vmatpush1.msra.mxu0 0.0
        %518 = vmatprep.subr.mxu0 0.0
        %519 = vmatpush1.msra.mxu0 0.0
        %520 = vmatprep.mubr.f32.mxu0 0.0
        %521 = vmatmul.mubr.f32.gmra.mrb[0].mxu0 %v369
        %v522 = vpop.f32.mrb[0].mxu0
        %v523 = vadd.f32 0.0, %v522
        %v524 = vpop.f32.mrb[0].mxu0
        %v525 = vadd.f32 0.0, %v524
        %526 = vmatprep.mubr.f32.mxu0 0.0
        %527 = vmatmul.mubr.f32.gmra.mrb[0].mxu0 %v372
        %v528 = vpop.f32.mrb[0].mxu0
        %v529 = vadd.f32 0.0, %v528
        %v530 = vpop.f32.mrb[0].mxu0
        %v531 = vadd.f32 0.0, %v530
        %532 = vmatprep.mubr.f32.mxu0 0.0
        %533 = vmatmul.mubr.f32.gmra.mrb[0].mxu0 %v375
        %v534 = vpop.f32.mrb[0].mxu0
        %v535 = vadd.f32 0.0, %v534
        %v536 = vpop.f32.mrb[0].mxu0
        %v537 = vadd.f32 0.0, %v536
        %538 = vmatprep.mubr.f32.mxu0 0.0
        %539 = vmatmul.mubr.f32.gmra.mrb[0].mxu0 %v378
        %v540 = vpop.f32.mrb[0].mxu0
        %v541 = vadd.f32 0.0, %v540
        %v542 = vpop.f32.mrb[0].mxu0
        %v543 = vadd.f32 0.0, %v542
        %544 = vmatprep.mubr.f32.mxu0 0.0
        %545 = vmatmul.mubr.f32.gmra.mrb[0].mxu0 %v381
        %v546 = vpop.f32.mrb[0].mxu0
        %v547 = vadd.f32 0.0, %v546
        %v548 = vpop.f32.mrb[0].mxu0
        %v549 = vadd.f32 0.0, %v548
        %550 = vmatprep.mubr.f32.mxu0 0.0
        %551 = vmatmul.mubr.f32.gmra.mrb[0].mxu0 %v384
        %v552 = vpop.f32.mrb[0].mxu0
        %v553 = vadd.f32 0.0, %v552
        %v554 = vpop.f32.mrb[0].mxu0
        %v555 = vadd.f32 0.0, %v554
        %556 = vmatprep.mubr.f32.mxu0 0.0
        %557 = vmatmul.mubr.f32.gmra.mrb[0].mxu0 %v387
        %v558 = vpop.f32.mrb[0].mxu0
        %v559 = vadd.f32 0.0, %v558
        %v560 = vpop.f32.mrb[0].mxu0
        %v561 = vadd.f32 0.0, %v560
        %562 = vmatprep.mubr.f32.mxu0 0.0
        %563 = vmatmul.mubr.f32.gmra.mrb[0].mxu0 %v390
        %v564 = vpop.f32.mrb[0].mxu0
        %v565 = vadd.f32 0.0, %v564
        %v566 = vpop.f32.mrb[0].mxu0
        %v567 = vadd.f32 0.0, %v566
        %568 = vmatprep.mubr.f32.mxu0 0.0
        %569 = vmatmul.mubr.f32.gmra.mrb[0].mxu0 %v393
        %v570 = vpop.f32.mrb[0].mxu0
        %v571 = vadd.f32 0.0, %v570
        %v572 = vpop.f32.mrb[0].mxu0
        %v573 = vadd.f32 0.0, %v572
        %574 = vmatprep.mubr.f32.mxu0 0.0
        %575 = vmatmul.mubr.f32.gmra.mrb[0].mxu0 %v396
        %v576 = vpop.f32.mrb[0].mxu0
        %v577 = vadd.f32 0.0, %v576
        %v578 = vpop.f32.mrb[0].mxu0
        %v579 = vadd.f32 0.0, %v578
        %580 = vmatprep.mubr.f32.mxu0 0.0
        %581 = vmatmul.mubr.f32.gmra.mrb[0].mxu0 %v399
        %v582 = vpop.f32.mrb[0].mxu0
        %v583 = vadd.f32 0.0, %v582
        %v584 = vpop.f32.mrb[0].mxu0
        %v585 = vadd.f32 0.0, %v584
        %586 = vmatprep.mubr.f32.mxu0 0.0
        %587 = vmatmul.mubr.f32.gmra.mrb[0].mxu0 %v402
        %v588 = vpop.f32.mrb[0].mxu0
        %v589 = vadd.f32 0.0, %v588
        %v590 = vpop.f32.mrb[0].mxu0
        %v591 = vadd.f32 0.0, %v590
        %592 = vmatprep.mubr.f32.mxu0 0.0
        %593 = vmatmul.mubr.f32.gmra.mrb[0].mxu0 %v405
        %v594 = vpop.f32.mrb[0].mxu0
        %v595 = vadd.f32 0.0, %v594
        %v596 = vpop.f32.mrb[0].mxu0
        %v597 = vadd.f32 0.0, %v596
        %598 = vdwg.mxu0
        %599 = vmatprep.subr.mxu0 %v274
        %600 = vmatpush1.msra.mxu0 %v273
        %601 = vmatprep.subr.mxu0 %v290
        %602 = vmatpush1.msra.mxu0 %v289
        %603 = vmatprep.subr.mxu0 %v306
        %604 = vmatpush1.msra.mxu0 %v305
        %605 = vmatprep.subr.mxu0 %v322
        %606 = vmatpush1.msra.mxu0 %v321
        %607 = vmatprep.subr.mxu0 %v338
        %608 = vmatpush1.msra.mxu0 %v337
        %609 = vmatprep.subr.mxu0 %v418
        %610 = vmatpush1.msra.mxu0 %v415
        %611 = vmatprep.subr.mxu0 0.0
        %612 = vmatpush1.msra.mxu0 0.0
        %613 = vmatprep.subr.mxu0 0.0
        %614 = vmatpush1.msra.mxu0 0.0
        %615 = vmatprep.subr.mxu0 0.0
        %616 = vmatpush1.msra.mxu0 0.0
        %617 = vmatprep.subr.mxu0 0.0
        %618 = vmatpush1.msra.mxu0 0.0
        %619 = vmatprep.subr.mxu0 0.0
        %620 = vmatpush1.msra.mxu0 0.0
        %621 = vmatprep.subr.mxu0 0.0
        %622 = vmatpush1.msra.mxu0 0.0
        %623 = vmatprep.subr.mxu0 0.0
        %624 = vmatpush1.msra.mxu0 0.0
        %625 = vmatprep.subr.mxu0 0.0
        %626 = vmatpush1.msra.mxu0 0.0
        %627 = vmatprep.subr.mxu0 0.0
        %628 = vmatpush1.msra.mxu0 0.0
        %629 = vmatprep.subr.mxu0 0.0
        %630 = vmatpush1.msra.mxu0 0.0
        %631 = vmatprep.subr.mxu0 0.0
        %632 = vmatpush1.msra.mxu0 0.0
        %633 = vmatprep.subr.mxu0 0.0
        %634 = vmatpush1.msra.mxu0 0.0
        %635 = vmatprep.subr.mxu0 0.0
        %636 = vmatpush1.msra.mxu0 0.0
        %637 = vmatprep.subr.mxu0 0.0
        %638 = vmatpush1.msra.mxu0 0.0
        %639 = vmatprep.subr.mxu0 0.0
        %640 = vmatpush1.msra.mxu0 0.0
        %641 = vmatprep.subr.mxu0 0.0
        %642 = vmatpush1.msra.mxu0 0.0
        %643 = vmatprep.subr.mxu0 0.0
        %644 = vmatpush1.msra.mxu0 0.0
        %645 = vmatprep.subr.mxu0 0.0
        %646 = vmatpush1.msra.mxu0 0.0
        %647 = vmatprep.subr.mxu0 0.0
        %648 = vmatpush1.msra.mxu0 0.0
        %649 = vmatprep.subr.mxu0 0.0
        %650 = vmatpush1.msra.mxu0 0.0
        %651 = vmatprep.subr.mxu0 0.0
        %652 = vmatpush1.msra.mxu0 0.0
        %653 = vmatprep.subr.mxu0 0.0
        %654 = vmatpush1.msra.mxu0 0.0
        %655 = vmatprep.subr.mxu0 0.0
        %656 = vmatpush1.msra.mxu0 0.0
        %657 = vmatprep.subr.mxu0 0.0
        %658 = vmatpush1.msra.mxu0 0.0
        %659 = vmatprep.subr.mxu0 0.0
        %660 = vmatpush1.msra.mxu0 0.0
        %661 = vmatprep.subr.mxu0 0.0
        %662 = vmatpush1.msra.mxu0 0.0
        %663 = vmatprep.mubr.f32.mxu0 0.0
        %664 = vmatmul.mubr.f32.gmra.mrb[0].mxu0 %v369
        %v665 = vpop.f32.mrb[0].mxu0
        %v666 = vadd.f32 0.0, %v665
        %v667 = vpop.f32.mrb[0].mxu0
        %v668 = vadd.f32 0.0, %v667
        %669 = vmatprep.mubr.f32.mxu0 0.0
        %670 = vmatmul.mubr.f32.gmra.mrb[0].mxu0 %v372
        %v671 = vpop.f32.mrb[0].mxu0
        %v672 = vadd.f32 0.0, %v671
        %v673 = vpop.f32.mrb[0].mxu0
        %v674 = vadd.f32 0.0, %v673
        %675 = vmatprep.mubr.f32.mxu0 0.0
        %676 = vmatmul.mubr.f32.gmra.mrb[0].mxu0 %v375
        %v677 = vpop.f32.mrb[0].mxu0
        %v678 = vadd.f32 0.0, %v677
        %v679 = vpop.f32.mrb[0].mxu0
        %v680 = vadd.f32 0.0, %v679
        %681 = vmatprep.mubr.f32.mxu0 0.0
        %682 = vmatmul.mubr.f32.gmra.mrb[0].mxu0 %v378
        %v683 = vpop.f32.mrb[0].mxu0
        %v684 = vadd.f32 0.0, %v683
        %v685 = vpop.f32.mrb[0].mxu0
        %v686 = vadd.f32 0.0, %v685
        %687 = vmatprep.mubr.f32.mxu0 0.0
        %688 = vmatmul.mubr.f32.gmra.mrb[0].mxu0 %v381
        %v689 = vpop.f32.mrb[0].mxu0
        %v690 = vadd.f32 0.0, %v689
        %v691 = vpop.f32.mrb[0].mxu0
        %v692 = vadd.f32 0.0, %v691
        %693 = vmatprep.mubr.f32.mxu0 0.0
        %694 = vmatmul.mubr.f32.gmra.mrb[0].mxu0 %v384
        %v695 = vpop.f32.mrb[0].mxu0
        %v696 = vadd.f32 0.0, %v695
        %v697 = vpop.f32.mrb[0].mxu0
        %v698 = vadd.f32 0.0, %v697
        %699 = vmatprep.mubr.f32.mxu0 0.0
        %700 = vmatmul.mubr.f32.gmra.mrb[0].mxu0 %v387
        %v701 = vpop.f32.mrb[0].mxu0
        %v702 = vadd.f32 0.0, %v701
        %v703 = vpop.f32.mrb[0].mxu0
        %v704 = vadd.f32 0.0, %v703
        %705 = vmatprep.mubr.f32.mxu0 0.0
        %706 = vmatmul.mubr.f32.gmra.mrb[0].mxu0 %v390
        %v707 = vpop.f32.mrb[0].mxu0
        %v708 = vadd.f32 0.0, %v707
        %v709 = vpop.f32.mrb[0].mxu0
        %v710 = vadd.f32 0.0, %v709
        %711 = vmatprep.mubr.f32.mxu0 0.0
        %712 = vmatmul.mubr.f32.gmra.mrb[0].mxu0 %v393
        %v713 = vpop.f32.mrb[0].mxu0
        %v714 = vadd.f32 0.0, %v713
        %v715 = vpop.f32.mrb[0].mxu0
        %v716 = vadd.f32 0.0, %v715
        %717 = vmatprep.mubr.f32.mxu0 0.0
        %718 = vmatmul.mubr.f32.gmra.mrb[0].mxu0 %v396
        %v719 = vpop.f32.mrb[0].mxu0
        %v720 = vadd.f32 0.0, %v719
        %v721 = vpop.f32.mrb[0].mxu0
        %v722 = vadd.f32 0.0, %v721
        %723 = vmatprep.mubr.f32.mxu0 0.0
        %724 = vmatmul.mubr.f32.gmra.mrb[0].mxu0 %v399
        %v725 = vpop.f32.mrb[0].mxu0
        %v726 = vadd.f32 0.0, %v725
        %v727 = vpop.f32.mrb[0].mxu0
        %v728 = vadd.f32 0.0, %v727
        %729 = vmatprep.mubr.f32.mxu0 0.0
        %730 = vmatmul.mubr.f32.gmra.mrb[0].mxu0 %v402
        %v731 = vpop.f32.mrb[0].mxu0
        %v732 = vadd.f32 0.0, %v731
        %v733 = vpop.f32.mrb[0].mxu0
        %v734 = vadd.f32 0.0, %v733
        %735 = vmatprep.mubr.f32.mxu0 0.0
        %736 = vmatmul.mubr.f32.gmra.mrb[0].mxu0 %v405
        %v737 = vpop.f32.mrb[0].mxu0
        %v738 = vadd.f32 0.0, %v737
        %v739 = vpop.f32.mrb[0].mxu0
        %v740 = vadd.f32 0.0, %v739
        %741 = vdwg.mxu0
        %742 = vmatprep.subr.mxu0 %v276
        %743 = vmatpush1.msra.mxu0 %v275
        %744 = vmatprep.subr.mxu0 %v292
        %745 = vmatpush1.msra.mxu0 %v291
        %746 = vmatprep.subr.mxu0 %v308
        %747 = vmatpush1.msra.mxu0 %v307
        %748 = vmatprep.subr.mxu0 %v324
        %749 = vmatpush1.msra.mxu0 %v323
        %750 = vmatprep.subr.mxu0 %v340
        %751 = vmatpush1.msra.mxu0 %v339
        %752 = vmatprep.subr.mxu0 %v424
        %753 = vmatpush1.msra.mxu0 %v421
        %754 = vmatprep.subr.mxu0 0.0
        %755 = vmatpush1.msra.mxu0 0.0
        %756 = vmatprep.subr.mxu0 0.0
        %757 = vmatpush1.msra.mxu0 0.0
        %758 = vmatprep.subr.mxu0 0.0
        %759 = vmatpush1.msra.mxu0 0.0
        %760 = vmatprep.subr.mxu0 0.0
        %761 = vmatpush1.msra.mxu0 0.0
        %762 = vmatprep.subr.mxu0 0.0
        %763 = vmatpush1.msra.mxu0 0.0
        %764 = vmatprep.subr.mxu0 0.0
        %765 = vmatpush1.msra.mxu0 0.0
        %766 = vmatprep.subr.mxu0 0.0
        %767 = vmatpush1.msra.mxu0 0.0
        %768 = vmatprep.subr.mxu0 0.0
        %769 = vmatpush1.msra.mxu0 0.0
        %770 = vmatprep.subr.mxu0 0.0
        %771 = vmatpush1.msra.mxu0 0.0
        %772 = vmatprep.subr.mxu0 0.0
        %773 = vmatpush1.msra.mxu0 0.0
        %774 = vmatprep.subr.mxu0 0.0
        %775 = vmatpush1.msra.mxu0 0.0
        %776 = vmatprep.subr.mxu0 0.0
        %777 = vmatpush1.msra.mxu0 0.0
        %778 = vmatprep.subr.mxu0 0.0
        %779 = vmatpush1.msra.mxu0 0.0
        %780 = vmatprep.subr.mxu0 0.0
        %781 = vmatpush1.msra.mxu0 0.0
        %782 = vmatprep.subr.mxu0 0.0
        %783 = vmatpush1.msra.mxu0 0.0
        %784 = vmatprep.subr.mxu0 0.0
        %785 = vmatpush1.msra.mxu0 0.0
        %786 = vmatprep.subr.mxu0 0.0
        %787 = vmatpush1.msra.mxu0 0.0
        %788 = vmatprep.subr.mxu0 0.0
        %789 = vmatpush1.msra.mxu0 0.0
        %790 = vmatprep.subr.mxu0 0.0
        %791 = vmatpush1.msra.mxu0 0.0
        %792 = vmatprep.subr.mxu0 0.0
        %793 = vmatpush1.msra.mxu0 0.0
        %794 = vmatprep.subr.mxu0 0.0
        %795 = vmatpush1.msra.mxu0 0.0
        %796 = vmatprep.subr.mxu0 0.0
        %797 = vmatpush1.msra.mxu0 0.0
        %798 = vmatprep.subr.mxu0 0.0
        %799 = vmatpush1.msra.mxu0 0.0
        %800 = vmatprep.subr.mxu0 0.0
        %801 = vmatpush1.msra.mxu0 0.0
        %802 = vmatprep.subr.mxu0 0.0
        %803 = vmatpush1.msra.mxu0 0.0
        %804 = vmatprep.subr.mxu0 0.0
        %805 = vmatpush1.msra.mxu0 0.0
        %806 = vmatprep.mubr.f32.mxu0 0.0
        %807 = vmatmul.mubr.f32.gmra.mrb[0].mxu0 %v369
        %v808 = vpop.f32.mrb[0].mxu0
        %v809 = vadd.f32 0.0, %v808
        %v810 = vpop.f32.mrb[0].mxu0
        %v811 = vadd.f32 0.0, %v810
        %812 = vmatprep.mubr.f32.mxu0 0.0
        %813 = vmatmul.mubr.f32.gmra.mrb[0].mxu0 %v372
        %v814 = vpop.f32.mrb[0].mxu0
        %v815 = vadd.f32 0.0, %v814
        %v816 = vpop.f32.mrb[0].mxu0
        %v817 = vadd.f32 0.0, %v816
        %818 = vmatprep.mubr.f32.mxu0 0.0
        %819 = vmatmul.mubr.f32.gmra.mrb[0].mxu0 %v375
        %v820 = vpop.f32.mrb[0].mxu0
        %v821 = vadd.f32 0.0, %v820
        %v822 = vpop.f32.mrb[0].mxu0
        %v823 = vadd.f32 0.0, %v822
        %824 = vmatprep.mubr.f32.mxu0 0.0
        %825 = vmatmul.mubr.f32.gmra.mrb[0].mxu0 %v378
        %v826 = vpop.f32.mrb[0].mxu0
        %v827 = vadd.f32 0.0, %v826
        %v828 = vpop.f32.mrb[0].mxu0
        %v829 = vadd.f32 0.0, %v828
        %830 = vmatprep.mubr.f32.mxu0 0.0
        %831 = vmatmul.mubr.f32.gmra.mrb[0].mxu0 %v381
        %v832 = vpop.f32.mrb[0].mxu0
        %v833 = vadd.f32 0.0, %v832
        %v834 = vpop.f32.mrb[0].mxu0
        %v835 = vadd.f32 0.0, %v834
        %836 = vmatprep.mubr.f32.mxu0 0.0
        %837 = vmatmul.mubr.f32.gmra.mrb[0].mxu0 %v384
        %v838 = vpop.f32.mrb[0].mxu0
        %v839 = vadd.f32 0.0, %v838
        %v840 = vpop.f32.mrb[0].mxu0
        %v841 = vadd.f32 0.0, %v840
        %842 = vmatprep.mubr.f32.mxu0 0.0
        %843 = vmatmul.mubr.f32.gmra.mrb[0].mxu0 %v387
        %v844 = vpop.f32.mrb[0].mxu0
        %v845 = vadd.f32 0.0, %v844
        %v846 = vpop.f32.mrb[0].mxu0
        %v847 = vadd.f32 0.0, %v846
        %848 = vmatprep.mubr.f32.mxu0 0.0
        %849 = vmatmul.mubr.f32.gmra.mrb[0].mxu0 %v390
        %v850 = vpop.f32.mrb[0].mxu0
        %v851 = vadd.f32 0.0, %v850
        %v852 = vpop.f32.mrb[0].mxu0
        %v853 = vadd.f32 0.0, %v852
        %854 = vmatprep.mubr.f32.mxu0 0.0
        %855 = vmatmul.mubr.f32.gmra.mrb[0].mxu0 %v393
        %v856 = vpop.f32.mrb[0].mxu0
        %v857 = vadd.f32 0.0, %v856
        %v858 = vpop.f32.mrb[0].mxu0
        %v859 = vadd.f32 0.0, %v858
        %860 = vmatprep.mubr.f32.mxu0 0.0
        %861 = vmatmul.mubr.f32.gmra.mrb[0].mxu0 %v396
        %v862 = vpop.f32.mrb[0].mxu0
        %v863 = vadd.f32 0.0, %v862
        %v864 = vpop.f32.mrb[0].mxu0
        %v865 = vadd.f32 0.0, %v864
        %866 = vmatprep.mubr.f32.mxu0 0.0
        %867 = vmatmul.mubr.f32.gmra.mrb[0].mxu0 %v399
        %v868 = vpop.f32.mrb[0].mxu0
        %v869 = vadd.f32 0.0, %v868
        %v870 = vpop.f32.mrb[0].mxu0
        %v871 = vadd.f32 0.0, %v870
        %872 = vmatprep.mubr.f32.mxu0 0.0
        %873 = vmatmul.mubr.f32.gmra.mrb[0].mxu0 %v402
        %v874 = vpop.f32.mrb[0].mxu0
        %v875 = vadd.f32 0.0, %v874
        %v876 = vpop.f32.mrb[0].mxu0
        %v877 = vadd.f32 0.0, %v876
        %878 = vmatprep.mubr.f32.mxu0 0.0
        %879 = vmatmul.mubr.f32.gmra.mrb[0].mxu0 %v405
        %v880 = vpop.f32.mrb[0].mxu0
        %v881 = vadd.f32 0.0, %v880
        %v882 = vpop.f32.mrb[0].mxu0
        %v883 = vadd.f32 0.0, %v882
        %884 = vdwg.mxu0
        %885 = vmatprep.subr.mxu0 %v278
        %886 = vmatpush1.msra.mxu0 %v277
        %887 = vmatprep.subr.mxu0 %v294
        %888 = vmatpush1.msra.mxu0 %v293
        %889 = vmatprep.subr.mxu0 %v310
        %890 = vmatpush1.msra.mxu0 %v309
        %891 = vmatprep.subr.mxu0 %v326
        %892 = vmatpush1.msra.mxu0 %v325
        %893 = vmatprep.subr.mxu0 %v342
        %894 = vmatpush1.msra.mxu0 %v341
        %895 = vmatprep.subr.mxu0 %v430
        %896 = vmatpush1.msra.mxu0 %v427
        %897 = vmatprep.subr.mxu0 0.0
        %898 = vmatpush1.msra.mxu0 0.0
        %899 = vmatprep.subr.mxu0 0.0
        %900 = vmatpush1.msra.mxu0 0.0
        %901 = vmatprep.subr.mxu0 0.0
        %902 = vmatpush1.msra.mxu0 0.0
        %903 = vmatprep.subr.mxu0 0.0
        %904 = vmatpush1.msra.mxu0 0.0
        %905 = vmatprep.subr.mxu0 0.0
        %906 = vmatpush1.msra.mxu0 0.0
        %907 = vmatprep.subr.mxu0 0.0
        %908 = vmatpush1.msra.mxu0 0.0
        %909 = vmatprep.subr.mxu0 0.0
        %910 = vmatpush1.msra.mxu0 0.0
        %911 = vmatprep.subr.mxu0 0.0
        %912 = vmatpush1.msra.mxu0 0.0
        %913 = vmatprep.subr.mxu0 0.0
        %914 = vmatpush1.msra.mxu0 0.0
        %915 = vmatprep.subr.mxu0 0.0
        %916 = vmatpush1.msra.mxu0 0.0
        %917 = vmatprep.subr.mxu0 0.0
        %918 = vmatpush1.msra.mxu0 0.0
        %919 = vmatprep.subr.mxu0 0.0
        %920 = vmatpush1.msra.mxu0 0.0
        %921 = vmatprep.subr.mxu0 0.0
        %922 = vmatpush1.msra.mxu0 0.0
        %923 = vmatprep.subr.mxu0 0.0
        %924 = vmatpush1.msra.mxu0 0.0
        %925 = vmatprep.subr.mxu0 0.0
        %926 = vmatpush1.msra.mxu0 0.0
        %927 = vmatprep.subr.mxu0 0.0
        %928 = vmatpush1.msra.mxu0 0.0
        %929 = vmatprep.subr.mxu0 0.0
        %930 = vmatpush1.msra.mxu0 0.0
        %931 = vmatprep.subr.mxu0 0.0
        %932 = vmatpush1.msra.mxu0 0.0
        %933 = vmatprep.subr.mxu0 0.0
        %934 = vmatpush1.msra.mxu0 0.0
        %935 = vmatprep.subr.mxu0 0.0
        %936 = vmatpush1.msra.mxu0 0.0
        %937 = vmatprep.subr.mxu0 0.0
        %938 = vmatpush1.msra.mxu0 0.0
        %939 = vmatprep.subr.mxu0 0.0
        %940 = vmatpush1.msra.mxu0 0.0
        %941 = vmatprep.subr.mxu0 0.0
        %942 = vmatpush1.msra.mxu0 0.0
        %943 = vmatprep.subr.mxu0 0.0
        %944 = vmatpush1.msra.mxu0 0.0
        %945 = vmatprep.subr.mxu0 0.0
        %946 = vmatpush1.msra.mxu0 0.0
        %947 = vmatprep.subr.mxu0 0.0
        %948 = vmatpush1.msra.mxu0 0.0
        %949 = vmatprep.mubr.f32.mxu0 0.0
        %950 = vmatmul.mubr.f32.gmra.mrb[0].mxu0 %v369
        %v951 = vpop.f32.mrb[0].mxu0
        %v952 = vadd.f32 0.0, %v951
        %v953 = vpop.f32.mrb[0].mxu0
        %v954 = vadd.f32 0.0, %v953
        %955 = vmatprep.mubr.f32.mxu0 0.0
        %956 = vmatmul.mubr.f32.gmra.mrb[0].mxu0 %v372
        %v957 = vpop.f32.mrb[0].mxu0
        %v958 = vadd.f32 0.0, %v957
        %v959 = vpop.f32.mrb[0].mxu0
        %v960 = vadd.f32 0.0, %v959
        %961 = vmatprep.mubr.f32.mxu0 0.0
        %962 = vmatmul.mubr.f32.gmra.mrb[0].mxu0 %v375
        %v963 = vpop.f32.mrb[0].mxu0
        %v964 = vadd.f32 0.0, %v963
        %v965 = vpop.f32.mrb[0].mxu0
        %v966 = vadd.f32 0.0, %v965
        %967 = vmatprep.mubr.f32.mxu0 0.0
        %968 = vmatmul.mubr.f32.gmra.mrb[0].mxu0 %v378
        %v969 = vpop.f32.mrb[0].mxu0
        %v970 = vadd.f32 0.0, %v969
        %v971 = vpop.f32.mrb[0].mxu0
        %v972 = vadd.f32 0.0, %v971
        %973 = vmatprep.mubr.f32.mxu0 0.0
        %974 = vmatmul.mubr.f32.gmra.mrb[0].mxu0 %v381
        %v975 = vpop.f32.mrb[0].mxu0
        %v976 = vadd.f32 0.0, %v975
        %v977 = vpop.f32.mrb[0].mxu0
        %v978 = vadd.f32 0.0, %v977
        %979 = vmatprep.mubr.f32.mxu0 0.0
        %980 = vmatmul.mubr.f32.gmra.mrb[0].mxu0 %v384
        %v981 = vpop.f32.mrb[0].mxu0
        %v982 = vadd.f32 0.0, %v981
        %v983 = vpop.f32.mrb[0].mxu0
        %v984 = vadd.f32 0.0, %v983
        %985 = vmatprep.mubr.f32.mxu0 0.0
        %986 = vmatmul.mubr.f32.gmra.mrb[0].mxu0 %v387
        %v987 = vpop.f32.mrb[0].mxu0
        %v988 = vadd.f32 0.0, %v987
        %v989 = vpop.f32.mrb[0].mxu0
        %v990 = vadd.f32 0.0, %v989
        %991 = vmatprep.mubr.f32.mxu0 0.0
        %992 = vmatmul.mubr.f32.gmra.mrb[0].mxu0 %v390
        %v993 = vpop.f32.mrb[0].mxu0
        %v994 = vadd.f32 0.0, %v993
        %v995 = vpop.f32.mrb[0].mxu0
        %v996 = vadd.f32 0.0, %v995
        %997 = vmatprep.mubr.f32.mxu0 0.0
        %998 = vmatmul.mubr.f32.gmra.mrb[0].mxu0 %v393
        %v999 = vpop.f32.mrb[0].mxu0
        %v1000 = vadd.f32 0.0, %v999
        %v1001 = vpop.f32.mrb[0].mxu0
        %v1002 = vadd.f32 0.0, %v1001
        %1003 = vmatprep.mubr.f32.mxu0 0.0
        %1004 = vmatmul.mubr.f32.gmra.mrb[0].mxu0 %v396
        %v1005 = vpop.f32.mrb[0].mxu0
        %v1006 = vadd.f32 0.0, %v1005
        %v1007 = vpop.f32.mrb[0].mxu0
        %v1008 = vadd.f32 0.0, %v1007
        %1009 = vmatprep.mubr.f32.mxu0 0.0
        %1010 = vmatmul.mubr.f32.gmra.mrb[0].mxu0 %v399
        %v1011 = vpop.f32.mrb[0].mxu0
        %v1012 = vadd.f32 0.0, %v1011
        %v1013 = vpop.f32.mrb[0].mxu0
        %v1014 = vadd.f32 0.0, %v1013
        %1015 = vmatprep.mubr.f32.mxu0 0.0
        %1016 = vmatmul.mubr.f32.gmra.mrb[0].mxu0 %v402
        %v1017 = vpop.f32.mrb[0].mxu0
        %v1018 = vadd.f32 0.0, %v1017
        %v1019 = vpop.f32.mrb[0].mxu0
        %v1020 = vadd.f32 0.0, %v1019
        %1021 = vmatprep.mubr.f32.mxu0 0.0
        %1022 = vmatmul.mubr.f32.gmra.mrb[0].mxu0 %v405
        %v1023 = vpop.f32.mrb[0].mxu0
        %v1024 = vadd.f32 0.0, %v1023
        %v1025 = vpop.f32.mrb[0].mxu0
        %v1026 = vadd.f32 0.0, %v1025
        %1027 = vdwg.mxu0
        %1028 = vmatprep.subr.mxu0 %v280
        %1029 = vmatpush1.msra.mxu0 %v279
        %1030 = vmatprep.subr.mxu0 %v296
        %1031 = vmatpush1.msra.mxu0 %v295
        %1032 = vmatprep.subr.mxu0 %v312
        %1033 = vmatpush1.msra.mxu0 %v311
        %1034 = vmatprep.subr.mxu0 %v328
        %1035 = vmatpush1.msra.mxu0 %v327
        %1036 = vmatprep.subr.mxu0 %v344
        %1037 = vmatpush1.msra.mxu0 %v343
        %1038 = vmatprep.subr.mxu0 %v436
        %1039 = vmatpush1.msra.mxu0 %v433
        %1040 = vmatprep.subr.mxu0 0.0
        %1041 = vmatpush1.msra.mxu0 0.0
        %1042 = vmatprep.subr.mxu0 0.0
        %1043 = vmatpush1.msra.mxu0 0.0
        %1044 = vmatprep.subr.mxu0 0.0
        %1045 = vmatpush1.msra.mxu0 0.0
        %1046 = vmatprep.subr.mxu0 0.0
        %1047 = vmatpush1.msra.mxu0 0.0
        %1048 = vmatprep.subr.mxu0 0.0
        %1049 = vmatpush1.msra.mxu0 0.0
        %1050 = vmatprep.subr.mxu0 0.0
        %1051 = vmatpush1.msra.mxu0 0.0
        %1052 = vmatprep.subr.mxu0 0.0
        %1053 = vmatpush1.msra.mxu0 0.0
        %1054 = vmatprep.subr.mxu0 0.0
        %1055 = vmatpush1.msra.mxu0 0.0
        %1056 = vmatprep.subr.mxu0 0.0
        %1057 = vmatpush1.msra.mxu0 0.0
        %1058 = vmatprep.subr.mxu0 0.0
        %1059 = vmatpush1.msra.mxu0 0.0
        %1060 = vmatprep.subr.mxu0 0.0
        %1061 = vmatpush1.msra.mxu0 0.0
        %1062 = vmatprep.subr.mxu0 0.0
        %1063 = vmatpush1.msra.mxu0 0.0
        %1064 = vmatprep.subr.mxu0 0.0
        %1065 = vmatpush1.msra.mxu0 0.0
        %1066 = vmatprep.subr.mxu0 0.0
        %1067 = vmatpush1.msra.mxu0 0.0
        %1068 = vmatprep.subr.mxu0 0.0
        %1069 = vmatpush1.msra.mxu0 0.0
        %1070 = vmatprep.subr.mxu0 0.0
        %1071 = vmatpush1.msra.mxu0 0.0
        %1072 = vmatprep.subr.mxu0 0.0
        %1073 = vmatpush1.msra.mxu0 0.0
        %1074 = vmatprep.subr.mxu0 0.0
        %1075 = vmatpush1.msra.mxu0 0.0
        %1076 = vmatprep.subr.mxu0 0.0
        %1077 = vmatpush1.msra.mxu0 0.0
        %1078 = vmatprep.subr.mxu0 0.0
        %1079 = vmatpush1.msra.mxu0 0.0
        %1080 = vmatprep.subr.mxu0 0.0
        %1081 = vmatpush1.msra.mxu0 0.0
        %1082 = vmatprep.subr.mxu0 0.0
        %1083 = vmatpush1.msra.mxu0 0.0
        %1084 = vmatprep.subr.mxu0 0.0
        %1085 = vmatpush1.msra.mxu0 0.0
        %1086 = vmatprep.subr.mxu0 0.0
        %1087 = vmatpush1.msra.mxu0 0.0
        %1088 = vmatprep.subr.mxu0 0.0
        %1089 = vmatpush1.msra.mxu0 0.0
        %1090 = vmatprep.subr.mxu0 0.0
        %1091 = vmatpush1.msra.mxu0 0.0
        %1092 = vmatprep.mubr.f32.mxu0 0.0
        %1093 = vmatmul.mubr.f32.gmra.mrb[0].mxu0 %v369
        %v1094 = vpop.f32.mrb[0].mxu0
        %v1095 = vadd.f32 0.0, %v1094
        %v1096 = vpop.f32.mrb[0].mxu0
        %v1097 = vadd.f32 0.0, %v1096
        %1098 = vmatprep.mubr.f32.mxu0 0.0
        %1099 = vmatmul.mubr.f32.gmra.mrb[0].mxu0 %v372
        %v1100 = vpop.f32.mrb[0].mxu0
        %v1101 = vadd.f32 0.0, %v1100
        %v1102 = vpop.f32.mrb[0].mxu0
        %v1103 = vadd.f32 0.0, %v1102
        %1104 = vmatprep.mubr.f32.mxu0 0.0
        %1105 = vmatmul.mubr.f32.gmra.mrb[0].mxu0 %v375
        %v1106 = vpop.f32.mrb[0].mxu0
        %v1107 = vadd.f32 0.0, %v1106
        %v1108 = vpop.f32.mrb[0].mxu0
        %v1109 = vadd.f32 0.0, %v1108
        %1110 = vmatprep.mubr.f32.mxu0 0.0
        %1111 = vmatmul.mubr.f32.gmra.mrb[0].mxu0 %v378
        %v1112 = vpop.f32.mrb[0].mxu0
        %v1113 = vadd.f32 0.0, %v1112
        %v1114 = vpop.f32.mrb[0].mxu0
        %v1115 = vadd.f32 0.0, %v1114
        %1116 = vmatprep.mubr.f32.mxu0 0.0
        %1117 = vmatmul.mubr.f32.gmra.mrb[0].mxu0 %v381
        %v1118 = vpop.f32.mrb[0].mxu0
        %v1119 = vadd.f32 0.0, %v1118
        %v1120 = vpop.f32.mrb[0].mxu0
        %v1121 = vadd.f32 0.0, %v1120
        %1122 = vmatprep.mubr.f32.mxu0 0.0
        %1123 = vmatmul.mubr.f32.gmra.mrb[0].mxu0 %v384
        %v1124 = vpop.f32.mrb[0].mxu0
        %v1125 = vadd.f32 0.0, %v1124
        %v1126 = vpop.f32.mrb[0].mxu0
        %v1127 = vadd.f32 0.0, %v1126
        %1128 = vmatprep.mubr.f32.mxu0 0.0
        %1129 = vmatmul.mubr.f32.gmra.mrb[0].mxu0 %v387
        %v1130 = vpop.f32.mrb[0].mxu0
        %v1131 = vadd.f32 0.0, %v1130
        %v1132 = vpop.f32.mrb[0].mxu0
        %v1133 = vadd.f32 0.0, %v1132
        %1134 = vmatprep.mubr.f32.mxu0 0.0
        %1135 = vmatmul.mubr.f32.gmra.mrb[0].mxu0 %v390
        %v1136 = vpop.f32.mrb[0].mxu0
        %v1137 = vadd.f32 0.0, %v1136
        %v1138 = vpop.f32.mrb[0].mxu0
        %v1139 = vadd.f32 0.0, %v1138
        %1140 = vmatprep.mubr.f32.mxu0 0.0
        %1141 = vmatmul.mubr.f32.gmra.mrb[0].mxu0 %v393
        %v1142 = vpop.f32.mrb[0].mxu0
        %v1143 = vadd.f32 0.0, %v1142
        %v1144 = vpop.f32.mrb[0].mxu0
        %v1145 = vadd.f32 0.0, %v1144
        %1146 = vmatprep.mubr.f32.mxu0 0.0
        %1147 = vmatmul.mubr.f32.gmra.mrb[0].mxu0 %v396
        %v1148 = vpop.f32.mrb[0].mxu0
        %v1149 = vadd.f32 0.0, %v1148
        %v1150 = vpop.f32.mrb[0].mxu0
        %v1151 = vadd.f32 0.0, %v1150
        %1152 = vmatprep.mubr.f32.mxu0 0.0
        %1153 = vmatmul.mubr.f32.gmra.mrb[0].mxu0 %v399
        %v1154 = vpop.f32.mrb[0].mxu0
        %v1155 = vadd.f32 0.0, %v1154
        %v1156 = vpop.f32.mrb[0].mxu0
        %v1157 = vadd.f32 0.0, %v1156
        %1158 = vmatprep.mubr.f32.mxu0 0.0
        %1159 = vmatmul.mubr.f32.gmra.mrb[0].mxu0 %v402
        %v1160 = vpop.f32.mrb[0].mxu0
        %v1161 = vadd.f32 0.0, %v1160
        %v1162 = vpop.f32.mrb[0].mxu0
        %v1163 = vadd.f32 0.0, %v1162
        %1164 = vmatprep.mubr.f32.mxu0 0.0
        %1165 = vmatmul.mubr.f32.gmra.mrb[0].mxu0 %v405
        %v1166 = vpop.f32.mrb[0].mxu0
        %v1167 = vadd.f32 0.0, %v1166
        %v1168 = vpop.f32.mrb[0].mxu0
        %v1169 = vadd.f32 0.0, %v1168
        %1170 = vdwg.mxu0
        %1171 = vmatprep.subr.mxu0 %v282
        %1172 = vmatpush1.msra.mxu0 %v281
        %1173 = vmatprep.subr.mxu0 %v298
        %1174 = vmatpush1.msra.mxu0 %v297
        %1175 = vmatprep.subr.mxu0 %v314
        %1176 = vmatpush1.msra.mxu0 %v313
        %1177 = vmatprep.subr.mxu0 %v330
        %1178 = vmatpush1.msra.mxu0 %v329
        %1179 = vmatprep.subr.mxu0 %v346
        %1180 = vmatpush1.msra.mxu0 %v345
        %1181 = vmatprep.subr.mxu0 %v442
        %1182 = vmatpush1.msra.mxu0 %v439
        %1183 = vmatprep.subr.mxu0 0.0
        %1184 = vmatpush1.msra.mxu0 0.0
        %1185 = vmatprep.subr.mxu0 0.0
        %1186 = vmatpush1.msra.mxu0 0.0
        %1187 = vmatprep.subr.mxu0 0.0
        %1188 = vmatpush1.msra.mxu0 0.0
        %1189 = vmatprep.subr.mxu0 0.0
        %1190 = vmatpush1.msra.mxu0 0.0
        %1191 = vmatprep.subr.mxu0 0.0
        %1192 = vmatpush1.msra.mxu0 0.0
        %1193 = vmatprep.subr.mxu0 0.0
        %1194 = vmatpush1.msra.mxu0 0.0
        %1195 = vmatprep.subr.mxu0 0.0
        %1196 = vmatpush1.msra.mxu0 0.0
        %1197 = vmatprep.subr.mxu0 0.0
        %1198 = vmatpush1.msra.mxu0 0.0
        %1199 = vmatprep.subr.mxu0 0.0
        %1200 = vmatpush1.msra.mxu0 0.0
        %1201 = vmatprep.subr.mxu0 0.0
        %1202 = vmatpush1.msra.mxu0 0.0
        %1203 = vmatprep.subr.mxu0 0.0
        %1204 = vmatpush1.msra.mxu0 0.0
        %1205 = vmatprep.subr.mxu0 0.0
        %1206 = vmatpush1.msra.mxu0 0.0
        %1207 = vmatprep.subr.mxu0 0.0
        %1208 = vmatpush1.msra.mxu0 0.0
        %1209 = vmatprep.subr.mxu0 0.0
        %1210 = vmatpush1.msra.mxu0 0.0
        %1211 = vmatprep.subr.mxu0 0.0
        %1212 = vmatpush1.msra.mxu0 0.0
        %1213 = vmatprep.subr.mxu0 0.0
        %1214 = vmatpush1.msra.mxu0 0.0
        %1215 = vmatprep.subr.mxu0 0.0
        %1216 = vmatpush1.msra.mxu0 0.0
        %1217 = vmatprep.subr.mxu0 0.0
        %1218 = vmatpush1.msra.mxu0 0.0
        %1219 = vmatprep.subr.mxu0 0.0
        %1220 = vmatpush1.msra.mxu0 0.0
        %1221 = vmatprep.subr.mxu0 0.0
        %1222 = vmatpush1.msra.mxu0 0.0
        %1223 = vmatprep.subr.mxu0 0.0
        %1224 = vmatpush1.msra.mxu0 0.0
        %1225 = vmatprep.subr.mxu0 0.0
        %1226 = vmatpush1.msra.mxu0 0.0
        %1227 = vmatprep.subr.mxu0 0.0
        %1228 = vmatpush1.msra.mxu0 0.0
        %1229 = vmatprep.subr.mxu0 0.0
        %1230 = vmatpush1.msra.mxu0 0.0
        %1231 = vmatprep.subr.mxu0 0.0
        %1232 = vmatpush1.msra.mxu0 0.0
        %1233 = vmatprep.subr.mxu0 0.0
        %1234 = vmatpush1.msra.mxu0 0.0
        %1235 = vmatprep.mubr.f32.mxu0 0.0
        %1236 = vmatmul.mubr.f32.gmra.mrb[0].mxu0 %v369
        %v1237 = vpop.f32.mrb[0].mxu0
        %v1238 = vadd.f32 0.0, %v1237
        %v1239 = vpop.f32.mrb[0].mxu0
        %v1240 = vadd.f32 0.0, %v1239
        %1241 = vmatprep.mubr.f32.mxu0 0.0
        %1242 = vmatmul.mubr.f32.gmra.mrb[0].mxu0 %v372
        %v1243 = vpop.f32.mrb[0].mxu0
        %v1244 = vadd.f32 0.0, %v1243
        %v1245 = vpop.f32.mrb[0].mxu0
        %v1246 = vadd.f32 0.0, %v1245
        %1247 = vmatprep.mubr.f32.mxu0 0.0
        %1248 = vmatmul.mubr.f32.gmra.mrb[0].mxu0 %v375
        %v1249 = vpop.f32.mrb[0].mxu0
        %v1250 = vadd.f32 0.0, %v1249
        %v1251 = vpop.f32.mrb[0].mxu0
        %v1252 = vadd.f32 0.0, %v1251
        %1253 = vmatprep.mubr.f32.mxu0 0.0
        %1254 = vmatmul.mubr.f32.gmra.mrb[0].mxu0 %v378
        %v1255 = vpop.f32.mrb[0].mxu0
        %v1256 = vadd.f32 0.0, %v1255
        %v1257 = vpop.f32.mrb[0].mxu0
        %v1258 = vadd.f32 0.0, %v1257
        %1259 = vmatprep.mubr.f32.mxu0 0.0
        %1260 = vmatmul.mubr.f32.gmra.mrb[0].mxu0 %v381
        %v1261 = vpop.f32.mrb[0].mxu0
        %v1262 = vadd.f32 0.0, %v1261
        %v1263 = vpop.f32.mrb[0].mxu0
        %v1264 = vadd.f32 0.0, %v1263
        %1265 = vmatprep.mubr.f32.mxu0 0.0
        %1266 = vmatmul.mubr.f32.gmra.mrb[0].mxu0 %v384
        %v1267 = vpop.f32.mrb[0].mxu0
        %v1268 = vadd.f32 0.0, %v1267
        %v1269 = vpop.f32.mrb[0].mxu0
        %v1270 = vadd.f32 0.0, %v1269
        %1271 = vmatprep.mubr.f32.mxu0 0.0
        %1272 = vmatmul.mubr.f32.gmra.mrb[0].mxu0 %v387
        %v1273 = vpop.f32.mrb[0].mxu0
        %v1274 = vadd.f32 0.0, %v1273
        %v1275 = vpop.f32.mrb[0].mxu0
        %v1276 = vadd.f32 0.0, %v1275
        %1277 = vmatprep.mubr.f32.mxu0 0.0
        %1278 = vmatmul.mubr.f32.gmra.mrb[0].mxu0 %v390
        %v1279 = vpop.f32.mrb[0].mxu0
        %v1280 = vadd.f32 0.0, %v1279
        %v1281 = vpop.f32.mrb[0].mxu0
        %v1282 = vadd.f32 0.0, %v1281
        %1283 = vmatprep.mubr.f32.mxu0 0.0
        %1284 = vmatmul.mubr.f32.gmra.mrb[0].mxu0 %v393
        %v1285 = vpop.f32.mrb[0].mxu0
        %v1286 = vadd.f32 0.0, %v1285
        %v1287 = vpop.f32.mrb[0].mxu0
        %v1288 = vadd.f32 0.0, %v1287
        %1289 = vmatprep.mubr.f32.mxu0 0.0
        %1290 = vmatmul.mubr.f32.gmra.mrb[0].mxu0 %v396
        %v1291 = vpop.f32.mrb[0].mxu0
        %v1292 = vadd.f32 0.0, %v1291
        %v1293 = vpop.f32.mrb[0].mxu0
        %v1294 = vadd.f32 0.0, %v1293
        %1295 = vmatprep.mubr.f32.mxu0 0.0
        %1296 = vmatmul.mubr.f32.gmra.mrb[0].mxu0 %v399
        %v1297 = vpop.f32.mrb[0].mxu0
        %v1298 = vadd.f32 0.0, %v1297
        %v1299 = vpop.f32.mrb[0].mxu0
        %v1300 = vadd.f32 0.0, %v1299
        %1301 = vmatprep.mubr.f32.mxu0 0.0
        %1302 = vmatmul.mubr.f32.gmra.mrb[0].mxu0 %v402
        %v1303 = vpop.f32.mrb[0].mxu0
        %v1304 = vadd.f32 0.0, %v1303
        %v1305 = vpop.f32.mrb[0].mxu0
        %v1306 = vadd.f32 0.0, %v1305
        %1307 = vmatprep.mubr.f32.mxu0 0.0
        %1308 = vmatmul.mubr.f32.gmra.mrb[0].mxu0 %v405
        %v1309 = vpop.f32.mrb[0].mxu0
        %v1310 = vadd.f32 0.0, %v1309
        %v1311 = vpop.f32.mrb[0].mxu0
        %v1312 = vadd.f32 0.0, %v1311
        %1313 = vdwg.mxu0
        %1314 = vmatprep.subr.mxu0 %v284
        %1315 = vmatpush1.msra.mxu0 %v283
        %1316 = vmatprep.subr.mxu0 %v300
        %1317 = vmatpush1.msra.mxu0 %v299
        %1318 = vmatprep.subr.mxu0 %v316
        %1319 = vmatpush1.msra.mxu0 %v315
        %1320 = vmatprep.subr.mxu0 %v332
        %1321 = vmatpush1.msra.mxu0 %v331
        %1322 = vmatprep.subr.mxu0 %v348
        %1323 = vmatpush1.msra.mxu0 %v347
        %1324 = vmatprep.subr.mxu0 %v448
        %1325 = vmatpush1.msra.mxu0 %v445
        %1326 = vmatprep.subr.mxu0 0.0
        %1327 = vmatpush1.msra.mxu0 0.0
        %1328 = vmatprep.subr.mxu0 0.0
        %1329 = vmatpush1.msra.mxu0 0.0
        %1330 = vmatprep.subr.mxu0 0.0
        %1331 = vmatpush1.msra.mxu0 0.0
        %1332 = vmatprep.subr.mxu0 0.0
        %1333 = vmatpush1.msra.mxu0 0.0
        %1334 = vmatprep.subr.mxu0 0.0
        %1335 = vmatpush1.msra.mxu0 0.0
        %1336 = vmatprep.subr.mxu0 0.0
        %1337 = vmatpush1.msra.mxu0 0.0
        %1338 = vmatprep.subr.mxu0 0.0
        %1339 = vmatpush1.msra.mxu0 0.0
        %1340 = vmatprep.subr.mxu0 0.0
        %1341 = vmatpush1.msra.mxu0 0.0
        %1342 = vmatprep.subr.mxu0 0.0
        %1343 = vmatpush1.msra.mxu0 0.0
        %1344 = vmatprep.subr.mxu0 0.0
        %1345 = vmatpush1.msra.mxu0 0.0
        %1346 = vmatprep.subr.mxu0 0.0
        %1347 = vmatpush1.msra.mxu0 0.0
        %1348 = vmatprep.subr.mxu0 0.0
        %1349 = vmatpush1.msra.mxu0 0.0
        %1350 = vmatprep.subr.mxu0 0.0
        %1351 = vmatpush1.msra.mxu0 0.0
        %1352 = vmatprep.subr.mxu0 0.0
        %1353 = vmatpush1.msra.mxu0 0.0
        %1354 = vmatprep.subr.mxu0 0.0
        %1355 = vmatpush1.msra.mxu0 0.0
        %1356 = vmatprep.subr.mxu0 0.0
        %1357 = vmatpush1.msra.mxu0 0.0
        %1358 = vmatprep.subr.mxu0 0.0
        %1359 = vmatpush1.msra.mxu0 0.0
        %1360 = vmatprep.subr.mxu0 0.0
        %1361 = vmatpush1.msra.mxu0 0.0
        %1362 = vmatprep.subr.mxu0 0.0
        %1363 = vmatpush1.msra.mxu0 0.0
        %1364 = vmatprep.subr.mxu0 0.0
        %1365 = vmatpush1.msra.mxu0 0.0
        %1366 = vmatprep.subr.mxu0 0.0
        %1367 = vmatpush1.msra.mxu0 0.0
        %1368 = vmatprep.subr.mxu0 0.0
        %1369 = vmatpush1.msra.mxu0 0.0
        %1370 = vmatprep.subr.mxu0 0.0
        %1371 = vmatpush1.msra.mxu0 0.0
        %1372 = vmatprep.subr.mxu0 0.0
        %1373 = vmatpush1.msra.mxu0 0.0
        %1374 = vmatprep.subr.mxu0 0.0
        %1375 = vmatpush1.msra.mxu0 0.0
        %1376 = vmatprep.subr.mxu0 0.0
        %1377 = vmatpush1.msra.mxu0 0.0
        %1378 = vmatprep.mubr.f32.mxu0 0.0
        %1379 = vmatmul.mubr.f32.gmra.mrb[0].mxu0 %v369
        %v1380 = vpop.f32.mrb[0].mxu0
        %v1381 = vadd.f32 0.0, %v1380
        %v1382 = vpop.f32.mrb[0].mxu0
        %v1383 = vadd.f32 0.0, %v1382
        %1384 = vmatprep.mubr.f32.mxu0 0.0
        %1385 = vmatmul.mubr.f32.gmra.mrb[0].mxu0 %v372
        %v1386 = vpop.f32.mrb[0].mxu0
        %v1387 = vadd.f32 0.0, %v1386
        %v1388 = vpop.f32.mrb[0].mxu0
        %v1389 = vadd.f32 0.0, %v1388
        %1390 = vmatprep.mubr.f32.mxu0 0.0
        %1391 = vmatmul.mubr.f32.gmra.mrb[0].mxu0 %v375
        %v1392 = vpop.f32.mrb[0].mxu0
        %v1393 = vadd.f32 0.0, %v1392
        %v1394 = vpop.f32.mrb[0].mxu0
        %v1395 = vadd.f32 0.0, %v1394
        %1396 = vmatprep.mubr.f32.mxu0 0.0
        %1397 = vmatmul.mubr.f32.gmra.mrb[0].mxu0 %v378
        %v1398 = vpop.f32.mrb[0].mxu0
        %v1399 = vadd.f32 0.0, %v1398
        %v1400 = vpop.f32.mrb[0].mxu0
        %v1401 = vadd.f32 0.0, %v1400
        %1402 = vmatprep.mubr.f32.mxu0 0.0
        %1403 = vmatmul.mubr.f32.gmra.mrb[0].mxu0 %v381
        %v1404 = vpop.f32.mrb[0].mxu0
        %v1405 = vadd.f32 0.0, %v1404
        %v1406 = vpop.f32.mrb[0].mxu0
        %v1407 = vadd.f32 0.0, %v1406
        %1408 = vmatprep.mubr.f32.mxu0 0.0
        %1409 = vmatmul.mubr.f32.gmra.mrb[0].mxu0 %v384
        %v1410 = vpop.f32.mrb[0].mxu0
        %v1411 = vadd.f32 0.0, %v1410
        %v1412 = vpop.f32.mrb[0].mxu0
        %v1413 = vadd.f32 0.0, %v1412
        %1414 = vmatprep.mubr.f32.mxu0 0.0
        %1415 = vmatmul.mubr.f32.gmra.mrb[0].mxu0 %v387
        %v1416 = vpop.f32.mrb[0].mxu0
        %v1417 = vadd.f32 0.0, %v1416
        %v1418 = vpop.f32.mrb[0].mxu0
        %v1419 = vadd.f32 0.0, %v1418
        %1420 = vmatprep.mubr.f32.mxu0 0.0
        %1421 = vmatmul.mubr.f32.gmra.mrb[0].mxu0 %v390
        %v1422 = vpop.f32.mrb[0].mxu0
        %v1423 = vadd.f32 0.0, %v1422
        %v1424 = vpop.f32.mrb[0].mxu0
        %v1425 = vadd.f32 0.0, %v1424
        %1426 = vmatprep.mubr.f32.mxu0 0.0
        %1427 = vmatmul.mubr.f32.gmra.mrb[0].mxu0 %v393
        %v1428 = vpop.f32.mrb[0].mxu0
        %v1429 = vadd.f32 0.0, %v1428
        %v1430 = vpop.f32.mrb[0].mxu0
        %v1431 = vadd.f32 0.0, %v1430
        %1432 = vmatprep.mubr.f32.mxu0 0.0
        %1433 = vmatmul.mubr.f32.gmra.mrb[0].mxu0 %v396
        %v1434 = vpop.f32.mrb[0].mxu0
        %v1435 = vadd.f32 0.0, %v1434
        %v1436 = vpop.f32.mrb[0].mxu0
        %v1437 = vadd.f32 0.0, %v1436
        %1438 = vmatprep.mubr.f32.mxu0 0.0
        %1439 = vmatmul.mubr.f32.gmra.mrb[0].mxu0 %v399
        %v1440 = vpop.f32.mrb[0].mxu0
        %v1441 = vadd.f32 0.0, %v1440
        %v1442 = vpop.f32.mrb[0].mxu0
        %v1443 = vadd.f32 0.0, %v1442
        %1444 = vmatprep.mubr.f32.mxu0 0.0
        %1445 = vmatmul.mubr.f32.gmra.mrb[0].mxu0 %v402
        %v1446 = vpop.f32.mrb[0].mxu0
        %v1447 = vadd.f32 0.0, %v1446
        %v1448 = vpop.f32.mrb[0].mxu0
        %v1449 = vadd.f32 0.0, %v1448
        %1450 = vmatprep.mubr.f32.mxu0 0.0
        %1451 = vmatmul.mubr.f32.gmra.mrb[0].mxu0 %v405
        %v1452 = vpop.f32.mrb[0].mxu0
        %v1453 = vadd.f32 0.0, %v1452
        %v1454 = vpop.f32.mrb[0].mxu0
        %v1455 = vadd.f32 0.0, %v1454
        %1456 = vdwg.mxu0
        %1457 = vmatprep.subr.mxu0 %v286
        %1458 = vmatpush1.msra.mxu0 %v285
        %1459 = vmatprep.subr.mxu0 %v302
        %1460 = vmatpush1.msra.mxu0 %v301
        %1461 = vmatprep.subr.mxu0 %v318
        %1462 = vmatpush1.msra.mxu0 %v317
        %1463 = vmatprep.subr.mxu0 %v334
        %1464 = vmatpush1.msra.mxu0 %v333
        %1465 = vmatprep.subr.mxu0 %v350
        %1466 = vmatpush1.msra.mxu0 %v349
        %1467 = vmatprep.subr.mxu0 %v454
        %1468 = vmatpush1.msra.mxu0 %v451
        %1469 = vmatprep.subr.mxu0 0.0
        %1470 = vmatpush1.msra.mxu0 0.0
        %1471 = vmatprep.subr.mxu0 0.0
        %1472 = vmatpush1.msra.mxu0 0.0
        %1473 = vmatprep.subr.mxu0 0.0
        %1474 = vmatpush1.msra.mxu0 0.0
        %1475 = vmatprep.subr.mxu0 0.0
        %1476 = vmatpush1.msra.mxu0 0.0
        %1477 = vmatprep.subr.mxu0 0.0
        %1478 = vmatpush1.msra.mxu0 0.0
        %1479 = vmatprep.subr.mxu0 0.0
        %1480 = vmatpush1.msra.mxu0 0.0
        %1481 = vmatprep.subr.mxu0 0.0
        %1482 = vmatpush1.msra.mxu0 0.0
        %1483 = vmatprep.subr.mxu0 0.0
        %1484 = vmatpush1.msra.mxu0 0.0
        %1485 = vmatprep.subr.mxu0 0.0
        %1486 = vmatpush1.msra.mxu0 0.0
        %1487 = vmatprep.subr.mxu0 0.0
        %1488 = vmatpush1.msra.mxu0 0.0
        %1489 = vmatprep.subr.mxu0 0.0
        %1490 = vmatpush1.msra.mxu0 0.0
        %1491 = vmatprep.subr.mxu0 0.0
        %1492 = vmatpush1.msra.mxu0 0.0
        %1493 = vmatprep.subr.mxu0 0.0
        %1494 = vmatpush1.msra.mxu0 0.0
        %1495 = vmatprep.subr.mxu0 0.0
        %1496 = vmatpush1.msra.mxu0 0.0
        %1497 = vmatprep.subr.mxu0 0.0
        %1498 = vmatpush1.msra.mxu0 0.0
        %1499 = vmatprep.subr.mxu0 0.0
        %1500 = vmatpush1.msra.mxu0 0.0
        %1501 = vmatprep.subr.mxu0 0.0
        %1502 = vmatpush1.msra.mxu0 0.0
        %1503 = vmatprep.subr.mxu0 0.0
        %1504 = vmatpush1.msra.mxu0 0.0
        %1505 = vmatprep.subr.mxu0 0.0
        %1506 = vmatpush1.msra.mxu0 0.0
        %1507 = vmatprep.subr.mxu0 0.0
        %1508 = vmatpush1.msra.mxu0 0.0
        %1509 = vmatprep.subr.mxu0 0.0
        %1510 = vmatpush1.msra.mxu0 0.0
        %1511 = vmatprep.subr.mxu0 0.0
        %1512 = vmatpush1.msra.mxu0 0.0
        %1513 = vmatprep.subr.mxu0 0.0
        %1514 = vmatpush1.msra.mxu0 0.0
        %1515 = vmatprep.subr.mxu0 0.0
        %1516 = vmatpush1.msra.mxu0 0.0
        %1517 = vmatprep.subr.mxu0 0.0
        %1518 = vmatpush1.msra.mxu0 0.0
        %1519 = vmatprep.subr.mxu0 0.0
        %1520 = vmatpush1.msra.mxu0 0.0
        %1521 = vmatprep.mubr.f32.mxu0 0.0
        %1522 = vmatmul.mubr.f32.gmra.mrb[0].mxu0 %v369
        %v1523 = vpop.f32.mrb[0].mxu0
        %v1524 = vadd.f32 0.0, %v1523
        %v1525 = vpop.f32.mrb[0].mxu0
        %v1526 = vadd.f32 0.0, %v1525
        %1527 = vmatprep.mubr.f32.mxu0 0.0
        %1528 = vmatmul.mubr.f32.gmra.mrb[0].mxu0 %v372
        %v1529 = vpop.f32.mrb[0].mxu0
        %v1530 = vadd.f32 0.0, %v1529
        %v1531 = vpop.f32.mrb[0].mxu0
        %v1532 = vadd.f32 0.0, %v1531
        %1533 = vmatprep.mubr.f32.mxu0 0.0
        %1534 = vmatmul.mubr.f32.gmra.mrb[0].mxu0 %v375
        %v1535 = vpop.f32.mrb[0].mxu0
        %v1536 = vadd.f32 0.0, %v1535
        %v1537 = vpop.f32.mrb[0].mxu0
        %v1538 = vadd.f32 0.0, %v1537
        %1539 = vmatprep.mubr.f32.mxu0 0.0
        %1540 = vmatmul.mubr.f32.gmra.mrb[0].mxu0 %v378
        %v1541 = vpop.f32.mrb[0].mxu0
        %v1542 = vadd.f32 0.0, %v1541
        %v1543 = vpop.f32.mrb[0].mxu0
        %v1544 = vadd.f32 0.0, %v1543
        %1545 = vmatprep.mubr.f32.mxu0 0.0
        %1546 = vmatmul.mubr.f32.gmra.mrb[0].mxu0 %v381
        %v1547 = vpop.f32.mrb[0].mxu0
        %v1548 = vadd.f32 0.0, %v1547
        %v1549 = vpop.f32.mrb[0].mxu0
        %v1550 = vadd.f32 0.0, %v1549
        %1551 = vmatprep.mubr.f32.mxu0 0.0
        %1552 = vmatmul.mubr.f32.gmra.mrb[0].mxu0 %v384
        %v1553 = vpop.f32.mrb[0].mxu0
        %v1554 = vadd.f32 0.0, %v1553
        %v1555 = vpop.f32.mrb[0].mxu0
        %v1556 = vadd.f32 0.0, %v1555
        %1557 = vmatprep.mubr.f32.mxu0 0.0
        %1558 = vmatmul.mubr.f32.gmra.mrb[0].mxu0 %v387
        %v1559 = vpop.f32.mrb[0].mxu0
        %v1560 = vadd.f32 0.0, %v1559
        %v1561 = vpop.f32.mrb[0].mxu0
        %v1562 = vadd.f32 0.0, %v1561
        %1563 = vmatprep.mubr.f32.mxu0 0.0
        %1564 = vmatmul.mubr.f32.gmra.mrb[0].mxu0 %v390
        %v1565 = vpop.f32.mrb[0].mxu0
        %v1566 = vadd.f32 0.0, %v1565
        %v1567 = vpop.f32.mrb[0].mxu0
        %v1568 = vadd.f32 0.0, %v1567
        %1569 = vmatprep.mubr.f32.mxu0 0.0
        %1570 = vmatmul.mubr.f32.gmra.mrb[0].mxu0 %v393
        %v1571 = vpop.f32.mrb[0].mxu0
        %v1572 = vadd.f32 0.0, %v1571
        %v1573 = vpop.f32.mrb[0].mxu0
        %v1574 = vadd.f32 0.0, %v1573
        %1575 = vmatprep.mubr.f32.mxu0 0.0
        %1576 = vmatmul.mubr.f32.gmra.mrb[0].mxu0 %v396
        %v1577 = vpop.f32.mrb[0].mxu0
        %v1578 = vadd.f32 0.0, %v1577
        %v1579 = vpop.f32.mrb[0].mxu0
        %v1580 = vadd.f32 0.0, %v1579
        %1581 = vmatprep.mubr.f32.mxu0 0.0
        %1582 = vmatmul.mubr.f32.gmra.mrb[0].mxu0 %v399
        %v1583 = vpop.f32.mrb[0].mxu0
        %v1584 = vadd.f32 0.0, %v1583
        %v1585 = vpop.f32.mrb[0].mxu0
        %v1586 = vadd.f32 0.0, %v1585
        %1587 = vmatprep.mubr.f32.mxu0 0.0
        %1588 = vmatmul.mubr.f32.gmra.mrb[0].mxu0 %v402
        %v1589 = vpop.f32.mrb[0].mxu0
        %v1590 = vadd.f32 0.0, %v1589
        %v1591 = vpop.f32.mrb[0].mxu0
        %v1592 = vadd.f32 0.0, %v1591
        %1593 = vmatprep.mubr.f32.mxu0 0.0
        %1594 = vmatmul.mubr.f32.gmra.mrb[0].mxu0 %v405
        %v1595 = vpop.f32.mrb[0].mxu0
        %v1596 = vadd.f32 0.0, %v1595
        %v1597 = vpop.f32.mrb[0].mxu0
        %v1598 = vadd.f32 0.0, %v1597
        %1599 = vdwg.mxu0
        %v1600 = vmax.f32 %v523, %v525
        %v1601 = vmax.f32 %v529, %v531
        %v1602 = vmax.f32 %v535, %v537
        %v1603 = vmax.f32 %v541, %v543
        %v1604 = vmax.f32 %v547, %v549
        %v1605 = vmax.f32 %v553, %v555
        %v1606 = vmax.f32 %v559, %v561
        %v1607 = vmax.f32 %v565, %v567
        %v1608 = vmax.f32 %v571, %v573
        %v1609 = vmax.f32 %v577, %v579
        %v1610 = vmax.f32 %v583, %v585
        %v1611 = vmax.f32 %v589, %v591
        %v1612 = vmax.f32 %v595, %v597
        %v1613 = vmax.f32 %v1600, %v666
        %v1614 = vmax.f32 %v1601, %v672
        %v1615 = vmax.f32 %v1602, %v678
        %v1616 = vmax.f32 %v1603, %v684
        %v1617 = vmax.f32 %v1604, %v690
        %v1618 = vmax.f32 %v1605, %v696
        %v1619 = vmax.f32 %v1606, %v702
        %v1620 = vmax.f32 %v1607, %v708
        %v1621 = vmax.f32 %v1608, %v714
        %v1622 = vmax.f32 %v1609, %v720
        %v1623 = vmax.f32 %v1610, %v726
        %v1624 = vmax.f32 %v1611, %v732
        %v1625 = vmax.f32 %v1612, %v738
        %v1626 = vmax.f32 %v1613, %v668
        %v1627 = vmax.f32 %v1614, %v674
        %v1628 = vmax.f32 %v1615, %v680
        %v1629 = vmax.f32 %v1616, %v686
        %v1630 = vmax.f32 %v1617, %v692
        %v1631 = vmax.f32 %v1618, %v698
        %v1632 = vmax.f32 %v1619, %v704
        %v1633 = vmax.f32 %v1620, %v710
        %v1634 = vmax.f32 %v1621, %v716
        %v1635 = vmax.f32 %v1622, %v722
        %v1636 = vmax.f32 %v1623, %v728
        %v1637 = vmax.f32 %v1624, %v734
        %v1638 = vmax.f32 %v1625, %v740
        %v1639 = vmax.f32 %v1626, %v809
        %v1640 = vmax.f32 %v1627, %v815
        %v1641 = vmax.f32 %v1628, %v821
        %v1642 = vmax.f32 %v1629, %v827
        %v1643 = vmax.f32 %v1630, %v833
        %v1644 = vmax.f32 %v1631, %v839
        %v1645 = vmax.f32 %v1632, %v845
        %v1646 = vmax.f32 %v1633, %v851
        %v1647 = vmax.f32 %v1634, %v857
        %v1648 = vmax.f32 %v1635, %v863
        %v1649 = vmax.f32 %v1636, %v869
        %v1650 = vmax.f32 %v1637, %v875
        %v1651 = vmax.f32 %v1638, %v881
        %v1652 = vmax.f32 %v1639, %v811
        %v1653 = vmax.f32 %v1640, %v817
        %v1654 = vmax.f32 %v1641, %v823
        %v1655 = vmax.f32 %v1642, %v829
        %v1656 = vmax.f32 %v1643, %v835
        %v1657 = vmax.f32 %v1644, %v841
        %v1658 = vmax.f32 %v1645, %v847
        %v1659 = vmax.f32 %v1646, %v853
        %v1660 = vmax.f32 %v1647, %v859
        %v1661 = vmax.f32 %v1648, %v865
        %v1662 = vmax.f32 %v1649, %v871
        %v1663 = vmax.f32 %v1650, %v877
        %v1664 = vmax.f32 %v1651, %v883
        %v1665 = vmax.f32 %v1652, %v952
        %v1666 = vmax.f32 %v1653, %v958
        %v1667 = vmax.f32 %v1654, %v964
        %v1668 = vmax.f32 %v1655, %v970
        %v1669 = vmax.f32 %v1656, %v976
        %v1670 = vmax.f32 %v1657, %v982
        %v1671 = vmax.f32 %v1658, %v988
        %v1672 = vmax.f32 %v1659, %v994
        %v1673 = vmax.f32 %v1660, %v1000
        %v1674 = vmax.f32 %v1661, %v1006
        %v1675 = vmax.f32 %v1662, %v1012
        %v1676 = vmax.f32 %v1663, %v1018
        %v1677 = vmax.f32 %v1664, %v1024
        %v1678 = vmax.f32 %v1665, %v954
        %v1679 = vmax.f32 %v1666, %v960
        %v1680 = vmax.f32 %v1667, %v966
        %v1681 = vmax.f32 %v1668, %v972
        %v1682 = vmax.f32 %v1669, %v978
        %v1683 = vmax.f32 %v1670, %v984
        %v1684 = vmax.f32 %v1671, %v990
        %v1685 = vmax.f32 %v1672, %v996
        %v1686 = vmax.f32 %v1673, %v1002
        %v1687 = vmax.f32 %v1674, %v1008
        %v1688 = vmax.f32 %v1675, %v1014
        %v1689 = vmax.f32 %v1676, %v1020
        %v1690 = vmax.f32 %v1677, %v1026
        %v1691 = vmax.f32 %v1678, %v1095
        %v1692 = vmax.f32 %v1679, %v1101
        %v1693 = vmax.f32 %v1680, %v1107
        %v1694 = vmax.f32 %v1681, %v1113
        %v1695 = vmax.f32 %v1682, %v1119
        %v1696 = vmax.f32 %v1683, %v1125
        %v1697 = vmax.f32 %v1684, %v1131
        %v1698 = vmax.f32 %v1685, %v1137
        %v1699 = vmax.f32 %v1686, %v1143
        %v1700 = vmax.f32 %v1687, %v1149
        %v1701 = vmax.f32 %v1688, %v1155
        %v1702 = vmax.f32 %v1689, %v1161
        %v1703 = vmax.f32 %v1690, %v1167
        %v1704 = vmax.f32 %v1691, %v1097
        %v1705 = vmax.f32 %v1692, %v1103
        %v1706 = vmax.f32 %v1693, %v1109
        %v1707 = vmax.f32 %v1694, %v1115
        %v1708 = vmax.f32 %v1695, %v1121
        %v1709 = vmax.f32 %v1696, %v1127
        %v1710 = vmax.f32 %v1697, %v1133
        %v1711 = vmax.f32 %v1698, %v1139
        %v1712 = vmax.f32 %v1699, %v1145
        %v1713 = vmax.f32 %v1700, %v1151
        %v1714 = vmax.f32 %v1701, %v1157
        %v1715 = vmax.f32 %v1702, %v1163
        %v1716 = vmax.f32 %v1703, %v1169
        %v1717 = vmax.f32 %v1704, %v1238
        %v1718 = vmax.f32 %v1705, %v1244
        %v1719 = vmax.f32 %v1706, %v1250
        %v1720 = vmax.f32 %v1707, %v1256
        %v1721 = vmax.f32 %v1708, %v1262
        %v1722 = vmax.f32 %v1709, %v1268
        %v1723 = vmax.f32 %v1710, %v1274
        %v1724 = vmax.f32 %v1711, %v1280
        %v1725 = vmax.f32 %v1712, %v1286
        %v1726 = vmax.f32 %v1713, %v1292
        %v1727 = vmax.f32 %v1714, %v1298
        %v1728 = vmax.f32 %v1715, %v1304
        %v1729 = vmax.f32 %v1716, %v1310
        %v1730 = vmax.f32 %v1717, %v1240
        %v1731 = vmax.f32 %v1718, %v1246
        %v1732 = vmax.f32 %v1719, %v1252
        %v1733 = vmax.f32 %v1720, %v1258
        %v1734 = vmax.f32 %v1721, %v1264
        %v1735 = vmax.f32 %v1722, %v1270
        %v1736 = vmax.f32 %v1723, %v1276
        %v1737 = vmax.f32 %v1724, %v1282
        %v1738 = vmax.f32 %v1725, %v1288
        %v1739 = vmax.f32 %v1726, %v1294
        %v1740 = vmax.f32 %v1727, %v1300
        %v1741 = vmax.f32 %v1728, %v1306
        %v1742 = vmax.f32 %v1729, %v1312
        %v1743 = vmax.f32 %v1730, %v1381
        %v1744 = vmax.f32 %v1731, %v1387
        %v1745 = vmax.f32 %v1732, %v1393
        %v1746 = vmax.f32 %v1733, %v1399
        %v1747 = vmax.f32 %v1734, %v1405
        %v1748 = vmax.f32 %v1735, %v1411
        %v1749 = vmax.f32 %v1736, %v1417
        %v1750 = vmax.f32 %v1737, %v1423
        %v1751 = vmax.f32 %v1738, %v1429
        %v1752 = vmax.f32 %v1739, %v1435
        %v1753 = vmax.f32 %v1740, %v1441
        %v1754 = vmax.f32 %v1741, %v1447
        %v1755 = vmax.f32 %v1742, %v1453
        %v1756 = vmax.f32 %v1743, %v1383
        %v1757 = vmax.f32 %v1744, %v1389
        %v1758 = vmax.f32 %v1745, %v1395
        %v1759 = vmax.f32 %v1746, %v1401
        %v1760 = vmax.f32 %v1747, %v1407
        %v1761 = vmax.f32 %v1748, %v1413
        %v1762 = vmax.f32 %v1749, %v1419
        %v1763 = vmax.f32 %v1750, %v1425
        %v1764 = vmax.f32 %v1751, %v1431
        %v1765 = vmax.f32 %v1752, %v1437
        %v1766 = vmax.f32 %v1753, %v1443
        %v1767 = vmax.f32 %v1754, %v1449
        %v1768 = vmax.f32 %v1755, %v1455
        %v1769 = vmax.f32 %v1756, %v1524
        %v1770 = vmax.f32 %v1757, %v1530
        %v1771 = vmax.f32 %v1758, %v1536
        %v1772 = vmax.f32 %v1759, %v1542
        %v1773 = vmax.f32 %v1760, %v1548
        %v1774 = vmax.f32 %v1761, %v1554
        %v1775 = vmax.f32 %v1762, %v1560
        %v1776 = vmax.f32 %v1763, %v1566
        %v1777 = vmax.f32 %v1764, %v1572
        %v1778 = vmax.f32 %v1765, %v1578
        %v1779 = vmax.f32 %v1766, %v1584
        %v1780 = vmax.f32 %v1767, %v1590
        %v1781 = vmax.f32 %v1768, %v1596
        %v1782 = vmax.f32 %v1769, %v1526
        %v1783 = vmax.f32 %v1770, %v1532
        %v1784 = vmax.f32 %v1771, %v1538
        %v1785 = vmax.f32 %v1772, %v1544
        %v1786 = vmax.f32 %v1773, %v1550
        %v1787 = vmax.f32 %v1774, %v1556
        %v1788 = vmax.f32 %v1775, %v1562
        %v1789 = vmax.f32 %v1776, %v1568
        %v1790 = vmax.f32 %v1777, %v1574
        %v1791 = vmax.f32 %v1778, %v1580
        %v1792 = vmax.f32 %v1779, %v1586
        %v1793 = vmax.f32 %v1780, %v1592
        %v1794 = vmax.f32 %v1781, %v1598
        %v1795 = vld [vmem:[#allocation2] sm:$0xff]
        %v1796 = vld [vmem:[#allocation2 + $0x8] sm:$0xff]
        %v1797 = vld [vmem:[#allocation2 + $0x10] sm:$0xff]
        %v1798 = vld [vmem:[#allocation2 + $0x18] sm:$0xff]
        %v1799 = vld [vmem:[#allocation2 + $0x20] sm:$0xff]
        %v1800 = vld [vmem:[#allocation2 + $0x28] sm:$0xff]
        %v1801 = vld [vmem:[#allocation2 + $0x30] sm:$0xff]
        %v1802 = vld [vmem:[#allocation2 + $0x38] sm:$0xff]
        %v1803 = vld [vmem:[#allocation2 + $0x40] sm:$0xff]
        %v1804 = vld [vmem:[#allocation2 + $0x48] sm:$0xff]
        %v1805 = vld [vmem:[#allocation2 + $0x50] sm:$0xff]
        %v1806 = vld [vmem:[#allocation2 + $0x58] sm:$0xff]
        %v1807 = vld [vmem:[#allocation2 + $0x60] sm:$0xff]
        %v1808 = vmax.f32 %v1795, %v1782
        %v1809 = vmax.f32 %v1796, %v1783
        %v1810 = vmax.f32 %v1797, %v1784
        %v1811 = vmax.f32 %v1798, %v1785
        %v1812 = vmax.f32 %v1799, %v1786
        %v1813 = vmax.f32 %v1800, %v1787
        %v1814 = vmax.f32 %v1801, %v1788
        %v1815 = vmax.f32 %v1802, %v1789
        %v1816 = vmax.f32 %v1803, %v1790
        %v1817 = vmax.f32 %v1804, %v1791
        %v1818 = vmax.f32 %v1805, %v1792
        %v1819 = vmax.f32 %v1806, %v1793
        %v1820 = vmax.f32 %v1807, %v1794
        %v1821 = vld [vmem:[#allocation3] sm:$0xff]
        %v1822 = vld [vmem:[#allocation3 + $0x8] sm:$0xff]
        %v1823 = vld [vmem:[#allocation3 + $0x10] sm:$0xff]
        %v1824 = vld [vmem:[#allocation3 + $0x18] sm:$0xff]
        %v1825 = vld [vmem:[#allocation3 + $0x20] sm:$0xff]
        %v1826 = vld [vmem:[#allocation3 + $0x28] sm:$0xff]
        %v1827 = vld [vmem:[#allocation3 + $0x30] sm:$0xff]
        %v1828 = vld [vmem:[#allocation3 + $0x38] sm:$0xff]
        %v1829 = vld [vmem:[#allocation3 + $0x40] sm:$0xff]
        %v1830 = vld [vmem:[#allocation3 + $0x48] sm:$0xff]
        %v1831 = vld [vmem:[#allocation3 + $0x50] sm:$0xff]
        %v1832 = vld [vmem:[#allocation3 + $0x58] sm:$0xff]
        %v1833 = vld [vmem:[#allocation3 + $0x60] sm:$0xff]
        %v1834 = vsub.f32 %v1795, %v1808
        %v1835 = vsub.f32 %v1796, %v1809
        %v1836 = vsub.f32 %v1797, %v1810
        %v1837 = vsub.f32 %v1798, %v1811
        %v1838 = vsub.f32 %v1799, %v1812
        %v1839 = vsub.f32 %v1800, %v1813
        %v1840 = vsub.f32 %v1801, %v1814
        %v1841 = vsub.f32 %v1802, %v1815
        %v1842 = vsub.f32 %v1803, %v1816
        %v1843 = vsub.f32 %v1804, %v1817
        %v1844 = vsub.f32 %v1805, %v1818
        %v1845 = vsub.f32 %v1806, %v1819
        %v1846 = vsub.f32 %v1807, %v1820
        %v1847 = vmul.f32 %v1834, 1.442695
        %v1848 = vpow.pop %v1847
        %v1849 = vmul.f32 %v1835, 1.442695
        %v1850 = vpow.pop %v1849
        %v1851 = vmul.f32 %v1836, 1.442695
        %v1852 = vpow.pop %v1851
        %v1853 = vmul.f32 %v1837, 1.442695
        %v1854 = vpow.pop %v1853
        %v1855 = vmul.f32 %v1838, 1.442695
        %v1856 = vpow.pop %v1855
        %v1857 = vmul.f32 %v1839, 1.442695
        %v1858 = vpow.pop %v1857
        %v1859 = vmul.f32 %v1840, 1.442695
        %v1860 = vpow.pop %v1859
        %v1861 = vmul.f32 %v1841, 1.442695
        %v1862 = vpow.pop %v1861
        %v1863 = vmul.f32 %v1842, 1.442695
        %v1864 = vpow.pop %v1863
        %v1865 = vmul.f32 %v1843, 1.442695
        %v1866 = vpow.pop %v1865
        %v1867 = vmul.f32 %v1844, 1.442695
        %v1868 = vpow.pop %v1867
        %v1869 = vmul.f32 %v1845, 1.442695
        %v1870 = vpow.pop %v1869
        %v1871 = vmul.f32 %v1846, 1.442695
        %v1872 = vpow.pop %v1871
        %v1873 = vmul.f32 %v1821, %v1848
        %v1874 = vmul.f32 %v1822, %v1850
        %v1875 = vmul.f32 %v1823, %v1852
        %v1876 = vmul.f32 %v1824, %v1854
        %v1877 = vmul.f32 %v1825, %v1856
        %v1878 = vmul.f32 %v1826, %v1858
        %v1879 = vmul.f32 %v1827, %v1860
        %v1880 = vmul.f32 %v1828, %v1862
        %v1881 = vmul.f32 %v1829, %v1864
        %v1882 = vmul.f32 %v1830, %v1866
        %v1883 = vmul.f32 %v1831, %v1868
        %v1884 = vmul.f32 %v1832, %v1870
        %v1885 = vmul.f32 %v1833, %v1872
        %v1886 = vsub.f32 %v523, %v1808
        %v1887 = vsub.f32 %v529, %v1809
        %v1888 = vsub.f32 %v535, %v1810
        %v1889 = vsub.f32 %v541, %v1811
        %v1890 = vsub.f32 %v547, %v1812
        %v1891 = vsub.f32 %v553, %v1813
        %v1892 = vsub.f32 %v559, %v1814
        %v1893 = vsub.f32 %v565, %v1815
        %v1894 = vsub.f32 %v571, %v1816
        %v1895 = vsub.f32 %v577, %v1817
        %v1896 = vsub.f32 %v583, %v1818
        %v1897 = vsub.f32 %v589, %v1819
        %v1898 = vsub.f32 %v595, %v1820
        %v1899 = vmul.f32 %v1886, 1.442695
        %v1900 = vpow.pop %v1899
        %v1901 = vmul.f32 %v1887, 1.442695
        %v1902 = vpow.pop %v1901
        %v1903 = vmul.f32 %v1888, 1.442695
        %v1904 = vpow.pop %v1903
        %v1905 = vmul.f32 %v1889, 1.442695
        %v1906 = vpow.pop %v1905
        %v1907 = vmul.f32 %v1890, 1.442695
        %v1908 = vpow.pop %v1907
        %v1909 = vmul.f32 %v1891, 1.442695
        %v1910 = vpow.pop %v1909
        %v1911 = vmul.f32 %v1892, 1.442695
        %v1912 = vpow.pop %v1911
        %v1913 = vmul.f32 %v1893, 1.442695
        %v1914 = vpow.pop %v1913
        %v1915 = vmul.f32 %v1894, 1.442695
        %v1916 = vpow.pop %v1915
        %v1917 = vmul.f32 %v1895, 1.442695
        %v1918 = vpow.pop %v1917
        %v1919 = vmul.f32 %v1896, 1.442695
        %v1920 = vpow.pop %v1919
        %v1921 = vmul.f32 %v1897, 1.442695
        %v1922 = vpow.pop %v1921
        %v1923 = vmul.f32 %v1898, 1.442695
        %v1924 = vpow.pop %v1923
        %v1925 = vadd.f32 %v1873, %v1900
        %v1926 = vadd.f32 %v1874, %v1902
        %v1927 = vadd.f32 %v1875, %v1904
        %v1928 = vadd.f32 %v1876, %v1906
        %v1929 = vadd.f32 %v1877, %v1908
        %v1930 = vadd.f32 %v1878, %v1910
        %v1931 = vadd.f32 %v1879, %v1912
        %v1932 = vadd.f32 %v1880, %v1914
        %v1933 = vadd.f32 %v1881, %v1916
        %v1934 = vadd.f32 %v1882, %v1918
        %v1935 = vadd.f32 %v1883, %v1920
        %v1936 = vadd.f32 %v1884, %v1922
        %v1937 = vadd.f32 %v1885, %v1924
        %v1938 = vsub.f32 %v525, %v1808
        %v1939 = vsub.f32 %v531, %v1809
        %v1940 = vsub.f32 %v537, %v1810
        %v1941 = vsub.f32 %v543, %v1811
        %v1942 = vsub.f32 %v549, %v1812
        %v1943 = vsub.f32 %v555, %v1813
        %v1944 = vsub.f32 %v561, %v1814
        %v1945 = vsub.f32 %v567, %v1815
        %v1946 = vsub.f32 %v573, %v1816
        %v1947 = vsub.f32 %v579, %v1817
        %v1948 = vsub.f32 %v585, %v1818
        %v1949 = vsub.f32 %v591, %v1819
        %v1950 = vsub.f32 %v597, %v1820
        %v1951 = vmul.f32 %v1938, 1.442695
        %v1952 = vpow.pop %v1951
        %v1953 = vmul.f32 %v1939, 1.442695
        %v1954 = vpow.pop %v1953
        %v1955 = vmul.f32 %v1940, 1.442695
        %v1956 = vpow.pop %v1955
        %v1957 = vmul.f32 %v1941, 1.442695
        %v1958 = vpow.pop %v1957
        %v1959 = vmul.f32 %v1942, 1.442695
        %v1960 = vpow.pop %v1959
        %v1961 = vmul.f32 %v1943, 1.442695
        %v1962 = vpow.pop %v1961
        %v1963 = vmul.f32 %v1944, 1.442695
        %v1964 = vpow.pop %v1963
        %v1965 = vmul.f32 %v1945, 1.442695
        %v1966 = vpow.pop %v1965
        %v1967 = vmul.f32 %v1946, 1.442695
        %v1968 = vpow.pop %v1967
        %v1969 = vmul.f32 %v1947, 1.442695
        %v1970 = vpow.pop %v1969
        %v1971 = vmul.f32 %v1948, 1.442695
        %v1972 = vpow.pop %v1971
        %v1973 = vmul.f32 %v1949, 1.442695
        %v1974 = vpow.pop %v1973
        %v1975 = vmul.f32 %v1950, 1.442695
        %v1976 = vpow.pop %v1975
        %v1977 = vadd.f32 %v1925, %v1952
        %v1978 = vadd.f32 %v1926, %v1954
        %v1979 = vadd.f32 %v1927, %v1956
        %v1980 = vadd.f32 %v1928, %v1958
        %v1981 = vadd.f32 %v1929, %v1960
        %v1982 = vadd.f32 %v1930, %v1962
        %v1983 = vadd.f32 %v1931, %v1964
        %v1984 = vadd.f32 %v1932, %v1966
        %v1985 = vadd.f32 %v1933, %v1968
        %v1986 = vadd.f32 %v1934, %v1970
        %v1987 = vadd.f32 %v1935, %v1972
        %v1988 = vadd.f32 %v1936, %v1974
        %v1989 = vadd.f32 %v1937, %v1976
        %v1990 = vsub.f32 %v666, %v1808
        %v1991 = vsub.f32 %v672, %v1809
        %v1992 = vsub.f32 %v678, %v1810
        %v1993 = vsub.f32 %v684, %v1811
        %v1994 = vsub.f32 %v690, %v1812
        %v1995 = vsub.f32 %v696, %v1813
        %v1996 = vsub.f32 %v702, %v1814
        %v1997 = vsub.f32 %v708, %v1815
        %v1998 = vsub.f32 %v714, %v1816
        %v1999 = vsub.f32 %v720, %v1817
        %v2000 = vsub.f32 %v726, %v1818
        %v2001 = vsub.f32 %v732, %v1819
        %v2002 = vsub.f32 %v738, %v1820
        %v2003 = vmul.f32 %v1990, 1.442695
        %v2004 = vpow.pop %v2003
        %v2005 = vmul.f32 %v1991, 1.442695
        %v2006 = vpow.pop %v2005
        %v2007 = vmul.f32 %v1992, 1.442695
        %v2008 = vpow.pop %v2007
        %v2009 = vmul.f32 %v1993, 1.442695
        %v2010 = vpow.pop %v2009
        %v2011 = vmul.f32 %v1994, 1.442695
        %v2012 = vpow.pop %v2011
        %v2013 = vmul.f32 %v1995, 1.442695
        %v2014 = vpow.pop %v2013
        %v2015 = vmul.f32 %v1996, 1.442695
        %v2016 = vpow.pop %v2015
        %v2017 = vmul.f32 %v1997, 1.442695
        %v2018 = vpow.pop %v2017
        %v2019 = vmul.f32 %v1998, 1.442695
        %v2020 = vpow.pop %v2019
        %v2021 = vmul.f32 %v1999, 1.442695
        %v2022 = vpow.pop %v2021
        %v2023 = vmul.f32 %v2000, 1.442695
        %v2024 = vpow.pop %v2023
        %v2025 = vmul.f32 %v2001, 1.442695
        %v2026 = vpow.pop %v2025
        %v2027 = vmul.f32 %v2002, 1.442695
        %v2028 = vpow.pop %v2027
        %v2029 = vadd.f32 %v1977, %v2004
        %v2030 = vadd.f32 %v1978, %v2006
        %v2031 = vadd.f32 %v1979, %v2008
        %v2032 = vadd.f32 %v1980, %v2010
        %v2033 = vadd.f32 %v1981, %v2012
        %v2034 = vadd.f32 %v1982, %v2014
        %v2035 = vadd.f32 %v1983, %v2016
        %v2036 = vadd.f32 %v1984, %v2018
        %v2037 = vadd.f32 %v1985, %v2020
        %v2038 = vadd.f32 %v1986, %v2022
        %v2039 = vadd.f32 %v1987, %v2024
        %v2040 = vadd.f32 %v1988, %v2026
        %v2041 = vadd.f32 %v1989, %v2028
        %v2042 = vsub.f32 %v668, %v1808
        %v2043 = vsub.f32 %v674, %v1809
        %v2044 = vsub.f32 %v680, %v1810
        %v2045 = vsub.f32 %v686, %v1811
        %v2046 = vsub.f32 %v692, %v1812
        %v2047 = vsub.f32 %v698, %v1813
        %v2048 = vsub.f32 %v704, %v1814
        %v2049 = vsub.f32 %v710, %v1815
        %v2050 = vsub.f32 %v716, %v1816
        %v2051 = vsub.f32 %v722, %v1817
        %v2052 = vsub.f32 %v728, %v1818
        %v2053 = vsub.f32 %v734, %v1819
        %v2054 = vsub.f32 %v740, %v1820
        %v2055 = vmul.f32 %v2042, 1.442695
        %v2056 = vpow.pop %v2055
        %v2057 = vmul.f32 %v2043, 1.442695
        %v2058 = vpow.pop %v2057
        %v2059 = vmul.f32 %v2044, 1.442695
        %v2060 = vpow.pop %v2059
        %v2061 = vmul.f32 %v2045, 1.442695
        %v2062 = vpow.pop %v2061
        %v2063 = vmul.f32 %v2046, 1.442695
        %v2064 = vpow.pop %v2063
        %v2065 = vmul.f32 %v2047, 1.442695
        %v2066 = vpow.pop %v2065
        %v2067 = vmul.f32 %v2048, 1.442695
        %v2068 = vpow.pop %v2067
        %v2069 = vmul.f32 %v2049, 1.442695
        %v2070 = vpow.pop %v2069
        %v2071 = vmul.f32 %v2050, 1.442695
        %v2072 = vpow.pop %v2071
        %v2073 = vmul.f32 %v2051, 1.442695
        %v2074 = vpow.pop %v2073
        %v2075 = vmul.f32 %v2052, 1.442695
        %v2076 = vpow.pop %v2075
        %v2077 = vmul.f32 %v2053, 1.442695
        %v2078 = vpow.pop %v2077
        %v2079 = vmul.f32 %v2054, 1.442695
        %v2080 = vpow.pop %v2079
        %v2081 = vadd.f32 %v2029, %v2056
        %v2082 = vadd.f32 %v2030, %v2058
        %v2083 = vadd.f32 %v2031, %v2060
        %v2084 = vadd.f32 %v2032, %v2062
        %v2085 = vadd.f32 %v2033, %v2064
        %v2086 = vadd.f32 %v2034, %v2066
        %v2087 = vadd.f32 %v2035, %v2068
        %v2088 = vadd.f32 %v2036, %v2070
        %v2089 = vadd.f32 %v2037, %v2072
        %v2090 = vadd.f32 %v2038, %v2074
        %v2091 = vadd.f32 %v2039, %v2076
        %v2092 = vadd.f32 %v2040, %v2078
        %v2093 = vadd.f32 %v2041, %v2080
        %v2094 = vsub.f32 %v809, %v1808
        %v2095 = vsub.f32 %v815, %v1809
        %v2096 = vsub.f32 %v821, %v1810
        %v2097 = vsub.f32 %v827, %v1811
        %v2098 = vsub.f32 %v833, %v1812
        %v2099 = vsub.f32 %v839, %v1813
        %v2100 = vsub.f32 %v845, %v1814
        %v2101 = vsub.f32 %v851, %v1815
        %v2102 = vsub.f32 %v857, %v1816
        %v2103 = vsub.f32 %v863, %v1817
        %v2104 = vsub.f32 %v869, %v1818
        %v2105 = vsub.f32 %v875, %v1819
        %v2106 = vsub.f32 %v881, %v1820
        %v2107 = vmul.f32 %v2094, 1.442695
        %v2108 = vpow.pop %v2107
        %v2109 = vmul.f32 %v2095, 1.442695
        %v2110 = vpow.pop %v2109
        %v2111 = vmul.f32 %v2096, 1.442695
        %v2112 = vpow.pop %v2111
        %v2113 = vmul.f32 %v2097, 1.442695
        %v2114 = vpow.pop %v2113
        %v2115 = vmul.f32 %v2098, 1.442695
        %v2116 = vpow.pop %v2115
        %v2117 = vmul.f32 %v2099, 1.442695
        %v2118 = vpow.pop %v2117
        %v2119 = vmul.f32 %v2100, 1.442695
        %v2120 = vpow.pop %v2119
        %v2121 = vmul.f32 %v2101, 1.442695
        %v2122 = vpow.pop %v2121
        %v2123 = vmul.f32 %v2102, 1.442695
        %v2124 = vpow.pop %v2123
        %v2125 = vmul.f32 %v2103, 1.442695
        %v2126 = vpow.pop %v2125
        %v2127 = vmul.f32 %v2104, 1.442695
        %v2128 = vpow.pop %v2127
        %v2129 = vmul.f32 %v2105, 1.442695
        %v2130 = vpow.pop %v2129
        %v2131 = vmul.f32 %v2106, 1.442695
        %v2132 = vpow.pop %v2131
        %v2133 = vadd.f32 %v2081, %v2108
        %v2134 = vadd.f32 %v2082, %v2110
        %v2135 = vadd.f32 %v2083, %v2112
        %v2136 = vadd.f32 %v2084, %v2114
        %v2137 = vadd.f32 %v2085, %v2116
        %v2138 = vadd.f32 %v2086, %v2118
        %v2139 = vadd.f32 %v2087, %v2120
        %v2140 = vadd.f32 %v2088, %v2122
        %v2141 = vadd.f32 %v2089, %v2124
        %v2142 = vadd.f32 %v2090, %v2126
        %v2143 = vadd.f32 %v2091, %v2128
        %v2144 = vadd.f32 %v2092, %v2130
        %v2145 = vadd.f32 %v2093, %v2132
        %v2146 = vsub.f32 %v811, %v1808
        %v2147 = vsub.f32 %v817, %v1809
        %v2148 = vsub.f32 %v823, %v1810
        %v2149 = vsub.f32 %v829, %v1811
        %v2150 = vsub.f32 %v835, %v1812
        %v2151 = vsub.f32 %v841, %v1813
        %v2152 = vsub.f32 %v847, %v1814
        %v2153 = vsub.f32 %v853, %v1815
        %v2154 = vsub.f32 %v859, %v1816
        %v2155 = vsub.f32 %v865, %v1817
        %v2156 = vsub.f32 %v871, %v1818
        %v2157 = vsub.f32 %v877, %v1819
        %v2158 = vsub.f32 %v883, %v1820
        %v2159 = vmul.f32 %v2146, 1.442695
        %v2160 = vpow.pop %v2159
        %v2161 = vmul.f32 %v2147, 1.442695
        %v2162 = vpow.pop %v2161
        %v2163 = vmul.f32 %v2148, 1.442695
        %v2164 = vpow.pop %v2163
        %v2165 = vmul.f32 %v2149, 1.442695
        %v2166 = vpow.pop %v2165
        %v2167 = vmul.f32 %v2150, 1.442695
        %v2168 = vpow.pop %v2167
        %v2169 = vmul.f32 %v2151, 1.442695
        %v2170 = vpow.pop %v2169
        %v2171 = vmul.f32 %v2152, 1.442695
        %v2172 = vpow.pop %v2171
        %v2173 = vmul.f32 %v2153, 1.442695
        %v2174 = vpow.pop %v2173
        %v2175 = vmul.f32 %v2154, 1.442695
        %v2176 = vpow.pop %v2175
        %v2177 = vmul.f32 %v2155, 1.442695
        %v2178 = vpow.pop %v2177
        %v2179 = vmul.f32 %v2156, 1.442695
        %v2180 = vpow.pop %v2179
        %v2181 = vmul.f32 %v2157, 1.442695
        %v2182 = vpow.pop %v2181
        %v2183 = vmul.f32 %v2158, 1.442695
        %v2184 = vpow.pop %v2183
        %v2185 = vadd.f32 %v2133, %v2160
        %v2186 = vadd.f32 %v2134, %v2162
        %v2187 = vadd.f32 %v2135, %v2164
        %v2188 = vadd.f32 %v2136, %v2166
        %v2189 = vadd.f32 %v2137, %v2168
        %v2190 = vadd.f32 %v2138, %v2170
        %v2191 = vadd.f32 %v2139, %v2172
        %v2192 = vadd.f32 %v2140, %v2174
        %v2193 = vadd.f32 %v2141, %v2176
        %v2194 = vadd.f32 %v2142, %v2178
        %v2195 = vadd.f32 %v2143, %v2180
        %v2196 = vadd.f32 %v2144, %v2182
        %v2197 = vadd.f32 %v2145, %v2184
        %v2198 = vsub.f32 %v952, %v1808
        %v2199 = vsub.f32 %v958, %v1809
        %v2200 = vsub.f32 %v964, %v1810
        %v2201 = vsub.f32 %v970, %v1811
        %v2202 = vsub.f32 %v976, %v1812
        %v2203 = vsub.f32 %v982, %v1813
        %v2204 = vsub.f32 %v988, %v1814
        %v2205 = vsub.f32 %v994, %v1815
        %v2206 = vsub.f32 %v1000, %v1816
        %v2207 = vsub.f32 %v1006, %v1817
        %v2208 = vsub.f32 %v1012, %v1818
        %v2209 = vsub.f32 %v1018, %v1819
        %v2210 = vsub.f32 %v1024, %v1820
        %v2211 = vmul.f32 %v2198, 1.442695
        %v2212 = vpow.pop %v2211
        %v2213 = vmul.f32 %v2199, 1.442695
        %v2214 = vpow.pop %v2213
        %v2215 = vmul.f32 %v2200, 1.442695
        %v2216 = vpow.pop %v2215
        %v2217 = vmul.f32 %v2201, 1.442695
        %v2218 = vpow.pop %v2217
        %v2219 = vmul.f32 %v2202, 1.442695
        %v2220 = vpow.pop %v2219
        %v2221 = vmul.f32 %v2203, 1.442695
        %v2222 = vpow.pop %v2221
        %v2223 = vmul.f32 %v2204, 1.442695
        %v2224 = vpow.pop %v2223
        %v2225 = vmul.f32 %v2205, 1.442695
        %v2226 = vpow.pop %v2225
        %v2227 = vmul.f32 %v2206, 1.442695
        %v2228 = vpow.pop %v2227
        %v2229 = vmul.f32 %v2207, 1.442695
        %v2230 = vpow.pop %v2229
        %v2231 = vmul.f32 %v2208, 1.442695
        %v2232 = vpow.pop %v2231
        %v2233 = vmul.f32 %v2209, 1.442695
        %v2234 = vpow.pop %v2233
        %v2235 = vmul.f32 %v2210, 1.442695
        %v2236 = vpow.pop %v2235
        %v2237 = vadd.f32 %v2185, %v2212
        %v2238 = vadd.f32 %v2186, %v2214
        %v2239 = vadd.f32 %v2187, %v2216
        %v2240 = vadd.f32 %v2188, %v2218
        %v2241 = vadd.f32 %v2189, %v2220
        %v2242 = vadd.f32 %v2190, %v2222
        %v2243 = vadd.f32 %v2191, %v2224
        %v2244 = vadd.f32 %v2192, %v2226
        %v2245 = vadd.f32 %v2193, %v2228
        %v2246 = vadd.f32 %v2194, %v2230
        %v2247 = vadd.f32 %v2195, %v2232
        %v2248 = vadd.f32 %v2196, %v2234
        %v2249 = vadd.f32 %v2197, %v2236
        %v2250 = vsub.f32 %v954, %v1808
        %v2251 = vsub.f32 %v960, %v1809
        %v2252 = vsub.f32 %v966, %v1810
        %v2253 = vsub.f32 %v972, %v1811
        %v2254 = vsub.f32 %v978, %v1812
        %v2255 = vsub.f32 %v984, %v1813
        %v2256 = vsub.f32 %v990, %v1814
        %v2257 = vsub.f32 %v996, %v1815
        %v2258 = vsub.f32 %v1002, %v1816
        %v2259 = vsub.f32 %v1008, %v1817
        %v2260 = vsub.f32 %v1014, %v1818
        %v2261 = vsub.f32 %v1020, %v1819
        %v2262 = vsub.f32 %v1026, %v1820
        %v2263 = vmul.f32 %v2250, 1.442695
        %v2264 = vpow.pop %v2263
        %v2265 = vmul.f32 %v2251, 1.442695
        %v2266 = vpow.pop %v2265
        %v2267 = vmul.f32 %v2252, 1.442695
        %v2268 = vpow.pop %v2267
        %v2269 = vmul.f32 %v2253, 1.442695
        %v2270 = vpow.pop %v2269
        %v2271 = vmul.f32 %v2254, 1.442695
        %v2272 = vpow.pop %v2271
        %v2273 = vmul.f32 %v2255, 1.442695
        %v2274 = vpow.pop %v2273
        %v2275 = vmul.f32 %v2256, 1.442695
        %v2276 = vpow.pop %v2275
        %v2277 = vmul.f32 %v2257, 1.442695
        %v2278 = vpow.pop %v2277
        %v2279 = vmul.f32 %v2258, 1.442695
        %v2280 = vpow.pop %v2279
        %v2281 = vmul.f32 %v2259, 1.442695
        %v2282 = vpow.pop %v2281
        %v2283 = vmul.f32 %v2260, 1.442695
        %v2284 = vpow.pop %v2283
        %v2285 = vmul.f32 %v2261, 1.442695
        %v2286 = vpow.pop %v2285
        %v2287 = vmul.f32 %v2262, 1.442695
        %v2288 = vpow.pop %v2287
        %v2289 = vadd.f32 %v2237, %v2264
        %v2290 = vadd.f32 %v2238, %v2266
        %v2291 = vadd.f32 %v2239, %v2268
        %v2292 = vadd.f32 %v2240, %v2270
        %v2293 = vadd.f32 %v2241, %v2272
        %v2294 = vadd.f32 %v2242, %v2274
        %v2295 = vadd.f32 %v2243, %v2276
        %v2296 = vadd.f32 %v2244, %v2278
        %v2297 = vadd.f32 %v2245, %v2280
        %v2298 = vadd.f32 %v2246, %v2282
        %v2299 = vadd.f32 %v2247, %v2284
        %v2300 = vadd.f32 %v2248, %v2286
        %v2301 = vadd.f32 %v2249, %v2288
        %v2302 = vsub.f32 %v1095, %v1808
        %v2303 = vsub.f32 %v1101, %v1809
        %v2304 = vsub.f32 %v1107, %v1810
        %v2305 = vsub.f32 %v1113, %v1811
        %v2306 = vsub.f32 %v1119, %v1812
        %v2307 = vsub.f32 %v1125, %v1813
        %v2308 = vsub.f32 %v1131, %v1814
        %v2309 = vsub.f32 %v1137, %v1815
        %v2310 = vsub.f32 %v1143, %v1816
        %v2311 = vsub.f32 %v1149, %v1817
        %v2312 = vsub.f32 %v1155, %v1818
        %v2313 = vsub.f32 %v1161, %v1819
        %v2314 = vsub.f32 %v1167, %v1820
        %v2315 = vmul.f32 %v2302, 1.442695
        %v2316 = vpow.pop %v2315
        %v2317 = vmul.f32 %v2303, 1.442695
        %v2318 = vpow.pop %v2317
        %v2319 = vmul.f32 %v2304, 1.442695
        %v2320 = vpow.pop %v2319
        %v2321 = vmul.f32 %v2305, 1.442695
        %v2322 = vpow.pop %v2321
        %v2323 = vmul.f32 %v2306, 1.442695
        %v2324 = vpow.pop %v2323
        %v2325 = vmul.f32 %v2307, 1.442695
        %v2326 = vpow.pop %v2325
        %v2327 = vmul.f32 %v2308, 1.442695
        %v2328 = vpow.pop %v2327
        %v2329 = vmul.f32 %v2309, 1.442695
        %v2330 = vpow.pop %v2329
        %v2331 = vmul.f32 %v2310, 1.442695
        %v2332 = vpow.pop %v2331
        %v2333 = vmul.f32 %v2311, 1.442695
        %v2334 = vpow.pop %v2333
        %v2335 = vmul.f32 %v2312, 1.442695
        %v2336 = vpow.pop %v2335
        %v2337 = vmul.f32 %v2313, 1.442695
        %v2338 = vpow.pop %v2337
        %v2339 = vmul.f32 %v2314, 1.442695
        %v2340 = vpow.pop %v2339
        %v2341 = vadd.f32 %v2289, %v2316
        %v2342 = vadd.f32 %v2290, %v2318
        %v2343 = vadd.f32 %v2291, %v2320
        %v2344 = vadd.f32 %v2292, %v2322
        %v2345 = vadd.f32 %v2293, %v2324
        %v2346 = vadd.f32 %v2294, %v2326
        %v2347 = vadd.f32 %v2295, %v2328
        %v2348 = vadd.f32 %v2296, %v2330
        %v2349 = vadd.f32 %v2297, %v2332
        %v2350 = vadd.f32 %v2298, %v2334
        %v2351 = vadd.f32 %v2299, %v2336
        %v2352 = vadd.f32 %v2300, %v2338
        %v2353 = vadd.f32 %v2301, %v2340
        %v2354 = vsub.f32 %v1097, %v1808
        %v2355 = vsub.f32 %v1103, %v1809
        %v2356 = vsub.f32 %v1109, %v1810
        %v2357 = vsub.f32 %v1115, %v1811
        %v2358 = vsub.f32 %v1121, %v1812
        %v2359 = vsub.f32 %v1127, %v1813
        %v2360 = vsub.f32 %v1133, %v1814
        %v2361 = vsub.f32 %v1139, %v1815
        %v2362 = vsub.f32 %v1145, %v1816
        %v2363 = vsub.f32 %v1151, %v1817
        %v2364 = vsub.f32 %v1157, %v1818
        %v2365 = vsub.f32 %v1163, %v1819
        %v2366 = vsub.f32 %v1169, %v1820
        %v2367 = vmul.f32 %v2354, 1.442695
        %v2368 = vpow.pop %v2367
        %v2369 = vmul.f32 %v2355, 1.442695
        %v2370 = vpow.pop %v2369
        %v2371 = vmul.f32 %v2356, 1.442695
        %v2372 = vpow.pop %v2371
        %v2373 = vmul.f32 %v2357, 1.442695
        %v2374 = vpow.pop %v2373
        %v2375 = vmul.f32 %v2358, 1.442695
        %v2376 = vpow.pop %v2375
        %v2377 = vmul.f32 %v2359, 1.442695
        %v2378 = vpow.pop %v2377
        %v2379 = vmul.f32 %v2360, 1.442695
        %v2380 = vpow.pop %v2379
        %v2381 = vmul.f32 %v2361, 1.442695
        %v2382 = vpow.pop %v2381
        %v2383 = vmul.f32 %v2362, 1.442695
        %v2384 = vpow.pop %v2383
        %v2385 = vmul.f32 %v2363, 1.442695
        %v2386 = vpow.pop %v2385
        %v2387 = vmul.f32 %v2364, 1.442695
        %v2388 = vpow.pop %v2387
        %v2389 = vmul.f32 %v2365, 1.442695
        %v2390 = vpow.pop %v2389
        %v2391 = vmul.f32 %v2366, 1.442695
        %v2392 = vpow.pop %v2391
        %v2393 = vadd.f32 %v2341, %v2368
        %v2394 = vadd.f32 %v2342, %v2370
        %v2395 = vadd.f32 %v2343, %v2372
        %v2396 = vadd.f32 %v2344, %v2374
        %v2397 = vadd.f32 %v2345, %v2376
        %v2398 = vadd.f32 %v2346, %v2378
        %v2399 = vadd.f32 %v2347, %v2380
        %v2400 = vadd.f32 %v2348, %v2382
        %v2401 = vadd.f32 %v2349, %v2384
        %v2402 = vadd.f32 %v2350, %v2386
        %v2403 = vadd.f32 %v2351, %v2388
        %v2404 = vadd.f32 %v2352, %v2390
        %v2405 = vadd.f32 %v2353, %v2392
        %v2406 = vsub.f32 %v1238, %v1808
        %v2407 = vsub.f32 %v1244, %v1809
        %v2408 = vsub.f32 %v1250, %v1810
        %v2409 = vsub.f32 %v1256, %v1811
        %v2410 = vsub.f32 %v1262, %v1812
        %v2411 = vsub.f32 %v1268, %v1813
        %v2412 = vsub.f32 %v1274, %v1814
        %v2413 = vsub.f32 %v1280, %v1815
        %v2414 = vsub.f32 %v1286, %v1816
        %v2415 = vsub.f32 %v1292, %v1817
        %v2416 = vsub.f32 %v1298, %v1818
        %v2417 = vsub.f32 %v1304, %v1819
        %v2418 = vsub.f32 %v1310, %v1820
        %v2419 = vmul.f32 %v2406, 1.442695
        %v2420 = vpow.pop %v2419
        %v2421 = vmul.f32 %v2407, 1.442695
        %v2422 = vpow.pop %v2421
        %v2423 = vmul.f32 %v2408, 1.442695
        %v2424 = vpow.pop %v2423
        %v2425 = vmul.f32 %v2409, 1.442695
        %v2426 = vpow.pop %v2425
        %v2427 = vmul.f32 %v2410, 1.442695
        %v2428 = vpow.pop %v2427
        %v2429 = vmul.f32 %v2411, 1.442695
        %v2430 = vpow.pop %v2429
        %v2431 = vmul.f32 %v2412, 1.442695
        %v2432 = vpow.pop %v2431
        %v2433 = vmul.f32 %v2413, 1.442695
        %v2434 = vpow.pop %v2433
        %v2435 = vmul.f32 %v2414, 1.442695
        %v2436 = vpow.pop %v2435
        %v2437 = vmul.f32 %v2415, 1.442695
        %v2438 = vpow.pop %v2437
        %v2439 = vmul.f32 %v2416, 1.442695
        %v2440 = vpow.pop %v2439
        %v2441 = vmul.f32 %v2417, 1.442695
        %v2442 = vpow.pop %v2441
        %v2443 = vmul.f32 %v2418, 1.442695
        %v2444 = vpow.pop %v2443
        %v2445 = vadd.f32 %v2393, %v2420
        %v2446 = vadd.f32 %v2394, %v2422
        %v2447 = vadd.f32 %v2395, %v2424
        %v2448 = vadd.f32 %v2396, %v2426
        %v2449 = vadd.f32 %v2397, %v2428
        %v2450 = vadd.f32 %v2398, %v2430
        %v2451 = vadd.f32 %v2399, %v2432
        %v2452 = vadd.f32 %v2400, %v2434
        %v2453 = vadd.f32 %v2401, %v2436
        %v2454 = vadd.f32 %v2402, %v2438
        %v2455 = vadd.f32 %v2403, %v2440
        %v2456 = vadd.f32 %v2404, %v2442
        %v2457 = vadd.f32 %v2405, %v2444
        %v2458 = vsub.f32 %v1240, %v1808
        %v2459 = vsub.f32 %v1246, %v1809
        %v2460 = vsub.f32 %v1252, %v1810
        %v2461 = vsub.f32 %v1258, %v1811
        %v2462 = vsub.f32 %v1264, %v1812
        %v2463 = vsub.f32 %v1270, %v1813
        %v2464 = vsub.f32 %v1276, %v1814
        %v2465 = vsub.f32 %v1282, %v1815
        %v2466 = vsub.f32 %v1288, %v1816
        %v2467 = vsub.f32 %v1294, %v1817
        %v2468 = vsub.f32 %v1300, %v1818
        %v2469 = vsub.f32 %v1306, %v1819
        %v2470 = vsub.f32 %v1312, %v1820
        %v2471 = vmul.f32 %v2458, 1.442695
        %v2472 = vpow.pop %v2471
        %v2473 = vmul.f32 %v2459, 1.442695
        %v2474 = vpow.pop %v2473
        %v2475 = vmul.f32 %v2460, 1.442695
        %v2476 = vpow.pop %v2475
        %v2477 = vmul.f32 %v2461, 1.442695
        %v2478 = vpow.pop %v2477
        %v2479 = vmul.f32 %v2462, 1.442695
        %v2480 = vpow.pop %v2479
        %v2481 = vmul.f32 %v2463, 1.442695
        %v2482 = vpow.pop %v2481
        %v2483 = vmul.f32 %v2464, 1.442695
        %v2484 = vpow.pop %v2483
        %v2485 = vmul.f32 %v2465, 1.442695
        %v2486 = vpow.pop %v2485
        %v2487 = vmul.f32 %v2466, 1.442695
        %v2488 = vpow.pop %v2487
        %v2489 = vmul.f32 %v2467, 1.442695
        %v2490 = vpow.pop %v2489
        %v2491 = vmul.f32 %v2468, 1.442695
        %v2492 = vpow.pop %v2491
        %v2493 = vmul.f32 %v2469, 1.442695
        %v2494 = vpow.pop %v2493
        %v2495 = vmul.f32 %v2470, 1.442695
        %v2496 = vpow.pop %v2495
        %v2497 = vadd.f32 %v2445, %v2472
        %v2498 = vadd.f32 %v2446, %v2474
        %v2499 = vadd.f32 %v2447, %v2476
        %v2500 = vadd.f32 %v2448, %v2478
        %v2501 = vadd.f32 %v2449, %v2480
        %v2502 = vadd.f32 %v2450, %v2482
        %v2503 = vadd.f32 %v2451, %v2484
        %v2504 = vadd.f32 %v2452, %v2486
        %v2505 = vadd.f32 %v2453, %v2488
        %v2506 = vadd.f32 %v2454, %v2490
        %v2507 = vadd.f32 %v2455, %v2492
        %v2508 = vadd.f32 %v2456, %v2494
        %v2509 = vadd.f32 %v2457, %v2496
        %v2510 = vsub.f32 %v1381, %v1808
        %v2511 = vsub.f32 %v1387, %v1809
        %v2512 = vsub.f32 %v1393, %v1810
        %v2513 = vsub.f32 %v1399, %v1811
        %v2514 = vsub.f32 %v1405, %v1812
        %v2515 = vsub.f32 %v1411, %v1813
        %v2516 = vsub.f32 %v1417, %v1814
        %v2517 = vsub.f32 %v1423, %v1815
        %v2518 = vsub.f32 %v1429, %v1816
        %v2519 = vsub.f32 %v1435, %v1817
        %v2520 = vsub.f32 %v1441, %v1818
        %v2521 = vsub.f32 %v1447, %v1819
        %v2522 = vsub.f32 %v1453, %v1820
        %v2523 = vmul.f32 %v2510, 1.442695
        %v2524 = vpow.pop %v2523
        %v2525 = vmul.f32 %v2511, 1.442695
        %v2526 = vpow.pop %v2525
        %v2527 = vmul.f32 %v2512, 1.442695
        %v2528 = vpow.pop %v2527
        %v2529 = vmul.f32 %v2513, 1.442695
        %v2530 = vpow.pop %v2529
        %v2531 = vmul.f32 %v2514, 1.442695
        %v2532 = vpow.pop %v2531
        %v2533 = vmul.f32 %v2515, 1.442695
        %v2534 = vpow.pop %v2533
        %v2535 = vmul.f32 %v2516, 1.442695
        %v2536 = vpow.pop %v2535
        %v2537 = vmul.f32 %v2517, 1.442695
        %v2538 = vpow.pop %v2537
        %v2539 = vmul.f32 %v2518, 1.442695
        %v2540 = vpow.pop %v2539
        %v2541 = vmul.f32 %v2519, 1.442695
        %v2542 = vpow.pop %v2541
        %v2543 = vmul.f32 %v2520, 1.442695
        %v2544 = vpow.pop %v2543
        %v2545 = vmul.f32 %v2521, 1.442695
        %v2546 = vpow.pop %v2545
        %v2547 = vmul.f32 %v2522, 1.442695
        %v2548 = vpow.pop %v2547
        %v2549 = vadd.f32 %v2497, %v2524
        %v2550 = vadd.f32 %v2498, %v2526
        %v2551 = vadd.f32 %v2499, %v2528
        %v2552 = vadd.f32 %v2500, %v2530
        %v2553 = vadd.f32 %v2501, %v2532
        %v2554 = vadd.f32 %v2502, %v2534
        %v2555 = vadd.f32 %v2503, %v2536
        %v2556 = vadd.f32 %v2504, %v2538
        %v2557 = vadd.f32 %v2505, %v2540
        %v2558 = vadd.f32 %v2506, %v2542
        %v2559 = vadd.f32 %v2507, %v2544
        %v2560 = vadd.f32 %v2508, %v2546
        %v2561 = vadd.f32 %v2509, %v2548
        %v2562 = vsub.f32 %v1383, %v1808
        %v2563 = vsub.f32 %v1389, %v1809
        %v2564 = vsub.f32 %v1395, %v1810
        %v2565 = vsub.f32 %v1401, %v1811
        %v2566 = vsub.f32 %v1407, %v1812
        %v2567 = vsub.f32 %v1413, %v1813
        %v2568 = vsub.f32 %v1419, %v1814
        %v2569 = vsub.f32 %v1425, %v1815
        %v2570 = vsub.f32 %v1431, %v1816
        %v2571 = vsub.f32 %v1437, %v1817
        %v2572 = vsub.f32 %v1443, %v1818
        %v2573 = vsub.f32 %v1449, %v1819
        %v2574 = vsub.f32 %v1455, %v1820
        %v2575 = vmul.f32 %v2562, 1.442695
        %v2576 = vpow.pop %v2575
        %v2577 = vmul.f32 %v2563, 1.442695
        %v2578 = vpow.pop %v2577
        %v2579 = vmul.f32 %v2564, 1.442695
        %v2580 = vpow.pop %v2579
        %v2581 = vmul.f32 %v2565, 1.442695
        %v2582 = vpow.pop %v2581
        %v2583 = vmul.f32 %v2566, 1.442695
        %v2584 = vpow.pop %v2583
        %v2585 = vmul.f32 %v2567, 1.442695
        %v2586 = vpow.pop %v2585
        %v2587 = vmul.f32 %v2568, 1.442695
        %v2588 = vpow.pop %v2587
        %v2589 = vmul.f32 %v2569, 1.442695
        %v2590 = vpow.pop %v2589
        %v2591 = vmul.f32 %v2570, 1.442695
        %v2592 = vpow.pop %v2591
        %v2593 = vmul.f32 %v2571, 1.442695
        %v2594 = vpow.pop %v2593
        %v2595 = vmul.f32 %v2572, 1.442695
        %v2596 = vpow.pop %v2595
        %v2597 = vmul.f32 %v2573, 1.442695
        %v2598 = vpow.pop %v2597
        %v2599 = vmul.f32 %v2574, 1.442695
        %v2600 = vpow.pop %v2599
        %v2601 = vadd.f32 %v2549, %v2576
        %v2602 = vadd.f32 %v2550, %v2578
        %v2603 = vadd.f32 %v2551, %v2580
        %v2604 = vadd.f32 %v2552, %v2582
        %v2605 = vadd.f32 %v2553, %v2584
        %v2606 = vadd.f32 %v2554, %v2586
        %v2607 = vadd.f32 %v2555, %v2588
        %v2608 = vadd.f32 %v2556, %v2590
        %v2609 = vadd.f32 %v2557, %v2592
        %v2610 = vadd.f32 %v2558, %v2594
        %v2611 = vadd.f32 %v2559, %v2596
        %v2612 = vadd.f32 %v2560, %v2598
        %v2613 = vadd.f32 %v2561, %v2600
        %v2614 = vsub.f32 %v1524, %v1808
        %v2615 = vsub.f32 %v1530, %v1809
        %v2616 = vsub.f32 %v1536, %v1810
        %v2617 = vsub.f32 %v1542, %v1811
        %v2618 = vsub.f32 %v1548, %v1812
        %v2619 = vsub.f32 %v1554, %v1813
        %v2620 = vsub.f32 %v1560, %v1814
        %v2621 = vsub.f32 %v1566, %v1815
        %v2622 = vsub.f32 %v1572, %v1816
        %v2623 = vsub.f32 %v1578, %v1817
        %v2624 = vsub.f32 %v1584, %v1818
        %v2625 = vsub.f32 %v1590, %v1819
        %v2626 = vsub.f32 %v1596, %v1820
        %v2627 = vmul.f32 %v2614, 1.442695
        %v2628 = vpow.pop %v2627
        %v2629 = vmul.f32 %v2615, 1.442695
        %v2630 = vpow.pop %v2629
        %v2631 = vmul.f32 %v2616, 1.442695
        %v2632 = vpow.pop %v2631
        %v2633 = vmul.f32 %v2617, 1.442695
        %v2634 = vpow.pop %v2633
        %v2635 = vmul.f32 %v2618, 1.442695
        %v2636 = vpow.pop %v2635
        %v2637 = vmul.f32 %v2619, 1.442695
        %v2638 = vpow.pop %v2637
        %v2639 = vmul.f32 %v2620, 1.442695
        %v2640 = vpow.pop %v2639
        %v2641 = vmul.f32 %v2621, 1.442695
        %v2642 = vpow.pop %v2641
        %v2643 = vmul.f32 %v2622, 1.442695
        %v2644 = vpow.pop %v2643
        %v2645 = vmul.f32 %v2623, 1.442695
        %v2646 = vpow.pop %v2645
        %v2647 = vmul.f32 %v2624, 1.442695
        %v2648 = vpow.pop %v2647
        %v2649 = vmul.f32 %v2625, 1.442695
        %v2650 = vpow.pop %v2649
        %v2651 = vmul.f32 %v2626, 1.442695
        %v2652 = vpow.pop %v2651
        %v2653 = vadd.f32 %v2601, %v2628
        %v2654 = vadd.f32 %v2602, %v2630
        %v2655 = vadd.f32 %v2603, %v2632
        %v2656 = vadd.f32 %v2604, %v2634
        %v2657 = vadd.f32 %v2605, %v2636
        %v2658 = vadd.f32 %v2606, %v2638
        %v2659 = vadd.f32 %v2607, %v2640
        %v2660 = vadd.f32 %v2608, %v2642
        %v2661 = vadd.f32 %v2609, %v2644
        %v2662 = vadd.f32 %v2610, %v2646
        %v2663 = vadd.f32 %v2611, %v2648
        %v2664 = vadd.f32 %v2612, %v2650
        %v2665 = vadd.f32 %v2613, %v2652
        %v2666 = vsub.f32 %v1526, %v1808
        %v2667 = vsub.f32 %v1532, %v1809
        %v2668 = vsub.f32 %v1538, %v1810
        %v2669 = vsub.f32 %v1544, %v1811
        %v2670 = vsub.f32 %v1550, %v1812
        %v2671 = vsub.f32 %v1556, %v1813
        %v2672 = vsub.f32 %v1562, %v1814
        %v2673 = vsub.f32 %v1568, %v1815
        %v2674 = vsub.f32 %v1574, %v1816
        %v2675 = vsub.f32 %v1580, %v1817
        %v2676 = vsub.f32 %v1586, %v1818
        %v2677 = vsub.f32 %v1592, %v1819
        %v2678 = vsub.f32 %v1598, %v1820
        %v2679 = vmul.f32 %v2666, 1.442695
        %v2680 = vpow.pop %v2679
        %v2681 = vmul.f32 %v2667, 1.442695
        %v2682 = vpow.pop %v2681
        %v2683 = vmul.f32 %v2668, 1.442695
        %v2684 = vpow.pop %v2683
        %v2685 = vmul.f32 %v2669, 1.442695
        %v2686 = vpow.pop %v2685
        %v2687 = vmul.f32 %v2670, 1.442695
        %v2688 = vpow.pop %v2687
        %v2689 = vmul.f32 %v2671, 1.442695
        %v2690 = vpow.pop %v2689
        %v2691 = vmul.f32 %v2672, 1.442695
        %v2692 = vpow.pop %v2691
        %v2693 = vmul.f32 %v2673, 1.442695
        %v2694 = vpow.pop %v2693
        %v2695 = vmul.f32 %v2674, 1.442695
        %v2696 = vpow.pop %v2695
        %v2697 = vmul.f32 %v2675, 1.442695
        %v2698 = vpow.pop %v2697
        %v2699 = vmul.f32 %v2676, 1.442695
        %v2700 = vpow.pop %v2699
        %v2701 = vmul.f32 %v2677, 1.442695
        %v2702 = vpow.pop %v2701
        %v2703 = vmul.f32 %v2678, 1.442695
        %v2704 = vpow.pop %v2703
        %v2705 = vadd.f32 %v2653, %v2680
        %v2706 = vadd.f32 %v2654, %v2682
        %v2707 = vadd.f32 %v2655, %v2684
        %v2708 = vadd.f32 %v2656, %v2686
        %v2709 = vadd.f32 %v2657, %v2688
        %v2710 = vadd.f32 %v2658, %v2690
        %v2711 = vadd.f32 %v2659, %v2692
        %v2712 = vadd.f32 %v2660, %v2694
        %v2713 = vadd.f32 %v2661, %v2696
        %v2714 = vadd.f32 %v2662, %v2698
        %v2715 = vadd.f32 %v2663, %v2700
        %v2716 = vadd.f32 %v2664, %v2702
        %v2717 = vadd.f32 %v2665, %v2704
        %2718 = vst [vmem:[#allocation3] sm:$0xff] %v2705
        %2719 = vst [vmem:[#allocation3 + $0x8] sm:$0xff] %v2706
        %2720 = vst [vmem:[#allocation3 + $0x10] sm:$0xff] %v2707
        %2721 = vst [vmem:[#allocation3 + $0x18] sm:$0xff] %v2708
        %2722 = vst [vmem:[#allocation3 + $0x20] sm:$0xff] %v2709
        %2723 = vst [vmem:[#allocation3 + $0x28] sm:$0xff] %v2710
        %2724 = vst [vmem:[#allocation3 + $0x30] sm:$0xff] %v2711
        %2725 = vst [vmem:[#allocation3 + $0x38] sm:$0xff] %v2712
        %2726 = vst [vmem:[#allocation3 + $0x40] sm:$0xff] %v2713
        %2727 = vst [vmem:[#allocation3 + $0x48] sm:$0xff] %v2714
        %2728 = vst [vmem:[#allocation3 + $0x50] sm:$0xff] %v2715
        %2729 = vst [vmem:[#allocation3 + $0x58] sm:$0xff] %v2716
        %2730 = vst [vmem:[#allocation3 + $0x60] sm:$0xff] %v2717
        %2731 = vst [vmem:[#allocation2] sm:$0xff] %v1808
        %2732 = vst [vmem:[#allocation2 + $0x8] sm:$0xff] %v1809
        %2733 = vst [vmem:[#allocation2 + $0x10] sm:$0xff] %v1810
        %2734 = vst [vmem:[#allocation2 + $0x18] sm:$0xff] %v1811
        %2735 = vst [vmem:[#allocation2 + $0x20] sm:$0xff] %v1812
        %2736 = vst [vmem:[#allocation2 + $0x28] sm:$0xff] %v1813
        %2737 = vst [vmem:[#allocation2 + $0x30] sm:$0xff] %v1814
        %2738 = vst [vmem:[#allocation2 + $0x38] sm:$0xff] %v1815
        %2739 = vst [vmem:[#allocation2 + $0x40] sm:$0xff] %v1816
        %2740 = vst [vmem:[#allocation2 + $0x48] sm:$0xff] %v1817
        %2741 = vst [vmem:[#allocation2 + $0x50] sm:$0xff] %v1818
        %2742 = vst [vmem:[#allocation2 + $0x58] sm:$0xff] %v1819
        %2743 = vst [vmem:[#allocation2 + $0x60] sm:$0xff] %v1820
        %p2744 = scmp.eq.s32.totalorder %s23, 1
        // Predicated region
        $region41: #{tpu_custom_call.1} parent=31 // pred_check
          %p2745 = pneg %p2744
        $region42: #{tpu_custom_call.1} parent=31 // pred_check_branch
          %2747 = sbr.rel (%p2745) target = $region44
        $region43: #{tpu_custom_call.1} parent=31 // pred_region
          %v2748 = vld [vmem:[#allocation2] sm:$0xff]
          %v2749 = vld [vmem:[#allocation2 + $0x8] sm:$0xff]
          %v2750 = vld [vmem:[#allocation2 + $0x10] sm:$0xff]
          %v2751 = vld [vmem:[#allocation2 + $0x18] sm:$0xff]
          %v2752 = vld [vmem:[#allocation2 + $0x20] sm:$0xff]
          %v2753 = vld [vmem:[#allocation2 + $0x28] sm:$0xff]
          %v2754 = vld [vmem:[#allocation2 + $0x30] sm:$0xff]
          %v2755 = vld [vmem:[#allocation2 + $0x38] sm:$0xff]
          %v2756 = vld [vmem:[#allocation2 + $0x40] sm:$0xff]
          %v2757 = vld [vmem:[#allocation2 + $0x48] sm:$0xff]
          %v2758 = vld [vmem:[#allocation2 + $0x50] sm:$0xff]
          %v2759 = vld [vmem:[#allocation2 + $0x58] sm:$0xff]
          %v2760 = vld [vmem:[#allocation2 + $0x60] sm:$0xff]
          %2761 = vmax.xlane.f32.xlu0 %v2748
          %v2762 = vpop.xlane.xlu0 %2761
          %2763 = vmax.xlane.f32.xlu0 %v2749
          %v2764 = vpop.xlane.xlu0 %2763
          %2765 = vmax.xlane.f32.xlu0 %v2750
          %v2766 = vpop.xlane.xlu0 %2765
          %2767 = vmax.xlane.f32.xlu0 %v2751
          %v2768 = vpop.xlane.xlu0 %2767
          %2769 = vmax.xlane.f32.xlu0 %v2752
          %v2770 = vpop.xlane.xlu0 %2769
          %2771 = vmax.xlane.f32.xlu0 %v2753
          %v2772 = vpop.xlane.xlu0 %2771
          %2773 = vmax.xlane.f32.xlu0 %v2754
          %v2774 = vpop.xlane.xlu0 %2773
          %2775 = vmax.xlane.f32.xlu0 %v2755
          %v2776 = vpop.xlane.xlu0 %2775
          %2777 = vmax.xlane.f32.xlu0 %v2756
          %v2778 = vpop.xlane.xlu0 %2777
          %2779 = vmax.xlane.f32.xlu0 %v2757
          %v2780 = vpop.xlane.xlu0 %2779
          %2781 = vmax.xlane.f32.xlu0 %v2758
          %v2782 = vpop.xlane.xlu0 %2781
          %2783 = vmax.xlane.f32.xlu0 %v2759
          %v2784 = vpop.xlane.xlu0 %2783
          %2785 = vmax.xlane.f32.xlu0 %v2760
          %v2786 = vpop.xlane.xlu0 %2785
          %v2787 = vld [vmem:[#allocation3] sm:$0xff]
          %v2788 = vld [vmem:[#allocation3 + $0x8] sm:$0xff]
          %v2789 = vld [vmem:[#allocation3 + $0x10] sm:$0xff]
          %v2790 = vld [vmem:[#allocation3 + $0x18] sm:$0xff]
          %v2791 = vld [vmem:[#allocation3 + $0x20] sm:$0xff]
          %v2792 = vld [vmem:[#allocation3 + $0x28] sm:$0xff]
          %v2793 = vld [vmem:[#allocation3 + $0x30] sm:$0xff]
          %v2794 = vld [vmem:[#allocation3 + $0x38] sm:$0xff]
          %v2795 = vld [vmem:[#allocation3 + $0x40] sm:$0xff]
          %v2796 = vld [vmem:[#allocation3 + $0x48] sm:$0xff]
          %v2797 = vld [vmem:[#allocation3 + $0x50] sm:$0xff]
          %v2798 = vld [vmem:[#allocation3 + $0x58] sm:$0xff]
          %v2799 = vld [vmem:[#allocation3 + $0x60] sm:$0xff]
          %v2800 = vsub.f32 %v2748, %v2762
          %v2801 = vsub.f32 %v2749, %v2764
          %v2802 = vsub.f32 %v2750, %v2766
          %v2803 = vsub.f32 %v2751, %v2768
          %v2804 = vsub.f32 %v2752, %v2770
          %v2805 = vsub.f32 %v2753, %v2772
          %v2806 = vsub.f32 %v2754, %v2774
          %v2807 = vsub.f32 %v2755, %v2776
          %v2808 = vsub.f32 %v2756, %v2778
          %v2809 = vsub.f32 %v2757, %v2780
          %v2810 = vsub.f32 %v2758, %v2782
          %v2811 = vsub.f32 %v2759, %v2784
          %v2812 = vsub.f32 %v2760, %v2786
          %v2813 = vmul.f32 %v2800, 1.442695
          %v2814 = vpow.pop %v2813
          %v2815 = vmul.f32 %v2801, 1.442695
          %v2816 = vpow.pop %v2815
          %v2817 = vmul.f32 %v2802, 1.442695
          %v2818 = vpow.pop %v2817
          %v2819 = vmul.f32 %v2803, 1.442695
          %v2820 = vpow.pop %v2819
          %v2821 = vmul.f32 %v2804, 1.442695
          %v2822 = vpow.pop %v2821
          %v2823 = vmul.f32 %v2805, 1.442695
          %v2824 = vpow.pop %v2823
          %v2825 = vmul.f32 %v2806, 1.442695
          %v2826 = vpow.pop %v2825
          %v2827 = vmul.f32 %v2807, 1.442695
          %v2828 = vpow.pop %v2827
          %v2829 = vmul.f32 %v2808, 1.442695
          %v2830 = vpow.pop %v2829
          %v2831 = vmul.f32 %v2809, 1.442695
          %v2832 = vpow.pop %v2831
          %v2833 = vmul.f32 %v2810, 1.442695
          %v2834 = vpow.pop %v2833
          %v2835 = vmul.f32 %v2811, 1.442695
          %v2836 = vpow.pop %v2835
          %v2837 = vmul.f32 %v2812, 1.442695
          %v2838 = vpow.pop %v2837
          %v2839 = vmul.f32 %v2787, %v2814
          %v2840 = vmul.f32 %v2788, %v2816
          %v2841 = vmul.f32 %v2789, %v2818
          %v2842 = vmul.f32 %v2790, %v2820
          %v2843 = vmul.f32 %v2791, %v2822
          %v2844 = vmul.f32 %v2792, %v2824
          %v2845 = vmul.f32 %v2793, %v2826
          %v2846 = vmul.f32 %v2794, %v2828
          %v2847 = vmul.f32 %v2795, %v2830
          %v2848 = vmul.f32 %v2796, %v2832
          %v2849 = vmul.f32 %v2797, %v2834
          %v2850 = vmul.f32 %v2798, %v2836
          %v2851 = vmul.f32 %v2799, %v2838
          %2852 = vadd.xlane.f32.xlu0 %v2839
          %v2853 = vpop.xlane.xlu0 %2852
          %2854 = vadd.xlane.f32.xlu0 %v2840
          %v2855 = vpop.xlane.xlu0 %2854
          %2856 = vadd.xlane.f32.xlu0 %v2841
          %v2857 = vpop.xlane.xlu0 %2856
          %2858 = vadd.xlane.f32.xlu0 %v2842
          %v2859 = vpop.xlane.xlu0 %2858
          %2860 = vadd.xlane.f32.xlu0 %v2843
          %v2861 = vpop.xlane.xlu0 %2860
          %2862 = vadd.xlane.f32.xlu0 %v2844
          %v2863 = vpop.xlane.xlu0 %2862
          %2864 = vadd.xlane.f32.xlu0 %v2845
          %v2865 = vpop.xlane.xlu0 %2864
          %2866 = vadd.xlane.f32.xlu0 %v2846
          %v2867 = vpop.xlane.xlu0 %2866
          %2868 = vadd.xlane.f32.xlu0 %v2847
          %v2869 = vpop.xlane.xlu0 %2868
          %2870 = vadd.xlane.f32.xlu0 %v2848
          %v2871 = vpop.xlane.xlu0 %2870
          %2872 = vadd.xlane.f32.xlu0 %v2849
          %v2873 = vpop.xlane.xlu0 %2872
          %2874 = vadd.xlane.f32.xlu0 %v2850
          %v2875 = vpop.xlane.xlu0 %2874
          %2876 = vadd.xlane.f32.xlu0 %v2851
          %v2877 = vpop.xlane.xlu0 %2876
          %v2878 = vlog2.pop %v2853
          %v2879 = vmul.f32 %v2878, 0.6931472
          %v2880 = vlog2.pop %v2855
          %v2881 = vmul.f32 %v2880, 0.6931472
          %v2882 = vlog2.pop %v2857
          %v2883 = vmul.f32 %v2882, 0.6931472
          %v2884 = vlog2.pop %v2859
          %v2885 = vmul.f32 %v2884, 0.6931472
          %v2886 = vlog2.pop %v2861
          %v2887 = vmul.f32 %v2886, 0.6931472
          %v2888 = vlog2.pop %v2863
          %v2889 = vmul.f32 %v2888, 0.6931472
          %v2890 = vlog2.pop %v2865
          %v2891 = vmul.f32 %v2890, 0.6931472
          %v2892 = vlog2.pop %v2867
          %v2893 = vmul.f32 %v2892, 0.6931472
          %v2894 = vlog2.pop %v2869
          %v2895 = vmul.f32 %v2894, 0.6931472
          %v2896 = vlog2.pop %v2871
          %v2897 = vmul.f32 %v2896, 0.6931472
          %v2898 = vlog2.pop %v2873
          %v2899 = vmul.f32 %v2898, 0.6931472
          %v2900 = vlog2.pop %v2875
          %v2901 = vmul.f32 %v2900, 0.6931472
          %v2902 = vlog2.pop %v2877
          %v2903 = vmul.f32 %v2902, 0.6931472
          %v2904 = vadd.f32 %v2762, %v2879
          %v2905 = vadd.f32 %v2764, %v2881
          %v2906 = vadd.f32 %v2766, %v2883
          %v2907 = vadd.f32 %v2768, %v2885
          %v2908 = vadd.f32 %v2770, %v2887
          %v2909 = vadd.f32 %v2772, %v2889
          %v2910 = vadd.f32 %v2774, %v2891
          %v2911 = vadd.f32 %v2776, %v2893
          %v2912 = vadd.f32 %v2778, %v2895
          %v2913 = vadd.f32 %v2780, %v2897
          %v2914 = vadd.f32 %v2782, %v2899
          %v2915 = vadd.f32 %v2784, %v2901
          %v2916 = vadd.f32 %v2786, %v2903
          %s2917 = sld [smem:[#allocation4]]
          %v2918 = vstv %s2917
          %v2919 = vadd.f32 %v2904, %v2918
          %v2920 = vadd.f32 %v2905, %v2918
          %v2921 = vadd.f32 %v2906, %v2918
          %v2922 = vadd.f32 %v2907, %v2918
          %v2923 = vadd.f32 %v2908, %v2918
          %v2924 = vadd.f32 %v2909, %v2918
          %v2925 = vadd.f32 %v2910, %v2918
          %v2926 = vadd.f32 %v2911, %v2918
          %v2927 = vadd.f32 %v2912, %v2918
          %v2928 = vadd.f32 %v2913, %v2918
          %v2929 = vadd.f32 %v2914, %v2918
          %v2930 = vadd.f32 %v2915, %v2918
          %v2931 = vadd.f32 %v2916, %v2918
          %vm2932 = vcmask 7168
          %2933 = vst.msk [vmem:[%s226] sm:$0xff] %vm2932, %v2919
          %2934 = vst.msk [vmem:[%s226 + $0x8] sm:$0xff] %vm2932, %v2920
          %2935 = vst.msk [vmem:[%s226 + $0x10] sm:$0xff] %vm2932, %v2921
          %2936 = vst.msk [vmem:[%s226 + $0x18] sm:$0xff] %vm2932, %v2922
          %2937 = vst.msk [vmem:[%s226 + $0x20] sm:$0xff] %vm2932, %v2923
          %2938 = vst.msk [vmem:[%s226 + $0x28] sm:$0xff] %vm2932, %v2924
          %2939 = vst.msk [vmem:[%s226 + $0x30] sm:$0xff] %vm2932, %v2925
          %2940 = vst.msk [vmem:[%s226 + $0x38] sm:$0xff] %vm2932, %v2926
          %2941 = vst.msk [vmem:[%s226 + $0x40] sm:$0xff] %vm2932, %v2927
          %2942 = vst.msk [vmem:[%s226 + $0x48] sm:$0xff] %vm2932, %v2928
          %2943 = vst.msk [vmem:[%s226 + $0x50] sm:$0xff] %vm2932, %v2929
          %2944 = vst.msk [vmem:[%s226 + $0x58] sm:$0xff] %vm2932, %v2930
          %2945 = vst.msk [vmem:[%s226 + $0x60] sm:$0xff] %vm2932, %v2931
        $region44: #{tpu_custom_call.1} parent=31 // pred_fallthru
          _
        %s2946 = smul.u32 13, %s22
        %p2947 = scmp.lt.s32.totalorder %s2946, 25
        %s2948 = scalar_select %p2947, %s2946, 25
        %s2949 = smul.addr %s2948, 8
        %s2950 = scalar_lea.vmem %s3, %s2949
        // Predicated region
        $region45: #{tpu_custom_call.1} parent=31 // pred_check
          %p2951 = pneg %p121
        $region46: #{tpu_custom_call.1} parent=31 // pred_check_branch
          %2953 = sbr.rel (%p2951) target = $region48
        $region47: #{tpu_custom_call.1} parent=31 // pred_region
          %s2954 = smul.u32 13, %s22
        $region48: #{tpu_custom_call.1} parent=31 // pred_fallthru
          _
      $region32: #{tpu_custom_call.1} parent=5 // pred_fallthru
        _
      %p2955 = scmp.le.s32.totalorder 2, %s13
      // Predicated region
      $region49: #{tpu_custom_call.1} parent=5 // pred_check
        %p2956 = pneg %p2955
      $region50: #{tpu_custom_call.1} parent=5 // pred_check_branch
        %2958 = sbr.rel (%p2956) target = $region52
      $region51: #{tpu_custom_call.1} parent=5 // pred_region
        %s2959 = ssub.s32 %s13, 2
        // Predicated region
        $region53: #{tpu_custom_call.1} parent=51 // pred_check
          %p2960 = pneg %p127
        $region54: #{tpu_custom_call.1} parent=51 // pred_check_branch
          %2962 = sbr.rel (%p2960) target = $region56
        $region55: #{tpu_custom_call.1} parent=51 // pred_region
          %s2963 = smul.u32 13, %s24
          %p2964 = scmp.lt.s32.totalorder %s2963, 25
          %s2965 = scalar_select %p2964, %s2963, 25
          %s2966 = smul.addr %s2965, 8
          %s2967 = scalar_lea.vmem %s3, %s2966
        $region56: #{tpu_custom_call.1} parent=51 // pred_fallthru
          _
      $region52: #{tpu_custom_call.1} parent=5 // pred_fallthru
        _
    $region6: #{tpu_custom_call.1} parent=1 // loop_footer
      %s17 = sadd.s32 1, %s13
    $region7: #{tpu_custom_call.1} parent=1 // loop_footer_branch
      %12 = sbr.rel target = $region3
    $region8: #{tpu_custom_call.1} parent=1 // loop_exit
      _
    %2968 = vsyncpa [#allocation6], 1
    %s2969 = scalar_lea.sflag [#allocation6], 1
    %2970 = vsyncpa %s2969, 1

</llo_original>
